<compile_context>
chip_gen: v7x
topology: tpu7x:2x2x1
jax: 0.10.0
libtpu: 0.0.40
codegen_flags: <defaults>
</compile_context>

<pallas_src>
import functools
import math

import jax
import jax.numpy as jnp
from jax.experimental import pallas as pl
from jax.experimental.pallas import tpu as pltpu


def _layer_kernel(x_ref, wqkv_ref, bqkv_ref, wo_ref, bo_ref,
                  w1_ref, b1_ref, w2_ref, b2_ref, o_ref, *, num_head):
    """One grid step: B_TILE batch elements of MHA self-attention + FFN."""
    B, L, E = x_ref.shape
    M = B * L
    dh = E // num_head

    # ---- fused Q/K/V in-projection on (B*L, E) rows -------------------------
    x = x_ref[...].reshape(M, E).astype(jnp.bfloat16)
    qkv = jnp.dot(x, wqkv_ref[...], preferred_element_type=jnp.float32)
    qkv = (qkv + bqkv_ref[...]).astype(jnp.bfloat16)          # (M, 3E)
    # NOTE: 1/sqrt(dh) is already folded into the Q columns of wqkv / bqkv.

    # ---- split heads into one leading batch dim: (num_head*B, L, dh) --------
    def split_heads(base):
        parts = [qkv[:, base + h * dh: base + (h + 1) * dh]
                 for h in range(num_head)]
        return jnp.stack(parts, axis=0).reshape(num_head * B, L, dh)

    q = split_heads(0)
    k = split_heads(E)
    v = split_heads(2 * E)

    # ---- batched scaled-dot-product attention (single batch dim g=h*B+b) ----
    s = jnp.einsum('gqd,gkd->gqk', q, k, preferred_element_type=jnp.float32)
    s = s - jnp.max(s, axis=-1, keepdims=True)
    p = jnp.exp(s)
    p = p * pl.reciprocal(jnp.sum(p, axis=-1, keepdims=True), approx=True)
    ctx = jnp.einsum('gqk,gkd->gqd', p.astype(jnp.bfloat16), v,
                     preferred_element_type=jnp.float32)       # (H*B, L, dh)

    # ---- merge heads back to (M, E) and out-project --------------------------
    ctx = ctx.reshape(num_head, M, dh)
    attn = jnp.concatenate([ctx[h] for h in range(num_head)], axis=-1)  # (M, E)
    attn = jnp.dot(attn.astype(jnp.bfloat16), wo_ref[...],
                   preferred_element_type=jnp.float32) + bo_ref[...]

    # ---- position-wise FFN: Linear -> ReLU -> Linear -------------------------
    # TODO(synk): PositionWiseFFN's exact definition is not given in the source;
    # a standard Linear(dim, 4*dim) -> ReLU -> Linear(4*dim, dim) is assumed.
    h1 = jnp.dot(attn.astype(jnp.bfloat16), w1_ref[...],
                 preferred_element_type=jnp.float32) + b1_ref[...]
    h1 = jnp.maximum(h1, 0.0)
    out = jnp.dot(h1.astype(jnp.bfloat16), w2_ref[...],
                  preferred_element_type=jnp.float32) + b2_ref[...]

    o_ref[...] = out.reshape(B, L, E).astype(o_ref.dtype)


def _prep_params(params, num_head):
    """Pack Q/K/V, fold attention scale into Q, cast matmul weights to bf16."""
    E = params["wq"].shape[0]
    scale = 1.0 / math.sqrt(E // num_head)
    wqkv = jnp.concatenate(
        [params["wq"] * scale, params["wk"], params["wv"]], axis=1
    ).astype(jnp.bfloat16)                                      # (E, 3E)
    bqkv = jnp.concatenate(
        [params["bq"] * scale, params["bk"], params["bv"]], axis=1
    ).astype(jnp.float32)                                       # (1, 3E)
    return (wqkv, bqkv,
            params["wo"].astype(jnp.bfloat16), params["bo"].astype(jnp.float32),
            params["w1"].astype(jnp.bfloat16), params["b1"].astype(jnp.float32),
            params["w2"].astype(jnp.bfloat16), params["b2"].astype(jnp.float32))


def layer_forward(src, params, num_head, *, b_tile=8):
    """src: (L, N, E) float32 (PyTorch MultiheadAttention default layout)."""
    L, N, E = src.shape
    hidden = params["w1"].shape[1]
    b_tile = min(b_tile, N)
    assert N % b_tile == 0, "batch must be divisible by b_tile"
    assert E % num_head == 0

    wqkv, bqkv, wo, bo, w1, b1, w2, b2 = _prep_params(params, num_head)

    # Avoidable if the surrounding model is batch-first end-to-end.
    x = jnp.transpose(src, (1, 0, 2))   # (N, L, E)

    def const(shape):
        return pl.BlockSpec(shape, lambda n: (0,) * len(shape))

    kernel = functools.partial(_layer_kernel, num_head=num_head)

    out = pl.pallas_call(
        kernel,
        out_shape=jax.ShapeDtypeStruct((N, L, E), jnp.float32),
        grid=(N // b_tile,),
        in_specs=[
            pl.BlockSpec((b_tile, L, E), lambda n: (n, 0, 0)),   # x tile
            const((E, 3 * E)), const((1, 3 * E)),                # packed Wqkv, bqkv
            const((E, E)), const((1, E)),                        # Wo, bo
            const((E, hidden)), const((1, hidden)),              # FFN W1, b1
            const((hidden, E)), const((1, E)),                   # FFN W2, b2
        ],
        out_specs=pl.BlockSpec((b_tile, L, E), lambda n: (n, 0, 0)),
        compiler_params=pltpu.CompilerParams(
            dimension_semantics=("parallel",),
            vmem_limit_bytes=64 * 1024 * 1024,
        ),
    )(x, wqkv, bqkv, wo, bo, w1, b1, w2, b2)

    return jnp.transpose(out, (1, 0, 2))   # back to (L, N, E)


def init_params(key, dim, hidden):
    """Deterministic synthetic parameters (shapes match nn.MultiheadAttention +
    a Linear(dim, hidden) -> ReLU -> Linear(hidden, dim) FFN).  Projection
    matrices are stored pre-transposed as (in, out)."""
    ks = jax.random.split(key, 12)
    s = 0.05
    return {
        "wq": s * jax.random.normal(ks[0], (dim, dim), jnp.float32),
        "wk": s * jax.random.normal(ks[1], (dim, dim), jnp.float32),
        "wv": s * jax.random.normal(ks[2], (dim, dim), jnp.float32),
        "bq": s * jax.random.normal(ks[3], (1, dim), jnp.float32),
        "bk": s * jax.random.normal(ks[4], (1, dim), jnp.float32),
        "bv": s * jax.random.normal(ks[5], (1, dim), jnp.float32),
        "wo": s * jax.random.normal(ks[6], (dim, dim), jnp.float32),
        "bo": s * jax.random.normal(ks[7], (1, dim), jnp.float32),
        "w1": s * jax.random.normal(ks[8], (dim, hidden), jnp.float32),
        "b1": s * jax.random.normal(ks[9], (1, hidden), jnp.float32),
        "w2": s * jax.random.normal(ks[10], (hidden, dim), jnp.float32),
        "b2": s * jax.random.normal(ks[11], (1, dim), jnp.float32),
    }


if __name__ == "__main__":
    # Small but TPU-friendly shapes: E=128 (lane-dense), L=16 (sublane-aligned),
    # batch=16 with B_TILE=8 -> grid of 2 parallel steps (keeps both v7x TCs busy).
    seq, batch, dim, num_head = 16, 16, 128, 4
    hidden = 4 * dim

    key = jax.random.PRNGKey(0)
    k_src, k_par = jax.random.split(key)
    src = jax.random.normal(k_src, (seq, batch, dim), jnp.float32)   # (L, N, E)
    params = init_params(k_par, dim, hidden)

    out = layer_forward(src, params, num_head, b_tile=8)
    jax.block_until_ready(out)
    assert out.shape == (seq, batch, dim), out.shape
    assert bool(jnp.isfinite(out).all())
    print("KERNEL_OK")
</pallas_src>

<mosaic_0001>
module attributes {stable_mosaic.version = 11 : i64} {
  func.func @_layer_kernel(%arg0: i32, %arg1: memref<8x16x128xf32, #tpu.memory_space<vmem>>, %arg2: memref<128x384xbf16, #tpu.memory_space<vmem>>, %arg3: memref<1x384xf32, #tpu.memory_space<vmem>>, %arg4: memref<128x128xbf16, #tpu.memory_space<vmem>>, %arg5: memref<1x128xf32, #tpu.memory_space<vmem>>, %arg6: memref<128x512xbf16, #tpu.memory_space<vmem>>, %arg7: memref<1x512xf32, #tpu.memory_space<vmem>>, %arg8: memref<512x128xbf16, #tpu.memory_space<vmem>>, %arg9: memref<1x128xf32, #tpu.memory_space<vmem>>, %arg10: memref<8x16x128xf32, #tpu.memory_space<vmem>>) attributes {dimension_semantics = [#tpu.dimension_semantics<parallel>], iteration_bounds = array<i64: 2>, scalar_prefetch = 0 : i64, scratch_operands = 0 : i64, tpu.core_type = #tpu.core_type<tc>, window_params = [{transform_indices = @transform_0, window_bounds = array<i64: 8, 16, 128>}, {pipeline_mode = #tpu.pipeline_mode<synchronous>, transform_indices = @transform_1, window_bounds = array<i64: 128, 384>}, {pipeline_mode = #tpu.pipeline_mode<synchronous>, transform_indices = @transform_2, window_bounds = array<i64: 1, 384>}, {pipeline_mode = #tpu.pipeline_mode<synchronous>, transform_indices = @transform_3, window_bounds = array<i64: 128, 128>}, {pipeline_mode = #tpu.pipeline_mode<synchronous>, transform_indices = @transform_4, window_bounds = array<i64: 1, 128>}, {pipeline_mode = #tpu.pipeline_mode<synchronous>, transform_indices = @transform_5, window_bounds = array<i64: 128, 512>}, {pipeline_mode = #tpu.pipeline_mode<synchronous>, transform_indices = @transform_6, window_bounds = array<i64: 1, 512>}, {pipeline_mode = #tpu.pipeline_mode<synchronous>, transform_indices = @transform_7, window_bounds = array<i64: 512, 128>}, {pipeline_mode = #tpu.pipeline_mode<synchronous>, transform_indices = @transform_8, window_bounds = array<i64: 1, 128>}, {transform_indices = @transform_9, window_bounds = array<i64: 8, 16, 128>}]} {
    %c0 = arith.constant 0 : index
    %c0_0 = arith.constant 0 : index
    %c0_1 = arith.constant 0 : index
    %0 = vector.load %arg1[%c0, %c0_0, %c0_1] : memref<8x16x128xf32, #tpu.memory_space<vmem>>, vector<8x16x128xf32>
    %1 = vector.shape_cast %0 : vector<8x16x128xf32> to vector<128x128xf32>
    %2 = arith.truncf %1 : vector<128x128xf32> to vector<128x128xbf16>
    %c0_2 = arith.constant 0 : index
    %c0_3 = arith.constant 0 : index
    %3 = vector.load %arg2[%c0_2, %c0_3] : memref<128x384xbf16, #tpu.memory_space<vmem>>, vector<128x384xbf16>
    %cst = arith.constant dense<0.000000e+00> : vector<128x384xf32>
    %4 = tpu.matmul %2, %3, %cst {dimension_numbers = #tpu.dot_dimension_numbers<[1], [0], [0], [1], [0, 0, 1, 1], [], []>} : vector<128x128xbf16>, vector<128x384xbf16>, vector<128x384xf32> -> vector<128x384xf32>
    %c0_4 = arith.constant 0 : index
    %c0_5 = arith.constant 0 : index
    %5 = vector.load %arg3[%c0_4, %c0_5] : memref<1x384xf32, #tpu.memory_space<vmem>>, vector<1x384xf32>
    %6 = vector.broadcast %5 : vector<1x384xf32> to vector<128x384xf32>
    %7 = arith.addf %4, %6 : vector<128x384xf32>
    %8 = arith.truncf %7 : vector<128x384xf32> to vector<128x384xbf16>
    %9 = vector.extract_strided_slice %8 {offsets = [0, 0], sizes = [128, 32], strides = [1, 1]} : vector<128x384xbf16> to vector<128x32xbf16>
    %10 = vector.extract_strided_slice %8 {offsets = [0, 32], sizes = [128, 32], strides = [1, 1]} : vector<128x384xbf16> to vector<128x32xbf16>
    %11 = vector.extract_strided_slice %8 {offsets = [0, 64], sizes = [128, 32], strides = [1, 1]} : vector<128x384xbf16> to vector<128x32xbf16>
    %12 = vector.extract_strided_slice %8 {offsets = [0, 96], sizes = [128, 32], strides = [1, 1]} : vector<128x384xbf16> to vector<128x32xbf16>
    %13 = vector.shape_cast %9 : vector<128x32xbf16> to vector<1x128x32xbf16>
    %14 = vector.shape_cast %10 : vector<128x32xbf16> to vector<1x128x32xbf16>
    %15 = vector.shape_cast %11 : vector<128x32xbf16> to vector<1x128x32xbf16>
    %16 = vector.shape_cast %12 : vector<128x32xbf16> to vector<1x128x32xbf16>
    %17 = tpu.concatenate %13, %14, %15, %16 in 0 : vector<1x128x32xbf16>, vector<1x128x32xbf16>, vector<1x128x32xbf16>, vector<1x128x32xbf16> -> vector<4x128x32xbf16>
    %18 = vector.shape_cast %17 : vector<4x128x32xbf16> to vector<32x16x32xbf16>
    %19 = vector.extract_strided_slice %8 {offsets = [0, 128], sizes = [128, 32], strides = [1, 1]} : vector<128x384xbf16> to vector<128x32xbf16>
    %20 = vector.extract_strided_slice %8 {offsets = [0, 160], sizes = [128, 32], strides = [1, 1]} : vector<128x384xbf16> to vector<128x32xbf16>
    %21 = vector.extract_strided_slice %8 {offsets = [0, 192], sizes = [128, 32], strides = [1, 1]} : vector<128x384xbf16> to vector<128x32xbf16>
    %22 = vector.extract_strided_slice %8 {offsets = [0, 224], sizes = [128, 32], strides = [1, 1]} : vector<128x384xbf16> to vector<128x32xbf16>
    %23 = vector.shape_cast %19 : vector<128x32xbf16> to vector<1x128x32xbf16>
    %24 = vector.shape_cast %20 : vector<128x32xbf16> to vector<1x128x32xbf16>
    %25 = vector.shape_cast %21 : vector<128x32xbf16> to vector<1x128x32xbf16>
    %26 = vector.shape_cast %22 : vector<128x32xbf16> to vector<1x128x32xbf16>
    %27 = tpu.concatenate %23, %24, %25, %26 in 0 : vector<1x128x32xbf16>, vector<1x128x32xbf16>, vector<1x128x32xbf16>, vector<1x128x32xbf16> -> vector<4x128x32xbf16>
    %28 = vector.shape_cast %27 : vector<4x128x32xbf16> to vector<32x16x32xbf16>
    %29 = vector.extract_strided_slice %8 {offsets = [0, 256], sizes = [128, 32], strides = [1, 1]} : vector<128x384xbf16> to vector<128x32xbf16>
    %30 = vector.extract_strided_slice %8 {offsets = [0, 288], sizes = [128, 32], strides = [1, 1]} : vector<128x384xbf16> to vector<128x32xbf16>
    %31 = vector.extract_strided_slice %8 {offsets = [0, 320], sizes = [128, 32], strides = [1, 1]} : vector<128x384xbf16> to vector<128x32xbf16>
    %32 = vector.extract_strided_slice %8 {offsets = [0, 352], sizes = [128, 32], strides = [1, 1]} : vector<128x384xbf16> to vector<128x32xbf16>
    %33 = vector.shape_cast %29 : vector<128x32xbf16> to vector<1x128x32xbf16>
    %34 = vector.shape_cast %30 : vector<128x32xbf16> to vector<1x128x32xbf16>
    %35 = vector.shape_cast %31 : vector<128x32xbf16> to vector<1x128x32xbf16>
    %36 = vector.shape_cast %32 : vector<128x32xbf16> to vector<1x128x32xbf16>
    %37 = tpu.concatenate %33, %34, %35, %36 in 0 : vector<1x128x32xbf16>, vector<1x128x32xbf16>, vector<1x128x32xbf16>, vector<1x128x32xbf16> -> vector<4x128x32xbf16>
    %38 = vector.shape_cast %37 : vector<4x128x32xbf16> to vector<32x16x32xbf16>
    "tpu.trace_start"() <{level = 10 : i32, message = "gqd,gkd->gqk"}> : () -> ()
    %cst_6 = arith.constant dense<0.000000e+00> : vector<32x16x16xf32>
    %39 = tpu.matmul %18, %28, %cst_6 {dimension_numbers = #tpu.dot_dimension_numbers<[2], [2], [1], [1], [0, 0, 0, 1, 1, 1], [0], [0]>} : vector<32x16x32xbf16>, vector<32x16x32xbf16>, vector<32x16x16xf32> -> vector<32x16x16xf32>
    "tpu.trace_stop"() : () -> ()
    %cst_7 = arith.constant dense<0xFF800000> : vector<32x16xf32>
    %40 = vector.multi_reduction <maximumf>, %39, %cst_7 [2] : vector<32x16x16xf32> to vector<32x16xf32>
    %41 = vector.shape_cast %40 : vector<32x16xf32> to vector<32x16x1xf32>
    %42 = vector.broadcast %41 : vector<32x16x1xf32> to vector<32x16x16xf32>
    %43 = arith.subf %39, %42 : vector<32x16x16xf32>
    %44 = math.exp %43 : vector<32x16x16xf32>
    %cst_8 = arith.constant dense<0.000000e+00> : vector<32x16xf32>
    %45 = vector.multi_reduction <add>, %44, %cst_8 [2] : vector<32x16x16xf32> to vector<32x16xf32>
    %46 = vector.shape_cast %45 : vector<32x16xf32> to vector<32x16x1xf32>
    %47 = tpu.reciprocal %46 {approx = true} : vector<32x16x1xf32> -> vector<32x16x1xf32>
    %48 = vector.broadcast %47 : vector<32x16x1xf32> to vector<32x16x16xf32>
    %49 = arith.mulf %44, %48 : vector<32x16x16xf32>
    %50 = arith.truncf %49 : vector<32x16x16xf32> to vector<32x16x16xbf16>
    "tpu.trace_start"() <{level = 10 : i32, message = "gqk,gkd->gqd"}> : () -> ()
    %cst_9 = arith.constant dense<0.000000e+00> : vector<32x16x32xf32>
    %51 = tpu.matmul %50, %38, %cst_9 {dimension_numbers = #tpu.dot_dimension_numbers<[2], [1], [1], [2], [0, 0, 0, 1, 1, 2], [0], [0]>} : vector<32x16x16xbf16>, vector<32x16x32xbf16>, vector<32x16x32xf32> -> vector<32x16x32xf32>
    "tpu.trace_stop"() : () -> ()
    %52 = vector.shape_cast %51 : vector<32x16x32xf32> to vector<4x128x32xf32>
    %53 = vector.extract_strided_slice %52 {offsets = [0, 0, 0], sizes = [1, 128, 32], strides = [1, 1, 1]} : vector<4x128x32xf32> to vector<1x128x32xf32>
    %54 = vector.shape_cast %53 : vector<1x128x32xf32> to vector<128x32xf32>
    %55 = vector.extract_strided_slice %52 {offsets = [1, 0, 0], sizes = [1, 128, 32], strides = [1, 1, 1]} : vector<4x128x32xf32> to vector<1x128x32xf32>
    %56 = vector.shape_cast %55 : vector<1x128x32xf32> to vector<128x32xf32>
    %57 = vector.extract_strided_slice %52 {offsets = [2, 0, 0], sizes = [1, 128, 32], strides = [1, 1, 1]} : vector<4x128x32xf32> to vector<1x128x32xf32>
    %58 = vector.shape_cast %57 : vector<1x128x32xf32> to vector<128x32xf32>
    %59 = vector.extract_strided_slice %52 {offsets = [3, 0, 0], sizes = [1, 128, 32], strides = [1, 1, 1]} : vector<4x128x32xf32> to vector<1x128x32xf32>
    %60 = vector.shape_cast %59 : vector<1x128x32xf32> to vector<128x32xf32>
    %61 = tpu.concatenate %54, %56, %58, %60 in 1 : vector<128x32xf32>, vector<128x32xf32>, vector<128x32xf32>, vector<128x32xf32> -> vector<128x128xf32>
    %62 = arith.truncf %61 : vector<128x128xf32> to vector<128x128xbf16>
    %c0_10 = arith.constant 0 : index
    %c0_11 = arith.constant 0 : index
    %63 = vector.load %arg4[%c0_10, %c0_11] : memref<128x128xbf16, #tpu.memory_space<vmem>>, vector<128x128xbf16>
    %cst_12 = arith.constant dense<0.000000e+00> : vector<128x128xf32>
    %64 = tpu.matmul %62, %63, %cst_12 {dimension_numbers = #tpu.dot_dimension_numbers<[1], [0], [0], [1], [0, 0, 1, 1], [], []>} : vector<128x128xbf16>, vector<128x128xbf16>, vector<128x128xf32> -> vector<128x128xf32>
    %c0_13 = arith.constant 0 : index
    %c0_14 = arith.constant 0 : index
    %65 = vector.load %arg5[%c0_13, %c0_14] : memref<1x128xf32, #tpu.memory_space<vmem>>, vector<1x128xf32>
    %66 = vector.broadcast %65 : vector<1x128xf32> to vector<128x128xf32>
    %67 = arith.addf %64, %66 : vector<128x128xf32>
    %68 = arith.truncf %67 : vector<128x128xf32> to vector<128x128xbf16>
    %c0_15 = arith.constant 0 : index
    %c0_16 = arith.constant 0 : index
    %69 = vector.load %arg6[%c0_15, %c0_16] : memref<128x512xbf16, #tpu.memory_space<vmem>>, vector<128x512xbf16>
    %cst_17 = arith.constant dense<0.000000e+00> : vector<128x512xf32>
    %70 = tpu.matmul %68, %69, %cst_17 {dimension_numbers = #tpu.dot_dimension_numbers<[1], [0], [0], [1], [0, 0, 1, 1], [], []>} : vector<128x128xbf16>, vector<128x512xbf16>, vector<128x512xf32> -> vector<128x512xf32>
    %c0_18 = arith.constant 0 : index
    %c0_19 = arith.constant 0 : index
    %71 = vector.load %arg7[%c0_18, %c0_19] : memref<1x512xf32, #tpu.memory_space<vmem>>, vector<1x512xf32>
    %72 = vector.broadcast %71 : vector<1x512xf32> to vector<128x512xf32>
    %73 = arith.addf %70, %72 : vector<128x512xf32>
    %cst_20 = arith.constant 0.000000e+00 : f32
    %74 = vector.broadcast %cst_20 : f32 to vector<128x512xf32>
    %75 = arith.maximumf %73, %74 : vector<128x512xf32>
    %76 = arith.truncf %75 : vector<128x512xf32> to vector<128x512xbf16>
    %c0_21 = arith.constant 0 : index
    %c0_22 = arith.constant 0 : index
    %77 = vector.load %arg8[%c0_21, %c0_22] : memref<512x128xbf16, #tpu.memory_space<vmem>>, vector<512x128xbf16>
    %cst_23 = arith.constant dense<0.000000e+00> : vector<128x128xf32>
    %78 = tpu.matmul %76, %77, %cst_23 {dimension_numbers = #tpu.dot_dimension_numbers<[1], [0], [0], [1], [0, 0, 1, 1], [], []>} : vector<128x512xbf16>, vector<512x128xbf16>, vector<128x128xf32> -> vector<128x128xf32>
    %c0_24 = arith.constant 0 : index
    %c0_25 = arith.constant 0 : index
    %79 = vector.load %arg9[%c0_24, %c0_25] : memref<1x128xf32, #tpu.memory_space<vmem>>, vector<1x128xf32>
    %80 = vector.broadcast %79 : vector<1x128xf32> to vector<128x128xf32>
    %81 = arith.addf %78, %80 : vector<128x128xf32>
    %82 = vector.shape_cast %81 : vector<128x128xf32> to vector<8x16x128xf32>
    %c0_26 = arith.constant 0 : index
    %c0_27 = arith.constant 0 : index
    %c0_28 = arith.constant 0 : index
    %83 = vector.load %arg10[%c0_26, %c0_27, %c0_28] : memref<8x16x128xf32, #tpu.memory_space<vmem>>, vector<8x16x128xf32>
    tpu.vector_store %arg10[%c0_26, %c0_27, %c0_28], %82 {strides = array<i32>} : memref<8x16x128xf32, #tpu.memory_space<vmem>>, vector<8x16x128xf32>,
    return
  }
  func.func @transform_0(%arg0: i32) -> (i32, i32, i32) {
    %c0_i32 = arith.constant 0 : i32
    %c0_i32_0 = arith.constant 0 : i32
    %c0_i32_1 = arith.constant 0 : i32
    return %arg0, %c0_i32, %c0_i32_0 : i32, i32, i32
  }
  func.func @transform_1(%arg0: i32) -> (i32, i32) {
    %c0_i32 = arith.constant 0 : i32
    %c0_i32_0 = arith.constant 0 : i32
    %c0_i32_1 = arith.constant 0 : i32
    return %c0_i32, %c0_i32_0 : i32, i32
  }
  func.func @transform_2(%arg0: i32) -> (i32, i32) {
    %c0_i32 = arith.constant 0 : i32
    %c0_i32_0 = arith.constant 0 : i32
    %c0_i32_1 = arith.constant 0 : i32
    return %c0_i32, %c0_i32_0 : i32, i32
  }
  func.func @transform_3(%arg0: i32) -> (i32, i32) {
    %c0_i32 = arith.constant 0 : i32
    %c0_i32_0 = arith.constant 0 : i32
    %c0_i32_1 = arith.constant 0 : i32
    return %c0_i32, %c0_i32_0 : i32, i32
  }
  func.func @transform_4(%arg0: i32) -> (i32, i32) {
    %c0_i32 = arith.constant 0 : i32
    %c0_i32_0 = arith.constant 0 : i32
    %c0_i32_1 = arith.constant 0 : i32
    return %c0_i32, %c0_i32_0 : i32, i32
  }
  func.func @transform_5(%arg0: i32) -> (i32, i32) {
    %c0_i32 = arith.constant 0 : i32
    %c0_i32_0 = arith.constant 0 : i32
    %c0_i32_1 = arith.constant 0 : i32
    return %c0_i32, %c0_i32_0 : i32, i32
  }
  func.func @transform_6(%arg0: i32) -> (i32, i32) {
    %c0_i32 = arith.constant 0 : i32
    %c0_i32_0 = arith.constant 0 : i32
    %c0_i32_1 = arith.constant 0 : i32
    return %c0_i32, %c0_i32_0 : i32, i32
  }
  func.func @transform_7(%arg0: i32) -> (i32, i32) {
    %c0_i32 = arith.constant 0 : i32
    %c0_i32_0 = arith.constant 0 : i32
    %c0_i32_1 = arith.constant 0 : i32
    return %c0_i32, %c0_i32_0 : i32, i32
  }
  func.func @transform_8(%arg0: i32) -> (i32, i32) {
    %c0_i32 = arith.constant 0 : i32
    %c0_i32_0 = arith.constant 0 : i32
    %c0_i32_1 = arith.constant 0 : i32
    return %c0_i32, %c0_i32_0 : i32, i32
  }
  func.func @transform_9(%arg0: i32) -> (i32, i32, i32) {
    %c0_i32 = arith.constant 0 : i32
    %c0_i32_0 = arith.constant 0 : i32
    %c0_i32_1 = arith.constant 0 : i32
    return %arg0, %c0_i32, %c0_i32_0 : i32, i32, i32
  }
}

</mosaic_0001>

<llo_original>
// kernel: tpu_custom_call.1
$region0: #{tpu_custom_call.1}
  #allocation0 [shape = 'u32[]', space=smem, size = 0x4, offset = 0x4, fixed_abs, tag = 'smem constant byte address 0x4 - core index']
  #allocation1 [shape = 'u32[144,128]{1,0:T(1,128)}', space=vmem, size = 0x12000, scoped, tag = 'internal scratch']
  %s0 = inlined_call_operand.hbm [shape: f32[16,16,128], index: 0, kind: input, shape index: {}]
  %s1 = inlined_call_operand.hbm [shape: bf16[128,384], index: 1, kind: input, shape index: {}]
  %s2 = inlined_call_operand.hbm [shape: f32[1,384], index: 2, kind: input, shape index: {}]
  %s3 = inlined_call_operand.hbm [shape: bf16[128,128], index: 3, kind: input, shape index: {}]
  %s4 = inlined_call_operand.hbm [shape: f32[1,128], index: 4, kind: input, shape index: {}]
  %s5 = inlined_call_operand.hbm [shape: bf16[128,512], index: 5, kind: input, shape index: {}]
  %s6 = inlined_call_operand.hbm [shape: f32[1,512], index: 6, kind: input, shape index: {}]
  %s7 = inlined_call_operand.hbm [shape: bf16[512,128], index: 7, kind: input, shape index: {}]
  %s8 = inlined_call_operand.hbm [shape: f32[1,128], index: 8, kind: input, shape index: {}]
  %s9 = inlined_call_operand.hbm [shape: f32[16,16,128], index: 9, kind: output, shape index: {}]
  %s10 = sld [smem:[#allocation0]]
  $region105: #{tpu_custom_call.1} parent=0
    _
  %s12 = ssub.s32 1, %s10
  %s13 = scalar_select 0, %s12, %s10
  $region1: #{tpu_custom_call.1} parent=0
    #allocation2 [shape = 'u8[131072]{0}', space=vmem, size = 0x20000, scoped, tag = 'input window, operand 0']
    #allocation3 [shape = 's32[2]{0}', space=sflag, size = 0x8, scoped, tag = 'scoped memory for tpu_custom_call.1']
    #allocation4 [shape = 's32[2]{0}', space=sflag, size = 0x8, scoped, tag = 'scoped memory for tpu_custom_call.1']
    #allocation5 [shape = 'u8[98304]{0}', space=vmem, size = 0x18000, scoped, tag = 'input window, operand 1, single buffered']
    #allocation6 [shape = 's32[1]{0}', space=sflag, size = 0x4, scoped, tag = 'scoped memory for tpu_custom_call.1']
    #allocation7 [shape = 'u8[1536]{0}', space=vmem, size = 0x800, scoped, tag = 'input window, operand 2, single buffered']
    #allocation8 [shape = 'u8[32768]{0}', space=vmem, size = 0x8000, scoped, tag = 'input window, operand 3, single buffered']
    #allocation9 [shape = 's32[1]{0}', space=sflag, size = 0x4, scoped, tag = 'scoped memory for tpu_custom_call.1']
    #allocation10 [shape = 'u8[512]{0}', space=vmem, size = 0x400, scoped, tag = 'input window, operand 4, single buffered']
    #allocation11 [shape = 'u8[131072]{0}', space=vmem, size = 0x20000, scoped, tag = 'input window, operand 5, single buffered']
    #allocation12 [shape = 's32[1]{0}', space=sflag, size = 0x4, scoped, tag = 'scoped memory for tpu_custom_call.1']
    #allocation13 [shape = 'u8[2048]{0}', space=vmem, size = 0x800, scoped, tag = 'input window, operand 6, single buffered']
    #allocation14 [shape = 'u8[131072]{0}', space=vmem, size = 0x20000, scoped, tag = 'input window, operand 7, single buffered']
    #allocation15 [shape = 's32[1]{0}', space=sflag, size = 0x4, scoped, tag = 'scoped memory for tpu_custom_call.1']
    #allocation16 [shape = 'u8[512]{0}', space=vmem, size = 0x400, scoped, tag = 'input window, operand 8, single buffered']
    #allocation17 [shape = 'u8[131072]{0}', space=vmem, size = 0x20000, scoped, tag = 'output window, operand 0']
    %14 = vsyncpa [#allocation3], 0
    %s15 = scalar_lea.sflag [#allocation3], 1
    %16 = vsyncpa %s15, 0
    %17 = vsyncpa [#allocation6], 0
    %18 = vsyncpa [#allocation9], 0
    %19 = vsyncpa [#allocation12], 0
    %20 = vsyncpa [#allocation15], 0
    %21 = vsyncpa [#allocation4], 0
    %s22 = scalar_lea.sflag [#allocation4], 1
    %23 = vsyncpa %s22, 0
    loop: start=0, step=1, limit=4
    $region2: #{tpu_custom_call.1} parent=1 // loop_pre_header
      _
    $region3: #{tpu_custom_call.1} parent=1 // loop_header
      %s25 = sphi 0, %s29
      %p26 = scmp.ge.s32.totalorder %s25, 4
      %s35 = sphi 0, %s37
      %s38 = sphi 0, %s35
      %s39 = sphi 0, %s38
      %s55 = sphi 0, %s39
      %s59 = sphi 0, %s59
      %s61 = sphi 0, %s59
      %s62 = sphi 0, %s61
      %s76 = sphi 0, %s62
      %s80 = sphi 0, %s80
      %s82 = sphi 0, %s80
      %s83 = sphi 0, %s82
      %s97 = sphi 0, %s83
      %s101 = sphi 0, %s101
      %s103 = sphi 0, %s101
      %s104 = sphi 0, %s103
      %s118 = sphi 0, %s104
      %s122 = sphi 0, %s122
      %s124 = sphi 0, %s122
      %s125 = sphi 0, %s124
      %s139 = sphi 0, %s125
      %s143 = sphi 0, %s143
      %s145 = sphi 0, %s143
      %s146 = sphi 0, %s145
      %s160 = sphi 0, %s146
      %s164 = sphi 0, %s164
      %s166 = sphi 0, %s164
      %s167 = sphi 0, %s166
      %s181 = sphi 0, %s167
      %s185 = sphi 0, %s185
      %s187 = sphi 0, %s185
      %s188 = sphi 0, %s187
      %s202 = sphi 0, %s188
      %s206 = sphi 0, %s206
      %s208 = sphi 0, %s206
      %s209 = sphi 0, %s208
      %s223 = sphi 0, %s209
      %s229 = sphi 0, %s231
      %s232 = sphi 0, %s229
      %s233 = sphi 0, %s232
      %s249 = sphi 0, %s233
    $region4: #{tpu_custom_call.1} parent=1 // loop_header_branch
      %28 = sbr.rel (%p26) target = $region8
    $region5: #{tpu_custom_call.1} parent=1 // loop_body
      %s30 = ssub.s32 %s25, 1
      %s31 = ssub.s32 %s25, 2
      %s32 = sadd.s32 %s25, 1
      %s33 = ssub.s32 %s25, %s32
      %p34 = scmp.eq.s32.totalorder %s33, 0
      %s36 = sadd.s32 %s35, 1
      %s37 = scalar_select %p34, %s35, %s36
      %p40 = pneg %p34
      %p41 = scmp.eq.s32.totalorder %s25, 1
      %p42 = por %p40, %p41
      %p43 = scmp.ne.s32.totalorder %s35, %s38
      %p44 = scmp.eq.s32.totalorder %s25, 0
      %p45 = por %p43, %p44
      %p46 = scmp.ne.s32.totalorder %s35, %s38
      %p47 = scmp.eq.s32.totalorder %s30, 1
      %p48 = por %p46, %p47
      %p49 = scmp.ne.s32.totalorder %s38, %s39
      %p50 = scmp.eq.s32.totalorder %s30, 0
      %p51 = por %p49, %p50
      %p52 = scmp.ne.s32.totalorder %s38, %s39
      %p53 = scmp.eq.s32.totalorder %s31, 1
      %p54 = por %p52, %p53
      %p56 = scmp.ne.s32.totalorder %s39, %s55
      %p57 = scmp.eq.s32.totalorder %s31, 0
      %p58 = por %p56, %p57
      %s60 = sadd.s32 %s59, 1
      %p63 = scmp.eq.s32.totalorder %s25, 1
      %p64 = scmp.ne.s32.totalorder %s59, %s61
      %p65 = scmp.eq.s32.totalorder %s25, 0
      %p66 = por %p64, %p65
      %p67 = scmp.ne.s32.totalorder %s59, %s61
      %p68 = scmp.eq.s32.totalorder %s30, 1
      %p69 = por %p67, %p68
      %p70 = scmp.ne.s32.totalorder %s61, %s62
      %p71 = scmp.eq.s32.totalorder %s30, 0
      %p72 = por %p70, %p71
      %p73 = scmp.ne.s32.totalorder %s61, %s62
      %p74 = scmp.eq.s32.totalorder %s31, 1
      %p75 = por %p73, %p74
      %p77 = scmp.ne.s32.totalorder %s62, %s76
      %p78 = scmp.eq.s32.totalorder %s31, 0
      %p79 = por %p77, %p78
      %s81 = sadd.s32 %s80, 1
      %p84 = scmp.eq.s32.totalorder %s25, 1
      %p85 = scmp.ne.s32.totalorder %s80, %s82
      %p86 = scmp.eq.s32.totalorder %s25, 0
      %p87 = por %p85, %p86
      %p88 = scmp.ne.s32.totalorder %s80, %s82
      %p89 = scmp.eq.s32.totalorder %s30, 1
      %p90 = por %p88, %p89
      %p91 = scmp.ne.s32.totalorder %s82, %s83
      %p92 = scmp.eq.s32.totalorder %s30, 0
      %p93 = por %p91, %p92
      %p94 = scmp.ne.s32.totalorder %s82, %s83
      %p95 = scmp.eq.s32.totalorder %s31, 1
      %p96 = por %p94, %p95
      %p98 = scmp.ne.s32.totalorder %s83, %s97
      %p99 = scmp.eq.s32.totalorder %s31, 0
      %p100 = por %p98, %p99
      %s102 = sadd.s32 %s101, 1
      %p105 = scmp.eq.s32.totalorder %s25, 1
      %p106 = scmp.ne.s32.totalorder %s101, %s103
      %p107 = scmp.eq.s32.totalorder %s25, 0
      %p108 = por %p106, %p107
      %p109 = scmp.ne.s32.totalorder %s101, %s103
      %p110 = scmp.eq.s32.totalorder %s30, 1
      %p111 = por %p109, %p110
      %p112 = scmp.ne.s32.totalorder %s103, %s104
      %p113 = scmp.eq.s32.totalorder %s30, 0
      %p114 = por %p112, %p113
      %p115 = scmp.ne.s32.totalorder %s103, %s104
      %p116 = scmp.eq.s32.totalorder %s31, 1
      %p117 = por %p115, %p116
      %p119 = scmp.ne.s32.totalorder %s104, %s118
      %p120 = scmp.eq.s32.totalorder %s31, 0
      %p121 = por %p119, %p120
      %s123 = sadd.s32 %s122, 1
      %p126 = scmp.eq.s32.totalorder %s25, 1
      %p127 = scmp.ne.s32.totalorder %s122, %s124
      %p128 = scmp.eq.s32.totalorder %s25, 0
      %p129 = por %p127, %p128
      %p130 = scmp.ne.s32.totalorder %s122, %s124
      %p131 = scmp.eq.s32.totalorder %s30, 1
      %p132 = por %p130, %p131
      %p133 = scmp.ne.s32.totalorder %s124, %s125
      %p134 = scmp.eq.s32.totalorder %s30, 0
      %p135 = por %p133, %p134
      %p136 = scmp.ne.s32.totalorder %s124, %s125
      %p137 = scmp.eq.s32.totalorder %s31, 1
      %p138 = por %p136, %p137
      %p140 = scmp.ne.s32.totalorder %s125, %s139
      %p141 = scmp.eq.s32.totalorder %s31, 0
      %p142 = por %p140, %p141
      %s144 = sadd.s32 %s143, 1
      %p147 = scmp.eq.s32.totalorder %s25, 1
      %p148 = scmp.ne.s32.totalorder %s143, %s145
      %p149 = scmp.eq.s32.totalorder %s25, 0
      %p150 = por %p148, %p149
      %p151 = scmp.ne.s32.totalorder %s143, %s145
      %p152 = scmp.eq.s32.totalorder %s30, 1
      %p153 = por %p151, %p152
      %p154 = scmp.ne.s32.totalorder %s145, %s146
      %p155 = scmp.eq.s32.totalorder %s30, 0
      %p156 = por %p154, %p155
      %p157 = scmp.ne.s32.totalorder %s145, %s146
      %p158 = scmp.eq.s32.totalorder %s31, 1
      %p159 = por %p157, %p158
      %p161 = scmp.ne.s32.totalorder %s146, %s160
      %p162 = scmp.eq.s32.totalorder %s31, 0
      %p163 = por %p161, %p162
      %s165 = sadd.s32 %s164, 1
      %p168 = scmp.eq.s32.totalorder %s25, 1
      %p169 = scmp.ne.s32.totalorder %s164, %s166
      %p170 = scmp.eq.s32.totalorder %s25, 0
      %p171 = por %p169, %p170
      %p172 = scmp.ne.s32.totalorder %s164, %s166
      %p173 = scmp.eq.s32.totalorder %s30, 1
      %p174 = por %p172, %p173
      %p175 = scmp.ne.s32.totalorder %s166, %s167
      %p176 = scmp.eq.s32.totalorder %s30, 0
      %p177 = por %p175, %p176
      %p178 = scmp.ne.s32.totalorder %s166, %s167
      %p179 = scmp.eq.s32.totalorder %s31, 1
      %p180 = por %p178, %p179
      %p182 = scmp.ne.s32.totalorder %s167, %s181
      %p183 = scmp.eq.s32.totalorder %s31, 0
      %p184 = por %p182, %p183
      %s186 = sadd.s32 %s185, 1
      %p189 = scmp.eq.s32.totalorder %s25, 1
      %p190 = scmp.ne.s32.totalorder %s185, %s187
      %p191 = scmp.eq.s32.totalorder %s25, 0
      %p192 = por %p190, %p191
      %p193 = scmp.ne.s32.totalorder %s185, %s187
      %p194 = scmp.eq.s32.totalorder %s30, 1
      %p195 = por %p193, %p194
      %p196 = scmp.ne.s32.totalorder %s187, %s188
      %p197 = scmp.eq.s32.totalorder %s30, 0
      %p198 = por %p196, %p197
      %p199 = scmp.ne.s32.totalorder %s187, %s188
      %p200 = scmp.eq.s32.totalorder %s31, 1
      %p201 = por %p199, %p200
      %p203 = scmp.ne.s32.totalorder %s188, %s202
      %p204 = scmp.eq.s32.totalorder %s31, 0
      %p205 = por %p203, %p204
      %s207 = sadd.s32 %s206, 1
      %p210 = scmp.eq.s32.totalorder %s25, 1
      %p211 = scmp.ne.s32.totalorder %s206, %s208
      %p212 = scmp.eq.s32.totalorder %s25, 0
      %p213 = por %p211, %p212
      %p214 = scmp.ne.s32.totalorder %s206, %s208
      %p215 = scmp.eq.s32.totalorder %s30, 1
      %p216 = por %p214, %p215
      %p217 = scmp.ne.s32.totalorder %s208, %s209
      %p218 = scmp.eq.s32.totalorder %s30, 0
      %p219 = por %p217, %p218
      %p220 = scmp.ne.s32.totalorder %s208, %s209
      %p221 = scmp.eq.s32.totalorder %s31, 1
      %p222 = por %p220, %p221
      %p224 = scmp.ne.s32.totalorder %s209, %s223
      %p225 = scmp.eq.s32.totalorder %s31, 0
      %p226 = por %p224, %p225
      %s227 = ssub.s32 %s25, %s32
      %p228 = scmp.eq.s32.totalorder %s227, 0
      %s230 = sadd.s32 %s229, 1
      %s231 = scalar_select %p228, %s229, %s230
      %p234 = pneg %p228
      %p235 = scmp.eq.s32.totalorder %s25, 1
      %p236 = por %p234, %p235
      %p237 = scmp.ne.s32.totalorder %s229, %s232
      %p238 = scmp.eq.s32.totalorder %s25, 0
      %p239 = por %p237, %p238
      %p240 = scmp.ne.s32.totalorder %s229, %s232
      %p241 = scmp.eq.s32.totalorder %s30, 1
      %p242 = por %p240, %p241
      %p243 = scmp.ne.s32.totalorder %s232, %s233
      %p244 = scmp.eq.s32.totalorder %s30, 0
      %p245 = por %p243, %p244
      %p246 = scmp.ne.s32.totalorder %s232, %s233
      %p247 = scmp.eq.s32.totalorder %s31, 1
      %p248 = por %p246, %p247
      %p250 = scmp.ne.s32.totalorder %s233, %s249
      %p251 = scmp.eq.s32.totalorder %s31, 0
      %p252 = por %p250, %p251
      %p253 = scmp.le.s32.totalorder 1, %s25
      %p254 = scmp.lt.s32.totalorder %s25, 3
      %p255 = pnand %p253, %p254
      %p256 = pneg %p255
      // Predicated region
      $region9: #{tpu_custom_call.1} parent=5 // pred_check
        _
      $region10: #{tpu_custom_call.1} parent=5 // pred_check_branch
        %258 = sbr.rel (%p255) target = $region12
      $region11: #{tpu_custom_call.1} parent=5 // pred_region
        %s259 = ssub.s32 %s25, 1
        // Predicated region
        $region13: #{tpu_custom_call.1} parent=11 // pred_check
          %p260 = pneg %p72
        $region14: #{tpu_custom_call.1} parent=11 // pred_check_branch
          %262 = sbr.rel (%p260) target = $region16
        $region15: #{tpu_custom_call.1} parent=11 // pred_region
          %s264 = ssub.s32 3072, 3072
          %265 = vsyncadd [#allocation6], %s264
          %s266 = sshll.u32 [#allocation5], 4
          %s267 = int_to_ptr.vmem [resolvable:$true] %s266
          %272 = dma.hbm_to_vmem [thread:$0]  %s1, 3072, %s267, [#allocation6], 192, 192, 12
        $region16: #{tpu_custom_call.1} parent=11 // pred_fallthru
          _
        // Predicated region
        $region17: #{tpu_custom_call.1} parent=11 // pred_check
          %p273 = pneg %p93
        $region18: #{tpu_custom_call.1} parent=11 // pred_check_branch
          %275 = sbr.rel (%p273) target = $region20
        $region19: #{tpu_custom_call.1} parent=11 // pred_region
          %s277 = ssub.s32 48, 48
          %278 = vsyncadd [#allocation6], %s277
          %s280 = sshll.u32 [#allocation7], 4
          %s281 = int_to_ptr.vmem [resolvable:$true] %s280
          %283 = dma.hbm_to_vmem [thread:$0]  %s2, 48, %s281, [#allocation6]
        $region20: #{tpu_custom_call.1} parent=11 // pred_fallthru
          _
        // Predicated region
        $region21: #{tpu_custom_call.1} parent=11 // pred_check
          %p284 = pneg %p114
        $region22: #{tpu_custom_call.1} parent=11 // pred_check_branch
          %286 = sbr.rel (%p284) target = $region24
        $region23: #{tpu_custom_call.1} parent=11 // pred_region
          %s288 = ssub.s32 1024, 1024
          %289 = vsyncadd [#allocation9], %s288
          %s290 = sshll.u32 [#allocation8], 4
          %s291 = int_to_ptr.vmem [resolvable:$true] %s290
          %296 = dma.hbm_to_vmem [thread:$0]  %s3, 1024, %s291, [#allocation9], 64, 64, 4
        $region24: #{tpu_custom_call.1} parent=11 // pred_fallthru
          _
        // Predicated region
        $region25: #{tpu_custom_call.1} parent=11 // pred_check
          %p297 = pneg %p135
        $region26: #{tpu_custom_call.1} parent=11 // pred_check_branch
          %299 = sbr.rel (%p297) target = $region28
        $region27: #{tpu_custom_call.1} parent=11 // pred_region
          %s301 = ssub.s32 16, 16
          %302 = vsyncadd [#allocation9], %s301
          %s304 = sshll.u32 [#allocation10], 4
          %s305 = int_to_ptr.vmem [resolvable:$true] %s304
          %307 = dma.hbm_to_vmem [thread:$0]  %s4, 16, %s305, [#allocation9]
        $region28: #{tpu_custom_call.1} parent=11 // pred_fallthru
          _
        // Predicated region
        $region29: #{tpu_custom_call.1} parent=11 // pred_check
          %p308 = pneg %p156
        $region30: #{tpu_custom_call.1} parent=11 // pred_check_branch
          %310 = sbr.rel (%p308) target = $region32
        $region31: #{tpu_custom_call.1} parent=11 // pred_region
          %s312 = ssub.s32 4096, 4096
          %313 = vsyncadd [#allocation12], %s312
          %s314 = sshll.u32 [#allocation11], 4
          %s315 = int_to_ptr.vmem [resolvable:$true] %s314
          %320 = dma.hbm_to_vmem [thread:$0]  %s5, 4096, %s315, [#allocation12], 256, 256, 16
        $region32: #{tpu_custom_call.1} parent=11 // pred_fallthru
          _
        // Predicated region
        $region33: #{tpu_custom_call.1} parent=11 // pred_check
          %p321 = pneg %p177
        $region34: #{tpu_custom_call.1} parent=11 // pred_check_branch
          %323 = sbr.rel (%p321) target = $region36
        $region35: #{tpu_custom_call.1} parent=11 // pred_region
          %s325 = ssub.s32 64, 64
          %326 = vsyncadd [#allocation12], %s325
          %s328 = sshll.u32 [#allocation13], 4
          %s329 = int_to_ptr.vmem [resolvable:$true] %s328
          %331 = dma.hbm_to_vmem [thread:$0]  %s6, 64, %s329, [#allocation12]
        $region36: #{tpu_custom_call.1} parent=11 // pred_fallthru
          _
        // Predicated region
        $region37: #{tpu_custom_call.1} parent=11 // pred_check
          %p332 = pneg %p198
        $region38: #{tpu_custom_call.1} parent=11 // pred_check_branch
          %334 = sbr.rel (%p332) target = $region40
        $region39: #{tpu_custom_call.1} parent=11 // pred_region
          %s336 = ssub.s32 4096, 4096
          %337 = vsyncadd [#allocation15], %s336
          %s338 = sshll.u32 [#allocation14], 4
          %s339 = int_to_ptr.vmem [resolvable:$true] %s338
          %344 = dma.hbm_to_vmem [thread:$0]  %s7, 4096, %s339, [#allocation15], 64, 64, 4
        $region40: #{tpu_custom_call.1} parent=11 // pred_fallthru
          _
        // Predicated region
        $region41: #{tpu_custom_call.1} parent=11 // pred_check
          %p345 = pneg %p219
        $region42: #{tpu_custom_call.1} parent=11 // pred_check_branch
          %347 = sbr.rel (%p345) target = $region44
        $region43: #{tpu_custom_call.1} parent=11 // pred_region
          %s349 = ssub.s32 16, 16
          %350 = vsyncadd [#allocation15], %s349
          %s352 = sshll.u32 [#allocation16], 4
          %s353 = int_to_ptr.vmem [resolvable:$true] %s352
          %355 = dma.hbm_to_vmem [thread:$0]  %s8, 16, %s353, [#allocation15]
        $region44: #{tpu_custom_call.1} parent=11 // pred_fallthru
          _
      $region12: #{tpu_custom_call.1} parent=5 // pred_fallthru
        _
      %p356 = scmp.lt.s32.totalorder %s25, 2
      // Predicated region
      $region45: #{tpu_custom_call.1} parent=5 // pred_check
        %p357 = pneg %p356
      $region46: #{tpu_custom_call.1} parent=5 // pred_check_branch
        %359 = sbr.rel (%p357) target = $region48
      $region47: #{tpu_custom_call.1} parent=5 // pred_region
        // Predicated region
        $region49: #{tpu_custom_call.1} parent=47 // pred_check
          %p360 = pneg %p45
        $region50: #{tpu_custom_call.1} parent=47 // pred_check_branch
          %362 = sbr.rel (%p360) target = $region52
        $region51: #{tpu_custom_call.1} parent=47 // pred_region
          %s363 = sand.u32 %s35, 1
          %s364 = scalar_lea.sflag [#allocation3], %s363
          %s365 = sand.u32 %s35, 1
          %s366 = smul.addr %s365, 128
          %s367 = scalar_lea.vmem [#allocation2], %s366
          %s368 = smul.u32 8, %s25
          %s370 = ssub.s32 2048, 2048
          %371 = vsyncadd %s364, %s370
          %s372 = smul.addr %s368, 2
          %s373 = smul.addr %s372, 128
          %s374 = scalar_lea.hbm %s0, %s373
          %s375 = sshll.u32 %s367, 4
          %s376 = int_to_ptr.vmem [resolvable:$true] %s375
          %381 = dma.hbm_to_vmem [thread:$0]  %s374, 2048, %s376, %s364, 128, 128, 8
        $region52: #{tpu_custom_call.1} parent=47 // pred_fallthru
          _
      $region48: #{tpu_custom_call.1} parent=5 // pred_fallthru
        _
      %p382 = scmp.le.s32.totalorder 1, %s25
      %p383 = scmp.lt.s32.totalorder %s25, 3
      %p384 = pnand %p382, %p383
      %p385 = pneg %p384
      // Predicated region
      $region53: #{tpu_custom_call.1} parent=5 // pred_check
        _
      $region54: #{tpu_custom_call.1} parent=5 // pred_check_branch
        %387 = sbr.rel (%p384) target = $region56
      $region55: #{tpu_custom_call.1} parent=5 // pred_region
        %s388 = ssub.s32 %s25, 1
        %s389 = sand.u32 %s38, 1
        %s390 = scalar_lea.sflag [#allocation3], %s389
        %s391 = sand.u32 %s38, 1
        %s392 = smul.addr %s391, 128
        %s393 = scalar_lea.vmem [#allocation2], %s392
        // Predicated region
        $region57: #{tpu_custom_call.1} parent=55 // pred_check
          %p394 = pneg %p51
        $region58: #{tpu_custom_call.1} parent=55 // pred_check_branch
          %396 = sbr.rel (%p394) target = $region60
        $region59: #{tpu_custom_call.1} parent=55 // pred_region
          %397 = dma.done %s390, 2048
        $region60: #{tpu_custom_call.1} parent=55 // pred_fallthru
          _
        // Predicated region
        $region61: #{tpu_custom_call.1} parent=55 // pred_check
          %p398 = pneg %p72
        $region62: #{tpu_custom_call.1} parent=55 // pred_check_branch
          %400 = sbr.rel (%p398) target = $region64
        $region63: #{tpu_custom_call.1} parent=55 // pred_region
          %401 = dma.done [#allocation6], 3072
        $region64: #{tpu_custom_call.1} parent=55 // pred_fallthru
          _
        // Predicated region
        $region65: #{tpu_custom_call.1} parent=55 // pred_check
          %p402 = pneg %p93
        $region66: #{tpu_custom_call.1} parent=55 // pred_check_branch
          %404 = sbr.rel (%p402) target = $region68
        $region67: #{tpu_custom_call.1} parent=55 // pred_region
          %405 = dma.done [#allocation6], 48
        $region68: #{tpu_custom_call.1} parent=55 // pred_fallthru
          _
        // Predicated region
        $region69: #{tpu_custom_call.1} parent=55 // pred_check
          %p406 = pneg %p114
        $region70: #{tpu_custom_call.1} parent=55 // pred_check_branch
          %408 = sbr.rel (%p406) target = $region72
        $region71: #{tpu_custom_call.1} parent=55 // pred_region
          %409 = dma.done [#allocation9], 1024
        $region72: #{tpu_custom_call.1} parent=55 // pred_fallthru
          _
        // Predicated region
        $region73: #{tpu_custom_call.1} parent=55 // pred_check
          %p410 = pneg %p135
        $region74: #{tpu_custom_call.1} parent=55 // pred_check_branch
          %412 = sbr.rel (%p410) target = $region76
        $region75: #{tpu_custom_call.1} parent=55 // pred_region
          %413 = dma.done [#allocation9], 16
        $region76: #{tpu_custom_call.1} parent=55 // pred_fallthru
          _
        // Predicated region
        $region77: #{tpu_custom_call.1} parent=55 // pred_check
          %p414 = pneg %p156
        $region78: #{tpu_custom_call.1} parent=55 // pred_check_branch
          %416 = sbr.rel (%p414) target = $region80
        $region79: #{tpu_custom_call.1} parent=55 // pred_region
          %417 = dma.done [#allocation12], 4096
        $region80: #{tpu_custom_call.1} parent=55 // pred_fallthru
          _
        // Predicated region
        $region81: #{tpu_custom_call.1} parent=55 // pred_check
          %p418 = pneg %p177
        $region82: #{tpu_custom_call.1} parent=55 // pred_check_branch
          %420 = sbr.rel (%p418) target = $region84
        $region83: #{tpu_custom_call.1} parent=55 // pred_region
          %421 = dma.done [#allocation12], 64
        $region84: #{tpu_custom_call.1} parent=55 // pred_fallthru
          _
        // Predicated region
        $region85: #{tpu_custom_call.1} parent=55 // pred_check
          %p422 = pneg %p198
        $region86: #{tpu_custom_call.1} parent=55 // pred_check_branch
          %424 = sbr.rel (%p422) target = $region88
        $region87: #{tpu_custom_call.1} parent=55 // pred_region
          %425 = dma.done [#allocation15], 4096
        $region88: #{tpu_custom_call.1} parent=55 // pred_fallthru
          _
        // Predicated region
        $region89: #{tpu_custom_call.1} parent=55 // pred_check
          %p426 = pneg %p219
        $region90: #{tpu_custom_call.1} parent=55 // pred_check_branch
          %428 = sbr.rel (%p426) target = $region92
        $region91: #{tpu_custom_call.1} parent=55 // pred_region
          %429 = dma.done [#allocation15], 16
        $region92: #{tpu_custom_call.1} parent=55 // pred_fallthru
          _
        %s430 = sand.u32 %s38, 1
        %s431 = scalar_lea.sflag [#allocation3], %s430
        %s432 = sand.u32 %s38, 1
        %s433 = smul.addr %s432, 128
        %s434 = scalar_lea.vmem [#allocation2], %s433
        %p435 = pneg %p51
        %p436 = pneg %p48
        %p437 = pneg %p72
        %p438 = pneg %p69
        %p439 = pneg %p93
        %p440 = pneg %p90
        %p441 = pneg %p114
        %p442 = pneg %p111
        %p443 = pneg %p135
        %p444 = pneg %p132
        %p445 = pneg %p156
        %p446 = pneg %p153
        %p447 = pneg %p177
        %p448 = pneg %p174
        %p449 = pneg %p198
        %p450 = pneg %p195
        %p451 = pneg %p219
        %p452 = pneg %p216
        %p453 = pneg %p245
        %p454 = pneg %p242
        %s455 = sand.u32 %s232, 1
        %s456 = scalar_lea.sflag [#allocation4], %s455
        %s457 = sand.u32 %s232, 1
        %s458 = smul.addr %s457, 128
        %s459 = scalar_lea.vmem [#allocation17], %s458
        %s460 = smul.u32 8, %s30
        %s461 = smul.u32 8, %s30
        %v463 = vld [vmem:[%s393] sm:$0xff]
        %v464 = vld [vmem:[%s393 + $0x8] sm:$0xff]
        %v465 = vld [vmem:[%s393 + $0x10] sm:$0xff]
        %v466 = vld [vmem:[%s393 + $0x18] sm:$0xff]
        %v467 = vld [vmem:[%s393 + $0x20] sm:$0xff]
        %v468 = vld [vmem:[%s393 + $0x28] sm:$0xff]
        %v469 = vld [vmem:[%s393 + $0x30] sm:$0xff]
        %v470 = vld [vmem:[%s393 + $0x38] sm:$0xff]
        %v471 = vld [vmem:[%s393 + $0x40] sm:$0xff]
        %v472 = vld [vmem:[%s393 + $0x48] sm:$0xff]
        %v473 = vld [vmem:[%s393 + $0x50] sm:$0xff]
        %v474 = vld [vmem:[%s393 + $0x58] sm:$0xff]
        %v475 = vld [vmem:[%s393 + $0x60] sm:$0xff]
        %v476 = vld [vmem:[%s393 + $0x68] sm:$0xff]
        %v477 = vld [vmem:[%s393 + $0x70] sm:$0xff]
        %v478 = vld [vmem:[%s393 + $0x78] sm:$0xff]
        %v479 = vpack.c.bf16 %v464, %v463
        %v480 = vpack.c.bf16 %v466, %v465
        %v481 = vpack.c.bf16 %v468, %v467
        %v482 = vpack.c.bf16 %v470, %v469
        %v483 = vpack.c.bf16 %v472, %v471
        %v484 = vpack.c.bf16 %v474, %v473
        %v485 = vpack.c.bf16 %v476, %v475
        %v486 = vpack.c.bf16 %v478, %v477
        %v487 = vld [vmem:[#allocation5] sm:$0xff]
        %v488 = vld [vmem:[#allocation5 + $0x8] sm:$0xf]
        %v489 = vld [vmem:[#allocation5 + $0xc] sm:$0xff]
        %v490 = vld [vmem:[#allocation5 + $0x14] sm:$0xf]
        %v491 = vld [vmem:[#allocation5 + $0x18] sm:$0xff]
        %v492 = vld [vmem:[#allocation5 + $0x20] sm:$0xf]
        %v493 = vld [vmem:[#allocation5 + $0x24] sm:$0xff]
        %v494 = vld [vmem:[#allocation5 + $0x2c] sm:$0xf]
        %v495 = vld [vmem:[#allocation5 + $0x30] sm:$0xff]
        %v496 = vld [vmem:[#allocation5 + $0x38] sm:$0xf]
        %v497 = vld [vmem:[#allocation5 + $0x3c] sm:$0xff]
        %v498 = vld [vmem:[#allocation5 + $0x44] sm:$0xf]
        %v499 = vld [vmem:[#allocation5 + $0x48] sm:$0xff]
        %v500 = vld [vmem:[#allocation5 + $0x50] sm:$0xf]
        %v501 = vld [vmem:[#allocation5 + $0x54] sm:$0xff]
        %v502 = vld [vmem:[#allocation5 + $0x5c] sm:$0xf]
        %v503 = vld [vmem:[#allocation5 + $0x60] sm:$0xff]
        %v504 = vld [vmem:[#allocation5 + $0x68] sm:$0xf]
        %v505 = vld [vmem:[#allocation5 + $0x6c] sm:$0xff]
        %v506 = vld [vmem:[#allocation5 + $0x74] sm:$0xf]
        %v507 = vld [vmem:[#allocation5 + $0x78] sm:$0xff]
        %v508 = vld [vmem:[#allocation5 + $0x80] sm:$0xf]
        %v509 = vld [vmem:[#allocation5 + $0x84] sm:$0xff]
        %v510 = vld [vmem:[#allocation5 + $0x8c] sm:$0xf]
        %v511 = vld [vmem:[#allocation5 + $0x90] sm:$0xff]
        %v512 = vld [vmem:[#allocation5 + $0x98] sm:$0xf]
        %v513 = vld [vmem:[#allocation5 + $0x9c] sm:$0xff]
        %v514 = vld [vmem:[#allocation5 + $0xa4] sm:$0xf]
        %v515 = vld [vmem:[#allocation5 + $0xa8] sm:$0xff]
        %v516 = vld [vmem:[#allocation5 + $0xb0] sm:$0xf]
        %v517 = vld [vmem:[#allocation5 + $0xb4] sm:$0xff]
        %v518 = vld [vmem:[#allocation5 + $0xbc] sm:$0xf]
        %v519 = vld [vmem:[#allocation7] sm:$0x7]
        %v521 = vlaneseq
        %v522 = vshrl.u32 %v521, 7
        %v523 = vsub.s32 0, %v522
        %v524 = vrot.slane %v519, %v523
        %v525 = vlaneseq
        %v526 = vshrl.u32 %v525, 7
        %v527 = vsub.s32 1, %v526
        %v528 = vrot.slane %v519, %v527
        %v529 = vlaneseq
        %v530 = vshrl.u32 %v529, 7
        %v531 = vsub.s32 2, %v530
        %v532 = vrot.slane %v519, %v531
        %v568 = vunpack.c.l.b16 %v487
        %v569 = vunpack.c.h.b16 %v487
        %v570 = vunpack.c.l.b16 %v488
        %v571 = vunpack.c.l.b16 %v489
        %v572 = vunpack.c.h.b16 %v489
        %v573 = vunpack.c.l.b16 %v490
        %v574 = vunpack.c.l.b16 %v491
        %v575 = vunpack.c.h.b16 %v491
        %v576 = vunpack.c.l.b16 %v492
        %v577 = vunpack.c.l.b16 %v493
        %v578 = vunpack.c.h.b16 %v493
        %v579 = vunpack.c.l.b16 %v494
        %v580 = vunpack.c.l.b16 %v495
        %v581 = vunpack.c.h.b16 %v495
        %v582 = vunpack.c.l.b16 %v496
        %v583 = vunpack.c.l.b16 %v497
        %v584 = vunpack.c.h.b16 %v497
        %v585 = vunpack.c.l.b16 %v498
        %v586 = vunpack.c.l.b16 %v499
        %v587 = vunpack.c.h.b16 %v499
        %v588 = vunpack.c.l.b16 %v500
        %v589 = vunpack.c.l.b16 %v501
        %v590 = vunpack.c.h.b16 %v501
        %v591 = vunpack.c.l.b16 %v502
        %v592 = vunpack.c.l.b16 %v503
        %v593 = vunpack.c.h.b16 %v503
        %v594 = vunpack.c.l.b16 %v504
        %v595 = vunpack.c.l.b16 %v505
        %v596 = vunpack.c.h.b16 %v505
        %v597 = vunpack.c.l.b16 %v506
        %v598 = vunpack.c.l.b16 %v507
        %v599 = vunpack.c.h.b16 %v507
        %v600 = vunpack.c.l.b16 %v508
        %v601 = vunpack.c.l.b16 %v509
        %v602 = vunpack.c.h.b16 %v509
        %v603 = vunpack.c.l.b16 %v510
        %v604 = vunpack.c.l.b16 %v511
        %v605 = vunpack.c.h.b16 %v511
        %v606 = vunpack.c.l.b16 %v512
        %v607 = vunpack.c.l.b16 %v513
        %v608 = vunpack.c.h.b16 %v513
        %v609 = vunpack.c.l.b16 %v514
        %v610 = vunpack.c.l.b16 %v515
        %v611 = vunpack.c.h.b16 %v515
        %v612 = vunpack.c.l.b16 %v516
        %v613 = vunpack.c.l.b16 %v517
        %v614 = vunpack.c.h.b16 %v517
        %v615 = vunpack.c.l.b16 %v518
        %v616 = vpack.c.b16 %v571, %v568
        %v617 = vpack.c.b16 %v572, %v569
        %v618 = vpack.c.b16 %v573, %v570
        %v619 = vpack.c.b16 %v577, %v574
        %v620 = vpack.c.b16 %v578, %v575
        %v621 = vpack.c.b16 %v579, %v576
        %v622 = vpack.c.b16 %v583, %v580
        %v623 = vpack.c.b16 %v584, %v581
        %v624 = vpack.c.b16 %v585, %v582
        %v625 = vpack.c.b16 %v589, %v586
        %v626 = vpack.c.b16 %v590, %v587
        %v627 = vpack.c.b16 %v591, %v588
        %v628 = vpack.c.b16 %v595, %v592
        %v629 = vpack.c.b16 %v596, %v593
        %v630 = vpack.c.b16 %v597, %v594
        %v631 = vpack.c.b16 %v601, %v598
        %v632 = vpack.c.b16 %v602, %v599
        %v633 = vpack.c.b16 %v603, %v600
        %v634 = vpack.c.b16 %v607, %v604
        %v635 = vpack.c.b16 %v608, %v605
        %v636 = vpack.c.b16 %v609, %v606
        %v637 = vpack.c.b16 %v613, %v610
        %v638 = vpack.c.b16 %v614, %v611
        %v639 = vpack.c.b16 %v615, %v612
        %664 = vmatprep.subr.bf16.mxu0 %v617
        %665 = vmatpush1.bf16.msra.mxu0 %v616
        %666 = vmatprep.subr.bf16.mxu0 %v620
        %667 = vmatpush1.bf16.msra.mxu0 %v619
        %668 = vmatprep.subr.bf16.mxu0 %v623
        %669 = vmatpush1.bf16.msra.mxu0 %v622
        %670 = vmatprep.subr.bf16.mxu0 %v626
        %671 = vmatpush1.bf16.msra.mxu0 %v625
        %672 = vmatprep.subr.bf16.mxu0 %v629
        %673 = vmatpush1.bf16.msra.mxu0 %v628
        %674 = vmatprep.subr.bf16.mxu0 %v632
        %675 = vmatpush1.bf16.msra.mxu0 %v631
        %676 = vmatprep.subr.bf16.mxu0 %v635
        %677 = vmatpush1.bf16.msra.mxu0 %v634
        %678 = vmatprep.subr.bf16.mxu0 %v638
        %679 = vmatpush1.bf16.msra.mxu0 %v637
        %680 = vmatprep.subr.bf16.mxu0 0
        %681 = vmatpush1.bf16.msra.mxu0 0
        %682 = vmatprep.subr.bf16.mxu0 0
        %683 = vmatpush1.bf16.msra.mxu0 0
        %684 = vmatprep.subr.bf16.mxu0 0
        %685 = vmatpush1.bf16.msra.mxu0 0
        %686 = vmatprep.subr.bf16.mxu0 0
        %687 = vmatpush1.bf16.msra.mxu0 0
        %688 = vmatprep.subr.bf16.mxu0 0
        %689 = vmatpush1.bf16.msra.mxu0 0
        %690 = vmatprep.subr.bf16.mxu0 0
        %691 = vmatpush1.bf16.msra.mxu0 0
        %692 = vmatprep.subr.bf16.mxu0 0
        %693 = vmatpush1.bf16.msra.mxu0 0
        %694 = vmatprep.subr.bf16.mxu0 0
        %695 = vmatpush1.bf16.msra.mxu0 0
        %696 = vmatprep.mubr.bf16.mxu0 0
        %697 = vmatmul.mubr.bf16.gmra.mrb[0].mxu0 %v479
        %v698 = vpop.f32.mrb[0].mxu0
        %v699 = vadd.f32 %v524, %v698
        %v700 = vpop.f32.mrb[0].mxu0
        %v701 = vadd.f32 %v528, %v700
        %v702 = vpop.f32.mrb[0].mxu0
        %v703 = vadd.f32 %v524, %v702
        %v704 = vpop.f32.mrb[0].mxu0
        %v705 = vadd.f32 %v528, %v704
        %706 = vmatprep.mubr.bf16.mxu0 0
        %707 = vmatmul.mubr.bf16.gmra.mrb[0].mxu0 %v480
        %v708 = vpop.f32.mrb[0].mxu0
        %v709 = vadd.f32 %v524, %v708
        %v710 = vpop.f32.mrb[0].mxu0
        %v711 = vadd.f32 %v528, %v710
        %v712 = vpop.f32.mrb[0].mxu0
        %v713 = vadd.f32 %v524, %v712
        %v714 = vpop.f32.mrb[0].mxu0
        %v715 = vadd.f32 %v528, %v714
        %716 = vmatprep.mubr.bf16.mxu0 0
        %717 = vmatmul.mubr.bf16.gmra.mrb[0].mxu0 %v481
        %v718 = vpop.f32.mrb[0].mxu0
        %v719 = vadd.f32 %v524, %v718
        %v720 = vpop.f32.mrb[0].mxu0
        %v721 = vadd.f32 %v528, %v720
        %v722 = vpop.f32.mrb[0].mxu0
        %v723 = vadd.f32 %v524, %v722
        %v724 = vpop.f32.mrb[0].mxu0
        %v725 = vadd.f32 %v528, %v724
        %726 = vmatprep.mubr.bf16.mxu0 0
        %727 = vmatmul.mubr.bf16.gmra.mrb[0].mxu0 %v482
        %v728 = vpop.f32.mrb[0].mxu0
        %v729 = vadd.f32 %v524, %v728
        %v730 = vpop.f32.mrb[0].mxu0
        %v731 = vadd.f32 %v528, %v730
        %v732 = vpop.f32.mrb[0].mxu0
        %v733 = vadd.f32 %v524, %v732
        %v734 = vpop.f32.mrb[0].mxu0
        %v735 = vadd.f32 %v528, %v734
        %736 = vmatprep.mubr.bf16.mxu0 0
        %737 = vmatmul.mubr.bf16.gmra.mrb[0].mxu0 %v483
        %v738 = vpop.f32.mrb[0].mxu0
        %v739 = vadd.f32 %v524, %v738
        %v740 = vpop.f32.mrb[0].mxu0
        %v741 = vadd.f32 %v528, %v740
        %v742 = vpop.f32.mrb[0].mxu0
        %v743 = vadd.f32 %v524, %v742
        %v744 = vpop.f32.mrb[0].mxu0
        %v745 = vadd.f32 %v528, %v744
        %746 = vmatprep.mubr.bf16.mxu0 0
        %747 = vmatmul.mubr.bf16.gmra.mrb[0].mxu0 %v484
        %v748 = vpop.f32.mrb[0].mxu0
        %v749 = vadd.f32 %v524, %v748
        %v750 = vpop.f32.mrb[0].mxu0
        %v751 = vadd.f32 %v528, %v750
        %v752 = vpop.f32.mrb[0].mxu0
        %v753 = vadd.f32 %v524, %v752
        %v754 = vpop.f32.mrb[0].mxu0
        %v755 = vadd.f32 %v528, %v754
        %756 = vmatprep.mubr.bf16.mxu0 0
        %757 = vmatmul.mubr.bf16.gmra.mrb[0].mxu0 %v485
        %v758 = vpop.f32.mrb[0].mxu0
        %v759 = vadd.f32 %v524, %v758
        %v760 = vpop.f32.mrb[0].mxu0
        %v761 = vadd.f32 %v528, %v760
        %v762 = vpop.f32.mrb[0].mxu0
        %v763 = vadd.f32 %v524, %v762
        %v764 = vpop.f32.mrb[0].mxu0
        %v765 = vadd.f32 %v528, %v764
        %766 = vmatprep.mubr.bf16.mxu0 0
        %767 = vmatmul.mubr.bf16.gmra.mrb[0].mxu0 %v486
        %v768 = vpop.f32.mrb[0].mxu0
        %v769 = vadd.f32 %v524, %v768
        %v770 = vpop.f32.mrb[0].mxu0
        %v771 = vadd.f32 %v528, %v770
        %v772 = vpop.f32.mrb[0].mxu0
        %v773 = vadd.f32 %v524, %v772
        %v774 = vpop.f32.mrb[0].mxu0
        %v775 = vadd.f32 %v528, %v774
        %776 = vdwg.mxu0
        %777 = vmatprep.subr.bf16.mxu0 0
        %778 = vmatpush1.bf16.msra.mxu0 %v618
        %779 = vmatprep.subr.bf16.mxu0 0
        %780 = vmatpush1.bf16.msra.mxu0 %v621
        %781 = vmatprep.subr.bf16.mxu0 0
        %782 = vmatpush1.bf16.msra.mxu0 %v624
        %783 = vmatprep.subr.bf16.mxu0 0
        %784 = vmatpush1.bf16.msra.mxu0 %v627
        %785 = vmatprep.subr.bf16.mxu0 0
        %786 = vmatpush1.bf16.msra.mxu0 %v630
        %787 = vmatprep.subr.bf16.mxu0 0
        %788 = vmatpush1.bf16.msra.mxu0 %v633
        %789 = vmatprep.subr.bf16.mxu0 0
        %790 = vmatpush1.bf16.msra.mxu0 %v636
        %791 = vmatprep.subr.bf16.mxu0 0
        %792 = vmatpush1.bf16.msra.mxu0 %v639
        %793 = vmatprep.subr.bf16.mxu0 0
        %794 = vmatpush1.bf16.msra.mxu0 0
        %795 = vmatprep.subr.bf16.mxu0 0
        %796 = vmatpush1.bf16.msra.mxu0 0
        %797 = vmatprep.subr.bf16.mxu0 0
        %798 = vmatpush1.bf16.msra.mxu0 0
        %799 = vmatprep.subr.bf16.mxu0 0
        %800 = vmatpush1.bf16.msra.mxu0 0
        %801 = vmatprep.subr.bf16.mxu0 0
        %802 = vmatpush1.bf16.msra.mxu0 0
        %803 = vmatprep.subr.bf16.mxu0 0
        %804 = vmatpush1.bf16.msra.mxu0 0
        %805 = vmatprep.subr.bf16.mxu0 0
        %806 = vmatpush1.bf16.msra.mxu0 0
        %807 = vmatprep.subr.bf16.mxu0 0
        %808 = vmatpush1.bf16.msra.mxu0 0
        %809 = vmatprep.mubr.bf16.mxu0 0
        %810 = vmatmul.mubr.bf16.gmra.mrb[0].mxu0 %v479
        %v811 = vpop.f32.mrb[0].mxu0
        %v812 = vadd.f32 %v532, %v811
        %v813 = vpop.f32.mrb[0].mxu0
        %v814 = vpop.f32.mrb[0].mxu0
        %v815 = vadd.f32 %v532, %v814
        %v816 = vpop.f32.mrb[0].mxu0
        %817 = vmatprep.mubr.bf16.mxu0 0
        %818 = vmatmul.mubr.bf16.gmra.mrb[0].mxu0 %v480
        %v819 = vpop.f32.mrb[0].mxu0
        %v820 = vadd.f32 %v532, %v819
        %v821 = vpop.f32.mrb[0].mxu0
        %v822 = vpop.f32.mrb[0].mxu0
        %v823 = vadd.f32 %v532, %v822
        %v824 = vpop.f32.mrb[0].mxu0
        %825 = vmatprep.mubr.bf16.mxu0 0
        %826 = vmatmul.mubr.bf16.gmra.mrb[0].mxu0 %v481
        %v827 = vpop.f32.mrb[0].mxu0
        %v828 = vadd.f32 %v532, %v827
        %v829 = vpop.f32.mrb[0].mxu0
        %v830 = vpop.f32.mrb[0].mxu0
        %v831 = vadd.f32 %v532, %v830
        %v832 = vpop.f32.mrb[0].mxu0
        %833 = vmatprep.mubr.bf16.mxu0 0
        %834 = vmatmul.mubr.bf16.gmra.mrb[0].mxu0 %v482
        %v835 = vpop.f32.mrb[0].mxu0
        %v836 = vadd.f32 %v532, %v835
        %v837 = vpop.f32.mrb[0].mxu0
        %v838 = vpop.f32.mrb[0].mxu0
        %v839 = vadd.f32 %v532, %v838
        %v840 = vpop.f32.mrb[0].mxu0
        %841 = vmatprep.mubr.bf16.mxu0 0
        %842 = vmatmul.mubr.bf16.gmra.mrb[0].mxu0 %v483
        %v843 = vpop.f32.mrb[0].mxu0
        %v844 = vadd.f32 %v532, %v843
        %v845 = vpop.f32.mrb[0].mxu0
        %v846 = vpop.f32.mrb[0].mxu0
        %v847 = vadd.f32 %v532, %v846
        %v848 = vpop.f32.mrb[0].mxu0
        %849 = vmatprep.mubr.bf16.mxu0 0
        %850 = vmatmul.mubr.bf16.gmra.mrb[0].mxu0 %v484
        %v851 = vpop.f32.mrb[0].mxu0
        %v852 = vadd.f32 %v532, %v851
        %v853 = vpop.f32.mrb[0].mxu0
        %v854 = vpop.f32.mrb[0].mxu0
        %v855 = vadd.f32 %v532, %v854
        %v856 = vpop.f32.mrb[0].mxu0
        %857 = vmatprep.mubr.bf16.mxu0 0
        %858 = vmatmul.mubr.bf16.gmra.mrb[0].mxu0 %v485
        %v859 = vpop.f32.mrb[0].mxu0
        %v860 = vadd.f32 %v532, %v859
        %v861 = vpop.f32.mrb[0].mxu0
        %v862 = vpop.f32.mrb[0].mxu0
        %v863 = vadd.f32 %v532, %v862
        %v864 = vpop.f32.mrb[0].mxu0
        %865 = vmatprep.mubr.bf16.mxu0 0
        %866 = vmatmul.mubr.bf16.gmra.mrb[0].mxu0 %v486
        %v867 = vpop.f32.mrb[0].mxu0
        %v868 = vadd.f32 %v532, %v867
        %v869 = vpop.f32.mrb[0].mxu0
        %v870 = vpop.f32.mrb[0].mxu0
        %v871 = vadd.f32 %v532, %v870
        %v872 = vpop.f32.mrb[0].mxu0
        %873 = vdwg.mxu0
        %v874 = vpack.c.bf16 %v703, %v699
        %v875 = vpack.c.bf16 %v705, %v701
        %v876 = vpack.c.bf16 %v815, %v812
        %v877 = vpack.c.bf16 %v713, %v709
        %v878 = vpack.c.bf16 %v715, %v711
        %v879 = vpack.c.bf16 %v823, %v820
        %v880 = vpack.c.bf16 %v723, %v719
        %v881 = vpack.c.bf16 %v725, %v721
        %v882 = vpack.c.bf16 %v831, %v828
        %v883 = vpack.c.bf16 %v733, %v729
        %v884 = vpack.c.bf16 %v735, %v731
        %v885 = vpack.c.bf16 %v839, %v836
        %v886 = vpack.c.bf16 %v743, %v739
        %v887 = vpack.c.bf16 %v745, %v741
        %v888 = vpack.c.bf16 %v847, %v844
        %v889 = vpack.c.bf16 %v753, %v749
        %v890 = vpack.c.bf16 %v755, %v751
        %v891 = vpack.c.bf16 %v855, %v852
        %v892 = vpack.c.bf16 %v763, %v759
        %v893 = vpack.c.bf16 %v765, %v761
        %v894 = vpack.c.bf16 %v863, %v860
        %v895 = vpack.c.bf16 %v773, %v769
        %v896 = vpack.c.bf16 %v775, %v771
        %v897 = vpack.c.bf16 %v871, %v868
        %906 = vrot.lane.b32.xlu0 %v874, 96
        %v907 = vpop.permute.xlu0 %906
        %908 = vrot.lane.b32.xlu0 %v877, 96
        %v909 = vpop.permute.xlu0 %908
        %910 = vrot.lane.b32.xlu0 %v880, 96
        %v911 = vpop.permute.xlu0 %910
        %912 = vrot.lane.b32.xlu0 %v883, 96
        %v913 = vpop.permute.xlu0 %912
        %914 = vrot.lane.b32.xlu0 %v886, 96
        %v915 = vpop.permute.xlu0 %914
        %916 = vrot.lane.b32.xlu0 %v889, 96
        %v917 = vpop.permute.xlu0 %916
        %918 = vrot.lane.b32.xlu0 %v892, 96
        %v919 = vpop.permute.xlu0 %918
        %920 = vrot.lane.b32.xlu0 %v895, 96
        %v921 = vpop.permute.xlu0 %920
        %922 = vrot.lane.b32.xlu0 %v874, 64
        %v923 = vpop.permute.xlu0 %922
        %924 = vrot.lane.b32.xlu0 %v877, 64
        %v925 = vpop.permute.xlu0 %924
        %926 = vrot.lane.b32.xlu0 %v880, 64
        %v927 = vpop.permute.xlu0 %926
        %928 = vrot.lane.b32.xlu0 %v883, 64
        %v929 = vpop.permute.xlu0 %928
        %930 = vrot.lane.b32.xlu0 %v886, 64
        %v931 = vpop.permute.xlu0 %930
        %932 = vrot.lane.b32.xlu0 %v889, 64
        %v933 = vpop.permute.xlu0 %932
        %934 = vrot.lane.b32.xlu0 %v892, 64
        %v935 = vpop.permute.xlu0 %934
        %936 = vrot.lane.b32.xlu0 %v895, 64
        %v937 = vpop.permute.xlu0 %936
        %938 = vrot.lane.b32.xlu0 %v874, 32
        %v939 = vpop.permute.xlu0 %938
        %940 = vrot.lane.b32.xlu0 %v877, 32
        %v941 = vpop.permute.xlu0 %940
        %942 = vrot.lane.b32.xlu0 %v880, 32
        %v943 = vpop.permute.xlu0 %942
        %944 = vrot.lane.b32.xlu0 %v883, 32
        %v945 = vpop.permute.xlu0 %944
        %946 = vrot.lane.b32.xlu0 %v886, 32
        %v947 = vpop.permute.xlu0 %946
        %948 = vrot.lane.b32.xlu0 %v889, 32
        %v949 = vpop.permute.xlu0 %948
        %950 = vrot.lane.b32.xlu0 %v892, 32
        %v951 = vpop.permute.xlu0 %950
        %952 = vrot.lane.b32.xlu0 %v895, 32
        %v953 = vpop.permute.xlu0 %952
        %962 = vrot.lane.b32.xlu0 %v875, 96
        %v963 = vpop.permute.xlu0 %962
        %964 = vrot.lane.b32.xlu0 %v878, 96
        %v965 = vpop.permute.xlu0 %964
        %966 = vrot.lane.b32.xlu0 %v881, 96
        %v967 = vpop.permute.xlu0 %966
        %968 = vrot.lane.b32.xlu0 %v884, 96
        %v969 = vpop.permute.xlu0 %968
        %970 = vrot.lane.b32.xlu0 %v887, 96
        %v971 = vpop.permute.xlu0 %970
        %972 = vrot.lane.b32.xlu0 %v890, 96
        %v973 = vpop.permute.xlu0 %972
        %974 = vrot.lane.b32.xlu0 %v893, 96
        %v975 = vpop.permute.xlu0 %974
        %976 = vrot.lane.b32.xlu0 %v896, 96
        %v977 = vpop.permute.xlu0 %976
        %978 = vrot.lane.b32.xlu0 %v875, 64
        %v979 = vpop.permute.xlu0 %978
        %980 = vrot.lane.b32.xlu0 %v878, 64
        %v981 = vpop.permute.xlu0 %980
        %982 = vrot.lane.b32.xlu0 %v881, 64
        %v983 = vpop.permute.xlu0 %982
        %984 = vrot.lane.b32.xlu0 %v884, 64
        %v985 = vpop.permute.xlu0 %984
        %986 = vrot.lane.b32.xlu0 %v887, 64
        %v987 = vpop.permute.xlu0 %986
        %988 = vrot.lane.b32.xlu0 %v890, 64
        %v989 = vpop.permute.xlu0 %988
        %990 = vrot.lane.b32.xlu0 %v893, 64
        %v991 = vpop.permute.xlu0 %990
        %992 = vrot.lane.b32.xlu0 %v896, 64
        %v993 = vpop.permute.xlu0 %992
        %994 = vrot.lane.b32.xlu0 %v875, 32
        %v995 = vpop.permute.xlu0 %994
        %996 = vrot.lane.b32.xlu0 %v878, 32
        %v997 = vpop.permute.xlu0 %996
        %998 = vrot.lane.b32.xlu0 %v881, 32
        %v999 = vpop.permute.xlu0 %998
        %1000 = vrot.lane.b32.xlu0 %v884, 32
        %v1001 = vpop.permute.xlu0 %1000
        %1002 = vrot.lane.b32.xlu0 %v887, 32
        %v1003 = vpop.permute.xlu0 %1002
        %1004 = vrot.lane.b32.xlu0 %v890, 32
        %v1005 = vpop.permute.xlu0 %1004
        %1006 = vrot.lane.b32.xlu0 %v893, 32
        %v1007 = vpop.permute.xlu0 %1006
        %1008 = vrot.lane.b32.xlu0 %v896, 32
        %v1009 = vpop.permute.xlu0 %1008
        %1018 = vrot.lane.b32.xlu0 %v876, 96
        %v1019 = vpop.permute.xlu0 %1018
        %1020 = vrot.lane.b32.xlu0 %v879, 96
        %v1021 = vpop.permute.xlu0 %1020
        %1022 = vrot.lane.b32.xlu0 %v882, 96
        %v1023 = vpop.permute.xlu0 %1022
        %1024 = vrot.lane.b32.xlu0 %v885, 96
        %v1025 = vpop.permute.xlu0 %1024
        %1026 = vrot.lane.b32.xlu0 %v888, 96
        %v1027 = vpop.permute.xlu0 %1026
        %1028 = vrot.lane.b32.xlu0 %v891, 96
        %v1029 = vpop.permute.xlu0 %1028
        %1030 = vrot.lane.b32.xlu0 %v894, 96
        %v1031 = vpop.permute.xlu0 %1030
        %1032 = vrot.lane.b32.xlu0 %v897, 96
        %v1033 = vpop.permute.xlu0 %1032
        %1042 = vrot.lane.b32.xlu0 %v876, 64
        %v1043 = vpop.permute.xlu0 %1042
        %1044 = vrot.lane.b32.xlu0 %v879, 64
        %v1045 = vpop.permute.xlu0 %1044
        %1046 = vrot.lane.b32.xlu0 %v882, 64
        %v1047 = vpop.permute.xlu0 %1046
        %1048 = vrot.lane.b32.xlu0 %v885, 64
        %v1049 = vpop.permute.xlu0 %1048
        %1050 = vrot.lane.b32.xlu0 %v888, 64
        %v1051 = vpop.permute.xlu0 %1050
        %1052 = vrot.lane.b32.xlu0 %v891, 64
        %v1053 = vpop.permute.xlu0 %1052
        %1054 = vrot.lane.b32.xlu0 %v894, 64
        %v1055 = vpop.permute.xlu0 %1054
        %1056 = vrot.lane.b32.xlu0 %v897, 64
        %v1057 = vpop.permute.xlu0 %1056
        %1066 = vrot.lane.b32.xlu0 %v876, 32
        %v1067 = vpop.permute.xlu0 %1066
        %1068 = vrot.lane.b32.xlu0 %v879, 32
        %v1069 = vpop.permute.xlu0 %1068
        %1070 = vrot.lane.b32.xlu0 %v882, 32
        %v1071 = vpop.permute.xlu0 %1070
        %1072 = vrot.lane.b32.xlu0 %v885, 32
        %v1073 = vpop.permute.xlu0 %1072
        %1074 = vrot.lane.b32.xlu0 %v888, 32
        %v1075 = vpop.permute.xlu0 %1074
        %1076 = vrot.lane.b32.xlu0 %v891, 32
        %v1077 = vpop.permute.xlu0 %1076
        %1078 = vrot.lane.b32.xlu0 %v894, 32
        %v1079 = vpop.permute.xlu0 %1078
        %1080 = vrot.lane.b32.xlu0 %v897, 32
        %v1081 = vpop.permute.xlu0 %1080
        %vm1090 = vcmask 261120
        %v1092 = vsel %vm1090, %v874, 0
        %v1095 = vsel %vm1090, %v875, 0
        %1097 = vmatprep.subr.bf16.mxu0 0
        %1098 = vmatpush1.bf16.xpose.msra.mxu0 %v1095
        %1099 = vmatprep.subr.bf16.mxu0 0
        %1100 = vmatpush1.bf16.xpose.msra.mxu0 0
        %1101 = vmatprep.subr.bf16.mxu0 0
        %1102 = vmatpush1.bf16.xpose.msra.mxu0 0
        %1103 = vmatprep.subr.bf16.mxu0 0
        %1104 = vmatpush1.bf16.xpose.msra.mxu0 0
        %1105 = vmatprep.subr.bf16.mxu0 0
        %1106 = vmatpush1.bf16.xpose.msra.mxu0 0
        %1107 = vmatprep.subr.bf16.mxu0 0
        %1108 = vmatpush1.bf16.xpose.msra.mxu0 0
        %1109 = vmatprep.subr.bf16.mxu0 0
        %1110 = vmatpush1.bf16.xpose.msra.mxu0 0
        %1111 = vmatprep.subr.bf16.mxu0 0
        %1112 = vmatpush1.bf16.xpose.msra.mxu0 0
        %1113 = vmatprep.subr.bf16.mxu0 0
        %1114 = vmatpush1.bf16.xpose.msra.mxu0 0
        %1115 = vmatprep.subr.bf16.mxu0 0
        %1116 = vmatpush1.bf16.xpose.msra.mxu0 0
        %1117 = vmatprep.subr.bf16.mxu0 0
        %1118 = vmatpush1.bf16.xpose.msra.mxu0 0
        %1119 = vmatprep.subr.bf16.mxu0 0
        %1120 = vmatpush1.bf16.xpose.msra.mxu0 0
        %1121 = vmatprep.subr.bf16.mxu0 0
        %1122 = vmatpush1.bf16.xpose.msra.mxu0 0
        %1123 = vmatprep.subr.bf16.mxu0 0
        %1124 = vmatpush1.bf16.xpose.msra.mxu0 0
        %1125 = vmatprep.subr.bf16.mxu0 0
        %1126 = vmatpush1.bf16.xpose.msra.mxu0 0
        %1127 = vmatprep.subr.bf16.mxu0 0
        %1128 = vmatpush1.bf16.xpose.msra.mxu0 0
        %1129 = vmatprep.mubr.bf16.mxu0 0
        %1130 = vmatmul.mubr.bf16.gmra.mrb[0].mxu0 %v1092
        %v1131 = vpop.f32.mrb[0].mxu0
        %v1132 = vadd.f32 0.0, %v1131
        %v1133 = vpop.f32.mrb[0].mxu0
        %v1134 = vpop.f32.mrb[0].mxu0
        %v1135 = vadd.f32 0.0, %v1134
        %v1136 = vpop.f32.mrb[0].mxu0
        %1137 = vdwg.mxu0
        %v1139 = vsel %vm1090, %v877, 0
        %v1142 = vsel %vm1090, %v878, 0
        %1144 = vmatprep.subr.bf16.mxu0 0
        %1145 = vmatpush1.bf16.xpose.msra.mxu0 %v1142
        %1146 = vmatprep.subr.bf16.mxu0 0
        %1147 = vmatpush1.bf16.xpose.msra.mxu0 0
        %1148 = vmatprep.subr.bf16.mxu0 0
        %1149 = vmatpush1.bf16.xpose.msra.mxu0 0
        %1150 = vmatprep.subr.bf16.mxu0 0
        %1151 = vmatpush1.bf16.xpose.msra.mxu0 0
        %1152 = vmatprep.subr.bf16.mxu0 0
        %1153 = vmatpush1.bf16.xpose.msra.mxu0 0
        %1154 = vmatprep.subr.bf16.mxu0 0
        %1155 = vmatpush1.bf16.xpose.msra.mxu0 0
        %1156 = vmatprep.subr.bf16.mxu0 0
        %1157 = vmatpush1.bf16.xpose.msra.mxu0 0
        %1158 = vmatprep.subr.bf16.mxu0 0
        %1159 = vmatpush1.bf16.xpose.msra.mxu0 0
        %1160 = vmatprep.subr.bf16.mxu0 0
        %1161 = vmatpush1.bf16.xpose.msra.mxu0 0
        %1162 = vmatprep.subr.bf16.mxu0 0
        %1163 = vmatpush1.bf16.xpose.msra.mxu0 0
        %1164 = vmatprep.subr.bf16.mxu0 0
        %1165 = vmatpush1.bf16.xpose.msra.mxu0 0
        %1166 = vmatprep.subr.bf16.mxu0 0
        %1167 = vmatpush1.bf16.xpose.msra.mxu0 0
        %1168 = vmatprep.subr.bf16.mxu0 0
        %1169 = vmatpush1.bf16.xpose.msra.mxu0 0
        %1170 = vmatprep.subr.bf16.mxu0 0
        %1171 = vmatpush1.bf16.xpose.msra.mxu0 0
        %1172 = vmatprep.subr.bf16.mxu0 0
        %1173 = vmatpush1.bf16.xpose.msra.mxu0 0
        %1174 = vmatprep.subr.bf16.mxu0 0
        %1175 = vmatpush1.bf16.xpose.msra.mxu0 0
        %1176 = vmatprep.mubr.bf16.mxu0 0
        %1177 = vmatmul.mubr.bf16.gmra.mrb[0].mxu0 %v1139
        %v1178 = vpop.f32.mrb[0].mxu0
        %v1179 = vadd.f32 0.0, %v1178
        %v1180 = vpop.f32.mrb[0].mxu0
        %v1181 = vpop.f32.mrb[0].mxu0
        %v1182 = vadd.f32 0.0, %v1181
        %v1183 = vpop.f32.mrb[0].mxu0
        %1184 = vdwg.mxu0
        %v1186 = vsel %vm1090, %v880, 0
        %v1189 = vsel %vm1090, %v881, 0
        %1191 = vmatprep.subr.bf16.mxu0 0
        %1192 = vmatpush1.bf16.xpose.msra.mxu0 %v1189
        %1193 = vmatprep.subr.bf16.mxu0 0
        %1194 = vmatpush1.bf16.xpose.msra.mxu0 0
        %1195 = vmatprep.subr.bf16.mxu0 0
        %1196 = vmatpush1.bf16.xpose.msra.mxu0 0
        %1197 = vmatprep.subr.bf16.mxu0 0
        %1198 = vmatpush1.bf16.xpose.msra.mxu0 0
        %1199 = vmatprep.subr.bf16.mxu0 0
        %1200 = vmatpush1.bf16.xpose.msra.mxu0 0
        %1201 = vmatprep.subr.bf16.mxu0 0
        %1202 = vmatpush1.bf16.xpose.msra.mxu0 0
        %1203 = vmatprep.subr.bf16.mxu0 0
        %1204 = vmatpush1.bf16.xpose.msra.mxu0 0
        %1205 = vmatprep.subr.bf16.mxu0 0
        %1206 = vmatpush1.bf16.xpose.msra.mxu0 0
        %1207 = vmatprep.subr.bf16.mxu0 0
        %1208 = vmatpush1.bf16.xpose.msra.mxu0 0
        %1209 = vmatprep.subr.bf16.mxu0 0
        %1210 = vmatpush1.bf16.xpose.msra.mxu0 0
        %1211 = vmatprep.subr.bf16.mxu0 0
        %1212 = vmatpush1.bf16.xpose.msra.mxu0 0
        %1213 = vmatprep.subr.bf16.mxu0 0
        %1214 = vmatpush1.bf16.xpose.msra.mxu0 0
        %1215 = vmatprep.subr.bf16.mxu0 0
        %1216 = vmatpush1.bf16.xpose.msra.mxu0 0
        %1217 = vmatprep.subr.bf16.mxu0 0
        %1218 = vmatpush1.bf16.xpose.msra.mxu0 0
        %1219 = vmatprep.subr.bf16.mxu0 0
        %1220 = vmatpush1.bf16.xpose.msra.mxu0 0
        %1221 = vmatprep.subr.bf16.mxu0 0
        %1222 = vmatpush1.bf16.xpose.msra.mxu0 0
        %1223 = vmatprep.mubr.bf16.mxu0 0
        %1224 = vmatmul.mubr.bf16.gmra.mrb[0].mxu0 %v1186
        %v1225 = vpop.f32.mrb[0].mxu0
        %v1226 = vadd.f32 0.0, %v1225
        %v1227 = vpop.f32.mrb[0].mxu0
        %v1228 = vpop.f32.mrb[0].mxu0
        %v1229 = vadd.f32 0.0, %v1228
        %v1230 = vpop.f32.mrb[0].mxu0
        %1231 = vdwg.mxu0
        %v1233 = vsel %vm1090, %v883, 0
        %v1236 = vsel %vm1090, %v884, 0
        %1238 = vmatprep.subr.bf16.mxu0 0
        %1239 = vmatpush1.bf16.xpose.msra.mxu0 %v1236
        %1240 = vmatprep.subr.bf16.mxu0 0
        %1241 = vmatpush1.bf16.xpose.msra.mxu0 0
        %1242 = vmatprep.subr.bf16.mxu0 0
        %1243 = vmatpush1.bf16.xpose.msra.mxu0 0
        %1244 = vmatprep.subr.bf16.mxu0 0
        %1245 = vmatpush1.bf16.xpose.msra.mxu0 0
        %1246 = vmatprep.subr.bf16.mxu0 0
        %1247 = vmatpush1.bf16.xpose.msra.mxu0 0
        %1248 = vmatprep.subr.bf16.mxu0 0
        %1249 = vmatpush1.bf16.xpose.msra.mxu0 0
        %1250 = vmatprep.subr.bf16.mxu0 0
        %1251 = vmatpush1.bf16.xpose.msra.mxu0 0
        %1252 = vmatprep.subr.bf16.mxu0 0
        %1253 = vmatpush1.bf16.xpose.msra.mxu0 0
        %1254 = vmatprep.subr.bf16.mxu0 0
        %1255 = vmatpush1.bf16.xpose.msra.mxu0 0
        %1256 = vmatprep.subr.bf16.mxu0 0
        %1257 = vmatpush1.bf16.xpose.msra.mxu0 0
        %1258 = vmatprep.subr.bf16.mxu0 0
        %1259 = vmatpush1.bf16.xpose.msra.mxu0 0
        %1260 = vmatprep.subr.bf16.mxu0 0
        %1261 = vmatpush1.bf16.xpose.msra.mxu0 0
        %1262 = vmatprep.subr.bf16.mxu0 0
        %1263 = vmatpush1.bf16.xpose.msra.mxu0 0
        %1264 = vmatprep.subr.bf16.mxu0 0
        %1265 = vmatpush1.bf16.xpose.msra.mxu0 0
        %1266 = vmatprep.subr.bf16.mxu0 0
        %1267 = vmatpush1.bf16.xpose.msra.mxu0 0
        %1268 = vmatprep.subr.bf16.mxu0 0
        %1269 = vmatpush1.bf16.xpose.msra.mxu0 0
        %1270 = vmatprep.mubr.bf16.mxu0 0
        %1271 = vmatmul.mubr.bf16.gmra.mrb[0].mxu0 %v1233
        %v1272 = vpop.f32.mrb[0].mxu0
        %v1273 = vadd.f32 0.0, %v1272
        %v1274 = vpop.f32.mrb[0].mxu0
        %v1275 = vpop.f32.mrb[0].mxu0
        %v1276 = vadd.f32 0.0, %v1275
        %v1277 = vpop.f32.mrb[0].mxu0
        %1278 = vdwg.mxu0
        %v1280 = vsel %vm1090, %v886, 0
        %v1283 = vsel %vm1090, %v887, 0
        %1285 = vmatprep.subr.bf16.mxu0 0
        %1286 = vmatpush1.bf16.xpose.msra.mxu0 %v1283
        %1287 = vmatprep.subr.bf16.mxu0 0
        %1288 = vmatpush1.bf16.xpose.msra.mxu0 0
        %1289 = vmatprep.subr.bf16.mxu0 0
        %1290 = vmatpush1.bf16.xpose.msra.mxu0 0
        %1291 = vmatprep.subr.bf16.mxu0 0
        %1292 = vmatpush1.bf16.xpose.msra.mxu0 0
        %1293 = vmatprep.subr.bf16.mxu0 0
        %1294 = vmatpush1.bf16.xpose.msra.mxu0 0
        %1295 = vmatprep.subr.bf16.mxu0 0
        %1296 = vmatpush1.bf16.xpose.msra.mxu0 0
        %1297 = vmatprep.subr.bf16.mxu0 0
        %1298 = vmatpush1.bf16.xpose.msra.mxu0 0
        %1299 = vmatprep.subr.bf16.mxu0 0
        %1300 = vmatpush1.bf16.xpose.msra.mxu0 0
        %1301 = vmatprep.subr.bf16.mxu0 0
        %1302 = vmatpush1.bf16.xpose.msra.mxu0 0
        %1303 = vmatprep.subr.bf16.mxu0 0
        %1304 = vmatpush1.bf16.xpose.msra.mxu0 0
        %1305 = vmatprep.subr.bf16.mxu0 0
        %1306 = vmatpush1.bf16.xpose.msra.mxu0 0
        %1307 = vmatprep.subr.bf16.mxu0 0
        %1308 = vmatpush1.bf16.xpose.msra.mxu0 0
        %1309 = vmatprep.subr.bf16.mxu0 0
        %1310 = vmatpush1.bf16.xpose.msra.mxu0 0
        %1311 = vmatprep.subr.bf16.mxu0 0
        %1312 = vmatpush1.bf16.xpose.msra.mxu0 0
        %1313 = vmatprep.subr.bf16.mxu0 0
        %1314 = vmatpush1.bf16.xpose.msra.mxu0 0
        %1315 = vmatprep.subr.bf16.mxu0 0
        %1316 = vmatpush1.bf16.xpose.msra.mxu0 0
        %1317 = vmatprep.mubr.bf16.mxu0 0
        %1318 = vmatmul.mubr.bf16.gmra.mrb[0].mxu0 %v1280
        %v1319 = vpop.f32.mrb[0].mxu0
        %v1320 = vadd.f32 0.0, %v1319
        %v1321 = vpop.f32.mrb[0].mxu0
        %v1322 = vpop.f32.mrb[0].mxu0
        %v1323 = vadd.f32 0.0, %v1322
        %v1324 = vpop.f32.mrb[0].mxu0
        %1325 = vdwg.mxu0
        %v1327 = vsel %vm1090, %v889, 0
        %v1330 = vsel %vm1090, %v890, 0
        %1332 = vmatprep.subr.bf16.mxu0 0
        %1333 = vmatpush1.bf16.xpose.msra.mxu0 %v1330
        %1334 = vmatprep.subr.bf16.mxu0 0
        %1335 = vmatpush1.bf16.xpose.msra.mxu0 0
        %1336 = vmatprep.subr.bf16.mxu0 0
        %1337 = vmatpush1.bf16.xpose.msra.mxu0 0
        %1338 = vmatprep.subr.bf16.mxu0 0
        %1339 = vmatpush1.bf16.xpose.msra.mxu0 0
        %1340 = vmatprep.subr.bf16.mxu0 0
        %1341 = vmatpush1.bf16.xpose.msra.mxu0 0
        %1342 = vmatprep.subr.bf16.mxu0 0
        %1343 = vmatpush1.bf16.xpose.msra.mxu0 0
        %1344 = vmatprep.subr.bf16.mxu0 0
        %1345 = vmatpush1.bf16.xpose.msra.mxu0 0
        %1346 = vmatprep.subr.bf16.mxu0 0
        %1347 = vmatpush1.bf16.xpose.msra.mxu0 0
        %1348 = vmatprep.subr.bf16.mxu0 0
        %1349 = vmatpush1.bf16.xpose.msra.mxu0 0
        %1350 = vmatprep.subr.bf16.mxu0 0
        %1351 = vmatpush1.bf16.xpose.msra.mxu0 0
        %1352 = vmatprep.subr.bf16.mxu0 0
        %1353 = vmatpush1.bf16.xpose.msra.mxu0 0
        %1354 = vmatprep.subr.bf16.mxu0 0
        %1355 = vmatpush1.bf16.xpose.msra.mxu0 0
        %1356 = vmatprep.subr.bf16.mxu0 0
        %1357 = vmatpush1.bf16.xpose.msra.mxu0 0
        %1358 = vmatprep.subr.bf16.mxu0 0
        %1359 = vmatpush1.bf16.xpose.msra.mxu0 0
        %1360 = vmatprep.subr.bf16.mxu0 0
        %1361 = vmatpush1.bf16.xpose.msra.mxu0 0
        %1362 = vmatprep.subr.bf16.mxu0 0
        %1363 = vmatpush1.bf16.xpose.msra.mxu0 0
        %1364 = vmatprep.mubr.bf16.mxu0 0
        %1365 = vmatmul.mubr.bf16.gmra.mrb[0].mxu0 %v1327
        %v1366 = vpop.f32.mrb[0].mxu0
        %v1367 = vadd.f32 0.0, %v1366
        %v1368 = vpop.f32.mrb[0].mxu0
        %v1369 = vpop.f32.mrb[0].mxu0
        %v1370 = vadd.f32 0.0, %v1369
        %v1371 = vpop.f32.mrb[0].mxu0
        %1372 = vdwg.mxu0
        %v1374 = vsel %vm1090, %v892, 0
        %v1377 = vsel %vm1090, %v893, 0
        %1379 = vmatprep.subr.bf16.mxu0 0
        %1380 = vmatpush1.bf16.xpose.msra.mxu0 %v1377
        %1381 = vmatprep.subr.bf16.mxu0 0
        %1382 = vmatpush1.bf16.xpose.msra.mxu0 0
        %1383 = vmatprep.subr.bf16.mxu0 0
        %1384 = vmatpush1.bf16.xpose.msra.mxu0 0
        %1385 = vmatprep.subr.bf16.mxu0 0
        %1386 = vmatpush1.bf16.xpose.msra.mxu0 0
        %1387 = vmatprep.subr.bf16.mxu0 0
        %1388 = vmatpush1.bf16.xpose.msra.mxu0 0
        %1389 = vmatprep.subr.bf16.mxu0 0
        %1390 = vmatpush1.bf16.xpose.msra.mxu0 0
        %1391 = vmatprep.subr.bf16.mxu0 0
        %1392 = vmatpush1.bf16.xpose.msra.mxu0 0
        %1393 = vmatprep.subr.bf16.mxu0 0
        %1394 = vmatpush1.bf16.xpose.msra.mxu0 0
        %1395 = vmatprep.subr.bf16.mxu0 0
        %1396 = vmatpush1.bf16.xpose.msra.mxu0 0
        %1397 = vmatprep.subr.bf16.mxu0 0
        %1398 = vmatpush1.bf16.xpose.msra.mxu0 0
        %1399 = vmatprep.subr.bf16.mxu0 0
        %1400 = vmatpush1.bf16.xpose.msra.mxu0 0
        %1401 = vmatprep.subr.bf16.mxu0 0
        %1402 = vmatpush1.bf16.xpose.msra.mxu0 0
        %1403 = vmatprep.subr.bf16.mxu0 0
        %1404 = vmatpush1.bf16.xpose.msra.mxu0 0
        %1405 = vmatprep.subr.bf16.mxu0 0
        %1406 = vmatpush1.bf16.xpose.msra.mxu0 0
        %1407 = vmatprep.subr.bf16.mxu0 0
        %1408 = vmatpush1.bf16.xpose.msra.mxu0 0
        %1409 = vmatprep.subr.bf16.mxu0 0
        %1410 = vmatpush1.bf16.xpose.msra.mxu0 0
        %1411 = vmatprep.mubr.bf16.mxu0 0
        %1412 = vmatmul.mubr.bf16.gmra.mrb[0].mxu0 %v1374
        %v1413 = vpop.f32.mrb[0].mxu0
        %v1414 = vadd.f32 0.0, %v1413
        %v1415 = vpop.f32.mrb[0].mxu0
        %v1416 = vpop.f32.mrb[0].mxu0
        %v1417 = vadd.f32 0.0, %v1416
        %v1418 = vpop.f32.mrb[0].mxu0
        %1419 = vdwg.mxu0
        %v1421 = vsel %vm1090, %v895, 0
        %v1424 = vsel %vm1090, %v896, 0
        %1426 = vmatprep.subr.bf16.mxu0 0
        %1427 = vmatpush1.bf16.xpose.msra.mxu0 %v1424
        %1428 = vmatprep.subr.bf16.mxu0 0
        %1429 = vmatpush1.bf16.xpose.msra.mxu0 0
        %1430 = vmatprep.subr.bf16.mxu0 0
        %1431 = vmatpush1.bf16.xpose.msra.mxu0 0
        %1432 = vmatprep.subr.bf16.mxu0 0
        %1433 = vmatpush1.bf16.xpose.msra.mxu0 0
        %1434 = vmatprep.subr.bf16.mxu0 0
        %1435 = vmatpush1.bf16.xpose.msra.mxu0 0
        %1436 = vmatprep.subr.bf16.mxu0 0
        %1437 = vmatpush1.bf16.xpose.msra.mxu0 0
        %1438 = vmatprep.subr.bf16.mxu0 0
        %1439 = vmatpush1.bf16.xpose.msra.mxu0 0
        %1440 = vmatprep.subr.bf16.mxu0 0
        %1441 = vmatpush1.bf16.xpose.msra.mxu0 0
        %1442 = vmatprep.subr.bf16.mxu0 0
        %1443 = vmatpush1.bf16.xpose.msra.mxu0 0
        %1444 = vmatprep.subr.bf16.mxu0 0
        %1445 = vmatpush1.bf16.xpose.msra.mxu0 0
        %1446 = vmatprep.subr.bf16.mxu0 0
        %1447 = vmatpush1.bf16.xpose.msra.mxu0 0
        %1448 = vmatprep.subr.bf16.mxu0 0
        %1449 = vmatpush1.bf16.xpose.msra.mxu0 0
        %1450 = vmatprep.subr.bf16.mxu0 0
        %1451 = vmatpush1.bf16.xpose.msra.mxu0 0
        %1452 = vmatprep.subr.bf16.mxu0 0
        %1453 = vmatpush1.bf16.xpose.msra.mxu0 0
        %1454 = vmatprep.subr.bf16.mxu0 0
        %1455 = vmatpush1.bf16.xpose.msra.mxu0 0
        %1456 = vmatprep.subr.bf16.mxu0 0
        %1457 = vmatpush1.bf16.xpose.msra.mxu0 0
        %1458 = vmatprep.mubr.bf16.mxu0 0
        %1459 = vmatmul.mubr.bf16.gmra.mrb[0].mxu0 %v1421
        %v1460 = vpop.f32.mrb[0].mxu0
        %v1461 = vadd.f32 0.0, %v1460
        %v1462 = vpop.f32.mrb[0].mxu0
        %v1463 = vpop.f32.mrb[0].mxu0
        %v1464 = vadd.f32 0.0, %v1463
        %v1465 = vpop.f32.mrb[0].mxu0
        %1466 = vdwg.mxu0
        %v1468 = vsel %vm1090, %v907, 0
        %v1471 = vsel %vm1090, %v963, 0
        %1473 = vmatprep.subr.bf16.mxu0 0
        %1474 = vmatpush1.bf16.xpose.msra.mxu0 %v1471
        %1475 = vmatprep.subr.bf16.mxu0 0
        %1476 = vmatpush1.bf16.xpose.msra.mxu0 0
        %1477 = vmatprep.subr.bf16.mxu0 0
        %1478 = vmatpush1.bf16.xpose.msra.mxu0 0
        %1479 = vmatprep.subr.bf16.mxu0 0
        %1480 = vmatpush1.bf16.xpose.msra.mxu0 0
        %1481 = vmatprep.subr.bf16.mxu0 0
        %1482 = vmatpush1.bf16.xpose.msra.mxu0 0
        %1483 = vmatprep.subr.bf16.mxu0 0
        %1484 = vmatpush1.bf16.xpose.msra.mxu0 0
        %1485 = vmatprep.subr.bf16.mxu0 0
        %1486 = vmatpush1.bf16.xpose.msra.mxu0 0
        %1487 = vmatprep.subr.bf16.mxu0 0
        %1488 = vmatpush1.bf16.xpose.msra.mxu0 0
        %1489 = vmatprep.subr.bf16.mxu0 0
        %1490 = vmatpush1.bf16.xpose.msra.mxu0 0
        %1491 = vmatprep.subr.bf16.mxu0 0
        %1492 = vmatpush1.bf16.xpose.msra.mxu0 0
        %1493 = vmatprep.subr.bf16.mxu0 0
        %1494 = vmatpush1.bf16.xpose.msra.mxu0 0
        %1495 = vmatprep.subr.bf16.mxu0 0
        %1496 = vmatpush1.bf16.xpose.msra.mxu0 0
        %1497 = vmatprep.subr.bf16.mxu0 0
        %1498 = vmatpush1.bf16.xpose.msra.mxu0 0
        %1499 = vmatprep.subr.bf16.mxu0 0
        %1500 = vmatpush1.bf16.xpose.msra.mxu0 0
        %1501 = vmatprep.subr.bf16.mxu0 0
        %1502 = vmatpush1.bf16.xpose.msra.mxu0 0
        %1503 = vmatprep.subr.bf16.mxu0 0
        %1504 = vmatpush1.bf16.xpose.msra.mxu0 0
        %1505 = vmatprep.mubr.bf16.mxu0 0
        %1506 = vmatmul.mubr.bf16.gmra.mrb[0].mxu0 %v1468
        %v1507 = vpop.f32.mrb[0].mxu0
        %v1508 = vadd.f32 0.0, %v1507
        %v1509 = vpop.f32.mrb[0].mxu0
        %v1510 = vpop.f32.mrb[0].mxu0
        %v1511 = vadd.f32 0.0, %v1510
        %v1512 = vpop.f32.mrb[0].mxu0
        %1513 = vdwg.mxu0
        %v1515 = vsel %vm1090, %v909, 0
        %v1518 = vsel %vm1090, %v965, 0
        %1520 = vmatprep.subr.bf16.mxu0 0
        %1521 = vmatpush1.bf16.xpose.msra.mxu0 %v1518
        %1522 = vmatprep.subr.bf16.mxu0 0
        %1523 = vmatpush1.bf16.xpose.msra.mxu0 0
        %1524 = vmatprep.subr.bf16.mxu0 0
        %1525 = vmatpush1.bf16.xpose.msra.mxu0 0
        %1526 = vmatprep.subr.bf16.mxu0 0
        %1527 = vmatpush1.bf16.xpose.msra.mxu0 0
        %1528 = vmatprep.subr.bf16.mxu0 0
        %1529 = vmatpush1.bf16.xpose.msra.mxu0 0
        %1530 = vmatprep.subr.bf16.mxu0 0
        %1531 = vmatpush1.bf16.xpose.msra.mxu0 0
        %1532 = vmatprep.subr.bf16.mxu0 0
        %1533 = vmatpush1.bf16.xpose.msra.mxu0 0
        %1534 = vmatprep.subr.bf16.mxu0 0
        %1535 = vmatpush1.bf16.xpose.msra.mxu0 0
        %1536 = vmatprep.subr.bf16.mxu0 0
        %1537 = vmatpush1.bf16.xpose.msra.mxu0 0
        %1538 = vmatprep.subr.bf16.mxu0 0
        %1539 = vmatpush1.bf16.xpose.msra.mxu0 0
        %1540 = vmatprep.subr.bf16.mxu0 0
        %1541 = vmatpush1.bf16.xpose.msra.mxu0 0
        %1542 = vmatprep.subr.bf16.mxu0 0
        %1543 = vmatpush1.bf16.xpose.msra.mxu0 0
        %1544 = vmatprep.subr.bf16.mxu0 0
        %1545 = vmatpush1.bf16.xpose.msra.mxu0 0
        %1546 = vmatprep.subr.bf16.mxu0 0
        %1547 = vmatpush1.bf16.xpose.msra.mxu0 0
        %1548 = vmatprep.subr.bf16.mxu0 0
        %1549 = vmatpush1.bf16.xpose.msra.mxu0 0
        %1550 = vmatprep.subr.bf16.mxu0 0
        %1551 = vmatpush1.bf16.xpose.msra.mxu0 0
        %1552 = vmatprep.mubr.bf16.mxu0 0
        %1553 = vmatmul.mubr.bf16.gmra.mrb[0].mxu0 %v1515
        %v1554 = vpop.f32.mrb[0].mxu0
        %v1555 = vadd.f32 0.0, %v1554
        %v1556 = vpop.f32.mrb[0].mxu0
        %v1557 = vpop.f32.mrb[0].mxu0
        %v1558 = vadd.f32 0.0, %v1557
        %v1559 = vpop.f32.mrb[0].mxu0
        %1560 = vdwg.mxu0
        %v1562 = vsel %vm1090, %v911, 0
        %v1565 = vsel %vm1090, %v967, 0
        %1567 = vmatprep.subr.bf16.mxu0 0
        %1568 = vmatpush1.bf16.xpose.msra.mxu0 %v1565
        %1569 = vmatprep.subr.bf16.mxu0 0
        %1570 = vmatpush1.bf16.xpose.msra.mxu0 0
        %1571 = vmatprep.subr.bf16.mxu0 0
        %1572 = vmatpush1.bf16.xpose.msra.mxu0 0
        %1573 = vmatprep.subr.bf16.mxu0 0
        %1574 = vmatpush1.bf16.xpose.msra.mxu0 0
        %1575 = vmatprep.subr.bf16.mxu0 0
        %1576 = vmatpush1.bf16.xpose.msra.mxu0 0
        %1577 = vmatprep.subr.bf16.mxu0 0
        %1578 = vmatpush1.bf16.xpose.msra.mxu0 0
        %1579 = vmatprep.subr.bf16.mxu0 0
        %1580 = vmatpush1.bf16.xpose.msra.mxu0 0
        %1581 = vmatprep.subr.bf16.mxu0 0
        %1582 = vmatpush1.bf16.xpose.msra.mxu0 0
        %1583 = vmatprep.subr.bf16.mxu0 0
        %1584 = vmatpush1.bf16.xpose.msra.mxu0 0
        %1585 = vmatprep.subr.bf16.mxu0 0
        %1586 = vmatpush1.bf16.xpose.msra.mxu0 0
        %1587 = vmatprep.subr.bf16.mxu0 0
        %1588 = vmatpush1.bf16.xpose.msra.mxu0 0
        %1589 = vmatprep.subr.bf16.mxu0 0
        %1590 = vmatpush1.bf16.xpose.msra.mxu0 0
        %1591 = vmatprep.subr.bf16.mxu0 0
        %1592 = vmatpush1.bf16.xpose.msra.mxu0 0
        %1593 = vmatprep.subr.bf16.mxu0 0
        %1594 = vmatpush1.bf16.xpose.msra.mxu0 0
        %1595 = vmatprep.subr.bf16.mxu0 0
        %1596 = vmatpush1.bf16.xpose.msra.mxu0 0
        %1597 = vmatprep.subr.bf16.mxu0 0
        %1598 = vmatpush1.bf16.xpose.msra.mxu0 0
        %1599 = vmatprep.mubr.bf16.mxu0 0
        %1600 = vmatmul.mubr.bf16.gmra.mrb[0].mxu0 %v1562
        %v1601 = vpop.f32.mrb[0].mxu0
        %v1602 = vadd.f32 0.0, %v1601
        %v1603 = vpop.f32.mrb[0].mxu0
        %v1604 = vpop.f32.mrb[0].mxu0
        %v1605 = vadd.f32 0.0, %v1604
        %v1606 = vpop.f32.mrb[0].mxu0
        %1607 = vdwg.mxu0
        %v1609 = vsel %vm1090, %v913, 0
        %v1612 = vsel %vm1090, %v969, 0
        %1614 = vmatprep.subr.bf16.mxu0 0
        %1615 = vmatpush1.bf16.xpose.msra.mxu0 %v1612
        %1616 = vmatprep.subr.bf16.mxu0 0
        %1617 = vmatpush1.bf16.xpose.msra.mxu0 0
        %1618 = vmatprep.subr.bf16.mxu0 0
        %1619 = vmatpush1.bf16.xpose.msra.mxu0 0
        %1620 = vmatprep.subr.bf16.mxu0 0
        %1621 = vmatpush1.bf16.xpose.msra.mxu0 0
        %1622 = vmatprep.subr.bf16.mxu0 0
        %1623 = vmatpush1.bf16.xpose.msra.mxu0 0
        %1624 = vmatprep.subr.bf16.mxu0 0
        %1625 = vmatpush1.bf16.xpose.msra.mxu0 0
        %1626 = vmatprep.subr.bf16.mxu0 0
        %1627 = vmatpush1.bf16.xpose.msra.mxu0 0
        %1628 = vmatprep.subr.bf16.mxu0 0
        %1629 = vmatpush1.bf16.xpose.msra.mxu0 0
        %1630 = vmatprep.subr.bf16.mxu0 0
        %1631 = vmatpush1.bf16.xpose.msra.mxu0 0
        %1632 = vmatprep.subr.bf16.mxu0 0
        %1633 = vmatpush1.bf16.xpose.msra.mxu0 0
        %1634 = vmatprep.subr.bf16.mxu0 0
        %1635 = vmatpush1.bf16.xpose.msra.mxu0 0
        %1636 = vmatprep.subr.bf16.mxu0 0
        %1637 = vmatpush1.bf16.xpose.msra.mxu0 0
        %1638 = vmatprep.subr.bf16.mxu0 0
        %1639 = vmatpush1.bf16.xpose.msra.mxu0 0
        %1640 = vmatprep.subr.bf16.mxu0 0
        %1641 = vmatpush1.bf16.xpose.msra.mxu0 0
        %1642 = vmatprep.subr.bf16.mxu0 0
        %1643 = vmatpush1.bf16.xpose.msra.mxu0 0
        %1644 = vmatprep.subr.bf16.mxu0 0
        %1645 = vmatpush1.bf16.xpose.msra.mxu0 0
        %1646 = vmatprep.mubr.bf16.mxu0 0
        %1647 = vmatmul.mubr.bf16.gmra.mrb[0].mxu0 %v1609
        %v1648 = vpop.f32.mrb[0].mxu0
        %v1649 = vadd.f32 0.0, %v1648
        %v1650 = vpop.f32.mrb[0].mxu0
        %v1651 = vpop.f32.mrb[0].mxu0
        %v1652 = vadd.f32 0.0, %v1651
        %v1653 = vpop.f32.mrb[0].mxu0
        %1654 = vdwg.mxu0
        %v1656 = vsel %vm1090, %v915, 0
        %v1659 = vsel %vm1090, %v971, 0
        %1661 = vmatprep.subr.bf16.mxu0 0
        %1662 = vmatpush1.bf16.xpose.msra.mxu0 %v1659
        %1663 = vmatprep.subr.bf16.mxu0 0
        %1664 = vmatpush1.bf16.xpose.msra.mxu0 0
        %1665 = vmatprep.subr.bf16.mxu0 0
        %1666 = vmatpush1.bf16.xpose.msra.mxu0 0
        %1667 = vmatprep.subr.bf16.mxu0 0
        %1668 = vmatpush1.bf16.xpose.msra.mxu0 0
        %1669 = vmatprep.subr.bf16.mxu0 0
        %1670 = vmatpush1.bf16.xpose.msra.mxu0 0
        %1671 = vmatprep.subr.bf16.mxu0 0
        %1672 = vmatpush1.bf16.xpose.msra.mxu0 0
        %1673 = vmatprep.subr.bf16.mxu0 0
        %1674 = vmatpush1.bf16.xpose.msra.mxu0 0
        %1675 = vmatprep.subr.bf16.mxu0 0
        %1676 = vmatpush1.bf16.xpose.msra.mxu0 0
        %1677 = vmatprep.subr.bf16.mxu0 0
        %1678 = vmatpush1.bf16.xpose.msra.mxu0 0
        %1679 = vmatprep.subr.bf16.mxu0 0
        %1680 = vmatpush1.bf16.xpose.msra.mxu0 0
        %1681 = vmatprep.subr.bf16.mxu0 0
        %1682 = vmatpush1.bf16.xpose.msra.mxu0 0
        %1683 = vmatprep.subr.bf16.mxu0 0
        %1684 = vmatpush1.bf16.xpose.msra.mxu0 0
        %1685 = vmatprep.subr.bf16.mxu0 0
        %1686 = vmatpush1.bf16.xpose.msra.mxu0 0
        %1687 = vmatprep.subr.bf16.mxu0 0
        %1688 = vmatpush1.bf16.xpose.msra.mxu0 0
        %1689 = vmatprep.subr.bf16.mxu0 0
        %1690 = vmatpush1.bf16.xpose.msra.mxu0 0
        %1691 = vmatprep.subr.bf16.mxu0 0
        %1692 = vmatpush1.bf16.xpose.msra.mxu0 0
        %1693 = vmatprep.mubr.bf16.mxu0 0
        %1694 = vmatmul.mubr.bf16.gmra.mrb[0].mxu0 %v1656
        %v1695 = vpop.f32.mrb[0].mxu0
        %v1696 = vadd.f32 0.0, %v1695
        %v1697 = vpop.f32.mrb[0].mxu0
        %v1698 = vpop.f32.mrb[0].mxu0
        %v1699 = vadd.f32 0.0, %v1698
        %v1700 = vpop.f32.mrb[0].mxu0
        %1701 = vdwg.mxu0
        %v1703 = vsel %vm1090, %v917, 0
        %v1706 = vsel %vm1090, %v973, 0
        %1708 = vmatprep.subr.bf16.mxu0 0
        %1709 = vmatpush1.bf16.xpose.msra.mxu0 %v1706
        %1710 = vmatprep.subr.bf16.mxu0 0
        %1711 = vmatpush1.bf16.xpose.msra.mxu0 0
        %1712 = vmatprep.subr.bf16.mxu0 0
        %1713 = vmatpush1.bf16.xpose.msra.mxu0 0
        %1714 = vmatprep.subr.bf16.mxu0 0
        %1715 = vmatpush1.bf16.xpose.msra.mxu0 0
        %1716 = vmatprep.subr.bf16.mxu0 0
        %1717 = vmatpush1.bf16.xpose.msra.mxu0 0
        %1718 = vmatprep.subr.bf16.mxu0 0
        %1719 = vmatpush1.bf16.xpose.msra.mxu0 0
        %1720 = vmatprep.subr.bf16.mxu0 0
        %1721 = vmatpush1.bf16.xpose.msra.mxu0 0
        %1722 = vmatprep.subr.bf16.mxu0 0
        %1723 = vmatpush1.bf16.xpose.msra.mxu0 0
        %1724 = vmatprep.subr.bf16.mxu0 0
        %1725 = vmatpush1.bf16.xpose.msra.mxu0 0
        %1726 = vmatprep.subr.bf16.mxu0 0
        %1727 = vmatpush1.bf16.xpose.msra.mxu0 0
        %1728 = vmatprep.subr.bf16.mxu0 0
        %1729 = vmatpush1.bf16.xpose.msra.mxu0 0
        %1730 = vmatprep.subr.bf16.mxu0 0
        %1731 = vmatpush1.bf16.xpose.msra.mxu0 0
        %1732 = vmatprep.subr.bf16.mxu0 0
        %1733 = vmatpush1.bf16.xpose.msra.mxu0 0
        %1734 = vmatprep.subr.bf16.mxu0 0
        %1735 = vmatpush1.bf16.xpose.msra.mxu0 0
        %1736 = vmatprep.subr.bf16.mxu0 0
        %1737 = vmatpush1.bf16.xpose.msra.mxu0 0
        %1738 = vmatprep.subr.bf16.mxu0 0
        %1739 = vmatpush1.bf16.xpose.msra.mxu0 0
        %1740 = vmatprep.mubr.bf16.mxu0 0
        %1741 = vmatmul.mubr.bf16.gmra.mrb[0].mxu0 %v1703
        %v1742 = vpop.f32.mrb[0].mxu0
        %v1743 = vadd.f32 0.0, %v1742
        %v1744 = vpop.f32.mrb[0].mxu0
        %v1745 = vpop.f32.mrb[0].mxu0
        %v1746 = vadd.f32 0.0, %v1745
        %v1747 = vpop.f32.mrb[0].mxu0
        %1748 = vdwg.mxu0
        %v1750 = vsel %vm1090, %v919, 0
        %v1753 = vsel %vm1090, %v975, 0
        %1755 = vmatprep.subr.bf16.mxu0 0
        %1756 = vmatpush1.bf16.xpose.msra.mxu0 %v1753
        %1757 = vmatprep.subr.bf16.mxu0 0
        %1758 = vmatpush1.bf16.xpose.msra.mxu0 0
        %1759 = vmatprep.subr.bf16.mxu0 0
        %1760 = vmatpush1.bf16.xpose.msra.mxu0 0
        %1761 = vmatprep.subr.bf16.mxu0 0
        %1762 = vmatpush1.bf16.xpose.msra.mxu0 0
        %1763 = vmatprep.subr.bf16.mxu0 0
        %1764 = vmatpush1.bf16.xpose.msra.mxu0 0
        %1765 = vmatprep.subr.bf16.mxu0 0
        %1766 = vmatpush1.bf16.xpose.msra.mxu0 0
        %1767 = vmatprep.subr.bf16.mxu0 0
        %1768 = vmatpush1.bf16.xpose.msra.mxu0 0
        %1769 = vmatprep.subr.bf16.mxu0 0
        %1770 = vmatpush1.bf16.xpose.msra.mxu0 0
        %1771 = vmatprep.subr.bf16.mxu0 0
        %1772 = vmatpush1.bf16.xpose.msra.mxu0 0
        %1773 = vmatprep.subr.bf16.mxu0 0
        %1774 = vmatpush1.bf16.xpose.msra.mxu0 0
        %1775 = vmatprep.subr.bf16.mxu0 0
        %1776 = vmatpush1.bf16.xpose.msra.mxu0 0
        %1777 = vmatprep.subr.bf16.mxu0 0
        %1778 = vmatpush1.bf16.xpose.msra.mxu0 0
        %1779 = vmatprep.subr.bf16.mxu0 0
        %1780 = vmatpush1.bf16.xpose.msra.mxu0 0
        %1781 = vmatprep.subr.bf16.mxu0 0
        %1782 = vmatpush1.bf16.xpose.msra.mxu0 0
        %1783 = vmatprep.subr.bf16.mxu0 0
        %1784 = vmatpush1.bf16.xpose.msra.mxu0 0
        %1785 = vmatprep.subr.bf16.mxu0 0
        %1786 = vmatpush1.bf16.xpose.msra.mxu0 0
        %1787 = vmatprep.mubr.bf16.mxu0 0
        %1788 = vmatmul.mubr.bf16.gmra.mrb[0].mxu0 %v1750
        %v1789 = vpop.f32.mrb[0].mxu0
        %v1790 = vadd.f32 0.0, %v1789
        %v1791 = vpop.f32.mrb[0].mxu0
        %v1792 = vpop.f32.mrb[0].mxu0
        %v1793 = vadd.f32 0.0, %v1792
        %v1794 = vpop.f32.mrb[0].mxu0
        %1795 = vdwg.mxu0
        %v1797 = vsel %vm1090, %v921, 0
        %v1800 = vsel %vm1090, %v977, 0
        %1802 = vmatprep.subr.bf16.mxu0 0
        %1803 = vmatpush1.bf16.xpose.msra.mxu0 %v1800
        %1804 = vmatprep.subr.bf16.mxu0 0
        %1805 = vmatpush1.bf16.xpose.msra.mxu0 0
        %1806 = vmatprep.subr.bf16.mxu0 0
        %1807 = vmatpush1.bf16.xpose.msra.mxu0 0
        %1808 = vmatprep.subr.bf16.mxu0 0
        %1809 = vmatpush1.bf16.xpose.msra.mxu0 0
        %1810 = vmatprep.subr.bf16.mxu0 0
        %1811 = vmatpush1.bf16.xpose.msra.mxu0 0
        %1812 = vmatprep.subr.bf16.mxu0 0
        %1813 = vmatpush1.bf16.xpose.msra.mxu0 0
        %1814 = vmatprep.subr.bf16.mxu0 0
        %1815 = vmatpush1.bf16.xpose.msra.mxu0 0
        %1816 = vmatprep.subr.bf16.mxu0 0
        %1817 = vmatpush1.bf16.xpose.msra.mxu0 0
        %1818 = vmatprep.subr.bf16.mxu0 0
        %1819 = vmatpush1.bf16.xpose.msra.mxu0 0
        %1820 = vmatprep.subr.bf16.mxu0 0
        %1821 = vmatpush1.bf16.xpose.msra.mxu0 0
        %1822 = vmatprep.subr.bf16.mxu0 0
        %1823 = vmatpush1.bf16.xpose.msra.mxu0 0
        %1824 = vmatprep.subr.bf16.mxu0 0
        %1825 = vmatpush1.bf16.xpose.msra.mxu0 0
        %1826 = vmatprep.subr.bf16.mxu0 0
        %1827 = vmatpush1.bf16.xpose.msra.mxu0 0
        %1828 = vmatprep.subr.bf16.mxu0 0
        %1829 = vmatpush1.bf16.xpose.msra.mxu0 0
        %1830 = vmatprep.subr.bf16.mxu0 0
        %1831 = vmatpush1.bf16.xpose.msra.mxu0 0
        %1832 = vmatprep.subr.bf16.mxu0 0
        %1833 = vmatpush1.bf16.xpose.msra.mxu0 0
        %1834 = vmatprep.mubr.bf16.mxu0 0
        %1835 = vmatmul.mubr.bf16.gmra.mrb[0].mxu0 %v1797
        %v1836 = vpop.f32.mrb[0].mxu0
        %v1837 = vadd.f32 0.0, %v1836
        %v1838 = vpop.f32.mrb[0].mxu0
        %v1839 = vpop.f32.mrb[0].mxu0
        %v1840 = vadd.f32 0.0, %v1839
        %v1841 = vpop.f32.mrb[0].mxu0
        %1842 = vdwg.mxu0
        %v1844 = vsel %vm1090, %v923, 0
        %v1847 = vsel %vm1090, %v979, 0
        %1849 = vmatprep.subr.bf16.mxu0 0
        %1850 = vmatpush1.bf16.xpose.msra.mxu0 %v1847
        %1851 = vmatprep.subr.bf16.mxu0 0
        %1852 = vmatpush1.bf16.xpose.msra.mxu0 0
        %1853 = vmatprep.subr.bf16.mxu0 0
        %1854 = vmatpush1.bf16.xpose.msra.mxu0 0
        %1855 = vmatprep.subr.bf16.mxu0 0
        %1856 = vmatpush1.bf16.xpose.msra.mxu0 0
        %1857 = vmatprep.subr.bf16.mxu0 0
        %1858 = vmatpush1.bf16.xpose.msra.mxu0 0
        %1859 = vmatprep.subr.bf16.mxu0 0
        %1860 = vmatpush1.bf16.xpose.msra.mxu0 0
        %1861 = vmatprep.subr.bf16.mxu0 0
        %1862 = vmatpush1.bf16.xpose.msra.mxu0 0
        %1863 = vmatprep.subr.bf16.mxu0 0
        %1864 = vmatpush1.bf16.xpose.msra.mxu0 0
        %1865 = vmatprep.subr.bf16.mxu0 0
        %1866 = vmatpush1.bf16.xpose.msra.mxu0 0
        %1867 = vmatprep.subr.bf16.mxu0 0
        %1868 = vmatpush1.bf16.xpose.msra.mxu0 0
        %1869 = vmatprep.subr.bf16.mxu0 0
        %1870 = vmatpush1.bf16.xpose.msra.mxu0 0
        %1871 = vmatprep.subr.bf16.mxu0 0
        %1872 = vmatpush1.bf16.xpose.msra.mxu0 0
        %1873 = vmatprep.subr.bf16.mxu0 0
        %1874 = vmatpush1.bf16.xpose.msra.mxu0 0
        %1875 = vmatprep.subr.bf16.mxu0 0
        %1876 = vmatpush1.bf16.xpose.msra.mxu0 0
        %1877 = vmatprep.subr.bf16.mxu0 0
        %1878 = vmatpush1.bf16.xpose.msra.mxu0 0
        %1879 = vmatprep.subr.bf16.mxu0 0
        %1880 = vmatpush1.bf16.xpose.msra.mxu0 0
        %1881 = vmatprep.mubr.bf16.mxu0 0
        %1882 = vmatmul.mubr.bf16.gmra.mrb[0].mxu0 %v1844
        %v1883 = vpop.f32.mrb[0].mxu0
        %v1884 = vadd.f32 0.0, %v1883
        %v1885 = vpop.f32.mrb[0].mxu0
        %v1886 = vpop.f32.mrb[0].mxu0
        %v1887 = vadd.f32 0.0, %v1886
        %v1888 = vpop.f32.mrb[0].mxu0
        %1889 = vdwg.mxu0
        %v1891 = vsel %vm1090, %v925, 0
        %v1894 = vsel %vm1090, %v981, 0
        %1896 = vmatprep.subr.bf16.mxu0 0
        %1897 = vmatpush1.bf16.xpose.msra.mxu0 %v1894
        %1898 = vmatprep.subr.bf16.mxu0 0
        %1899 = vmatpush1.bf16.xpose.msra.mxu0 0
        %1900 = vmatprep.subr.bf16.mxu0 0
        %1901 = vmatpush1.bf16.xpose.msra.mxu0 0
        %1902 = vmatprep.subr.bf16.mxu0 0
        %1903 = vmatpush1.bf16.xpose.msra.mxu0 0
        %1904 = vmatprep.subr.bf16.mxu0 0
        %1905 = vmatpush1.bf16.xpose.msra.mxu0 0
        %1906 = vmatprep.subr.bf16.mxu0 0
        %1907 = vmatpush1.bf16.xpose.msra.mxu0 0
        %1908 = vmatprep.subr.bf16.mxu0 0
        %1909 = vmatpush1.bf16.xpose.msra.mxu0 0
        %1910 = vmatprep.subr.bf16.mxu0 0
        %1911 = vmatpush1.bf16.xpose.msra.mxu0 0
        %1912 = vmatprep.subr.bf16.mxu0 0
        %1913 = vmatpush1.bf16.xpose.msra.mxu0 0
        %1914 = vmatprep.subr.bf16.mxu0 0
        %1915 = vmatpush1.bf16.xpose.msra.mxu0 0
        %1916 = vmatprep.subr.bf16.mxu0 0
        %1917 = vmatpush1.bf16.xpose.msra.mxu0 0
        %1918 = vmatprep.subr.bf16.mxu0 0
        %1919 = vmatpush1.bf16.xpose.msra.mxu0 0
        %1920 = vmatprep.subr.bf16.mxu0 0
        %1921 = vmatpush1.bf16.xpose.msra.mxu0 0
        %1922 = vmatprep.subr.bf16.mxu0 0
        %1923 = vmatpush1.bf16.xpose.msra.mxu0 0
        %1924 = vmatprep.subr.bf16.mxu0 0
        %1925 = vmatpush1.bf16.xpose.msra.mxu0 0
        %1926 = vmatprep.subr.bf16.mxu0 0
        %1927 = vmatpush1.bf16.xpose.msra.mxu0 0
        %1928 = vmatprep.mubr.bf16.mxu0 0
        %1929 = vmatmul.mubr.bf16.gmra.mrb[0].mxu0 %v1891
        %v1930 = vpop.f32.mrb[0].mxu0
        %v1931 = vadd.f32 0.0, %v1930
        %v1932 = vpop.f32.mrb[0].mxu0
        %v1933 = vpop.f32.mrb[0].mxu0
        %v1934 = vadd.f32 0.0, %v1933
        %v1935 = vpop.f32.mrb[0].mxu0
        %1936 = vdwg.mxu0
        %v1938 = vsel %vm1090, %v927, 0
        %v1941 = vsel %vm1090, %v983, 0
        %1943 = vmatprep.subr.bf16.mxu0 0
        %1944 = vmatpush1.bf16.xpose.msra.mxu0 %v1941
        %1945 = vmatprep.subr.bf16.mxu0 0
        %1946 = vmatpush1.bf16.xpose.msra.mxu0 0
        %1947 = vmatprep.subr.bf16.mxu0 0
        %1948 = vmatpush1.bf16.xpose.msra.mxu0 0
        %1949 = vmatprep.subr.bf16.mxu0 0
        %1950 = vmatpush1.bf16.xpose.msra.mxu0 0
        %1951 = vmatprep.subr.bf16.mxu0 0
        %1952 = vmatpush1.bf16.xpose.msra.mxu0 0
        %1953 = vmatprep.subr.bf16.mxu0 0
        %1954 = vmatpush1.bf16.xpose.msra.mxu0 0
        %1955 = vmatprep.subr.bf16.mxu0 0
        %1956 = vmatpush1.bf16.xpose.msra.mxu0 0
        %1957 = vmatprep.subr.bf16.mxu0 0
        %1958 = vmatpush1.bf16.xpose.msra.mxu0 0
        %1959 = vmatprep.subr.bf16.mxu0 0
        %1960 = vmatpush1.bf16.xpose.msra.mxu0 0
        %1961 = vmatprep.subr.bf16.mxu0 0
        %1962 = vmatpush1.bf16.xpose.msra.mxu0 0
        %1963 = vmatprep.subr.bf16.mxu0 0
        %1964 = vmatpush1.bf16.xpose.msra.mxu0 0
        %1965 = vmatprep.subr.bf16.mxu0 0
        %1966 = vmatpush1.bf16.xpose.msra.mxu0 0
        %1967 = vmatprep.subr.bf16.mxu0 0
        %1968 = vmatpush1.bf16.xpose.msra.mxu0 0
        %1969 = vmatprep.subr.bf16.mxu0 0
        %1970 = vmatpush1.bf16.xpose.msra.mxu0 0
        %1971 = vmatprep.subr.bf16.mxu0 0
        %1972 = vmatpush1.bf16.xpose.msra.mxu0 0
        %1973 = vmatprep.subr.bf16.mxu0 0
        %1974 = vmatpush1.bf16.xpose.msra.mxu0 0
        %1975 = vmatprep.mubr.bf16.mxu0 0
        %1976 = vmatmul.mubr.bf16.gmra.mrb[0].mxu0 %v1938
        %v1977 = vpop.f32.mrb[0].mxu0
        %v1978 = vadd.f32 0.0, %v1977
        %v1979 = vpop.f32.mrb[0].mxu0
        %v1980 = vpop.f32.mrb[0].mxu0
        %v1981 = vadd.f32 0.0, %v1980
        %v1982 = vpop.f32.mrb[0].mxu0
        %1983 = vdwg.mxu0
        %v1985 = vsel %vm1090, %v929, 0
        %v1988 = vsel %vm1090, %v985, 0
        %1990 = vmatprep.subr.bf16.mxu0 0
        %1991 = vmatpush1.bf16.xpose.msra.mxu0 %v1988
        %1992 = vmatprep.subr.bf16.mxu0 0
        %1993 = vmatpush1.bf16.xpose.msra.mxu0 0
        %1994 = vmatprep.subr.bf16.mxu0 0
        %1995 = vmatpush1.bf16.xpose.msra.mxu0 0
        %1996 = vmatprep.subr.bf16.mxu0 0
        %1997 = vmatpush1.bf16.xpose.msra.mxu0 0
        %1998 = vmatprep.subr.bf16.mxu0 0
        %1999 = vmatpush1.bf16.xpose.msra.mxu0 0
        %2000 = vmatprep.subr.bf16.mxu0 0
        %2001 = vmatpush1.bf16.xpose.msra.mxu0 0
        %2002 = vmatprep.subr.bf16.mxu0 0
        %2003 = vmatpush1.bf16.xpose.msra.mxu0 0
        %2004 = vmatprep.subr.bf16.mxu0 0
        %2005 = vmatpush1.bf16.xpose.msra.mxu0 0
        %2006 = vmatprep.subr.bf16.mxu0 0
        %2007 = vmatpush1.bf16.xpose.msra.mxu0 0
        %2008 = vmatprep.subr.bf16.mxu0 0
        %2009 = vmatpush1.bf16.xpose.msra.mxu0 0
        %2010 = vmatprep.subr.bf16.mxu0 0
        %2011 = vmatpush1.bf16.xpose.msra.mxu0 0
        %2012 = vmatprep.subr.bf16.mxu0 0
        %2013 = vmatpush1.bf16.xpose.msra.mxu0 0
        %2014 = vmatprep.subr.bf16.mxu0 0
        %2015 = vmatpush1.bf16.xpose.msra.mxu0 0
        %2016 = vmatprep.subr.bf16.mxu0 0
        %2017 = vmatpush1.bf16.xpose.msra.mxu0 0
        %2018 = vmatprep.subr.bf16.mxu0 0
        %2019 = vmatpush1.bf16.xpose.msra.mxu0 0
        %2020 = vmatprep.subr.bf16.mxu0 0
        %2021 = vmatpush1.bf16.xpose.msra.mxu0 0
        %2022 = vmatprep.mubr.bf16.mxu0 0
        %2023 = vmatmul.mubr.bf16.gmra.mrb[0].mxu0 %v1985
        %v2024 = vpop.f32.mrb[0].mxu0
        %v2025 = vadd.f32 0.0, %v2024
        %v2026 = vpop.f32.mrb[0].mxu0
        %v2027 = vpop.f32.mrb[0].mxu0
        %v2028 = vadd.f32 0.0, %v2027
        %v2029 = vpop.f32.mrb[0].mxu0
        %2030 = vdwg.mxu0
        %v2032 = vsel %vm1090, %v931, 0
        %v2035 = vsel %vm1090, %v987, 0
        %2037 = vmatprep.subr.bf16.mxu0 0
        %2038 = vmatpush1.bf16.xpose.msra.mxu0 %v2035
        %2039 = vmatprep.subr.bf16.mxu0 0
        %2040 = vmatpush1.bf16.xpose.msra.mxu0 0
        %2041 = vmatprep.subr.bf16.mxu0 0
        %2042 = vmatpush1.bf16.xpose.msra.mxu0 0
        %2043 = vmatprep.subr.bf16.mxu0 0
        %2044 = vmatpush1.bf16.xpose.msra.mxu0 0
        %2045 = vmatprep.subr.bf16.mxu0 0
        %2046 = vmatpush1.bf16.xpose.msra.mxu0 0
        %2047 = vmatprep.subr.bf16.mxu0 0
        %2048 = vmatpush1.bf16.xpose.msra.mxu0 0
        %2049 = vmatprep.subr.bf16.mxu0 0
        %2050 = vmatpush1.bf16.xpose.msra.mxu0 0
        %2051 = vmatprep.subr.bf16.mxu0 0
        %2052 = vmatpush1.bf16.xpose.msra.mxu0 0
        %2053 = vmatprep.subr.bf16.mxu0 0
        %2054 = vmatpush1.bf16.xpose.msra.mxu0 0
        %2055 = vmatprep.subr.bf16.mxu0 0
        %2056 = vmatpush1.bf16.xpose.msra.mxu0 0
        %2057 = vmatprep.subr.bf16.mxu0 0
        %2058 = vmatpush1.bf16.xpose.msra.mxu0 0
        %2059 = vmatprep.subr.bf16.mxu0 0
        %2060 = vmatpush1.bf16.xpose.msra.mxu0 0
        %2061 = vmatprep.subr.bf16.mxu0 0
        %2062 = vmatpush1.bf16.xpose.msra.mxu0 0
        %2063 = vmatprep.subr.bf16.mxu0 0
        %2064 = vmatpush1.bf16.xpose.msra.mxu0 0
        %2065 = vmatprep.subr.bf16.mxu0 0
        %2066 = vmatpush1.bf16.xpose.msra.mxu0 0
        %2067 = vmatprep.subr.bf16.mxu0 0
        %2068 = vmatpush1.bf16.xpose.msra.mxu0 0
        %2069 = vmatprep.mubr.bf16.mxu0 0
        %2070 = vmatmul.mubr.bf16.gmra.mrb[0].mxu0 %v2032
        %v2071 = vpop.f32.mrb[0].mxu0
        %v2072 = vadd.f32 0.0, %v2071
        %v2073 = vpop.f32.mrb[0].mxu0
        %v2074 = vpop.f32.mrb[0].mxu0
        %v2075 = vadd.f32 0.0, %v2074
        %v2076 = vpop.f32.mrb[0].mxu0
        %2077 = vdwg.mxu0
        %v2079 = vsel %vm1090, %v933, 0
        %v2082 = vsel %vm1090, %v989, 0
        %2084 = vmatprep.subr.bf16.mxu0 0
        %2085 = vmatpush1.bf16.xpose.msra.mxu0 %v2082
        %2086 = vmatprep.subr.bf16.mxu0 0
        %2087 = vmatpush1.bf16.xpose.msra.mxu0 0
        %2088 = vmatprep.subr.bf16.mxu0 0
        %2089 = vmatpush1.bf16.xpose.msra.mxu0 0
        %2090 = vmatprep.subr.bf16.mxu0 0
        %2091 = vmatpush1.bf16.xpose.msra.mxu0 0
        %2092 = vmatprep.subr.bf16.mxu0 0
        %2093 = vmatpush1.bf16.xpose.msra.mxu0 0
        %2094 = vmatprep.subr.bf16.mxu0 0
        %2095 = vmatpush1.bf16.xpose.msra.mxu0 0
        %2096 = vmatprep.subr.bf16.mxu0 0
        %2097 = vmatpush1.bf16.xpose.msra.mxu0 0
        %2098 = vmatprep.subr.bf16.mxu0 0
        %2099 = vmatpush1.bf16.xpose.msra.mxu0 0
        %2100 = vmatprep.subr.bf16.mxu0 0
        %2101 = vmatpush1.bf16.xpose.msra.mxu0 0
        %2102 = vmatprep.subr.bf16.mxu0 0
        %2103 = vmatpush1.bf16.xpose.msra.mxu0 0
        %2104 = vmatprep.subr.bf16.mxu0 0
        %2105 = vmatpush1.bf16.xpose.msra.mxu0 0
        %2106 = vmatprep.subr.bf16.mxu0 0
        %2107 = vmatpush1.bf16.xpose.msra.mxu0 0
        %2108 = vmatprep.subr.bf16.mxu0 0
        %2109 = vmatpush1.bf16.xpose.msra.mxu0 0
        %2110 = vmatprep.subr.bf16.mxu0 0
        %2111 = vmatpush1.bf16.xpose.msra.mxu0 0
        %2112 = vmatprep.subr.bf16.mxu0 0
        %2113 = vmatpush1.bf16.xpose.msra.mxu0 0
        %2114 = vmatprep.subr.bf16.mxu0 0
        %2115 = vmatpush1.bf16.xpose.msra.mxu0 0
        %2116 = vmatprep.mubr.bf16.mxu0 0
        %2117 = vmatmul.mubr.bf16.gmra.mrb[0].mxu0 %v2079
        %v2118 = vpop.f32.mrb[0].mxu0
        %v2119 = vadd.f32 0.0, %v2118
        %v2120 = vpop.f32.mrb[0].mxu0
        %v2121 = vpop.f32.mrb[0].mxu0
        %v2122 = vadd.f32 0.0, %v2121
        %v2123 = vpop.f32.mrb[0].mxu0
        %2124 = vdwg.mxu0
        %v2126 = vsel %vm1090, %v935, 0
        %v2129 = vsel %vm1090, %v991, 0
        %2131 = vmatprep.subr.bf16.mxu0 0
        %2132 = vmatpush1.bf16.xpose.msra.mxu0 %v2129
        %2133 = vmatprep.subr.bf16.mxu0 0
        %2134 = vmatpush1.bf16.xpose.msra.mxu0 0
        %2135 = vmatprep.subr.bf16.mxu0 0
        %2136 = vmatpush1.bf16.xpose.msra.mxu0 0
        %2137 = vmatprep.subr.bf16.mxu0 0
        %2138 = vmatpush1.bf16.xpose.msra.mxu0 0
        %2139 = vmatprep.subr.bf16.mxu0 0
        %2140 = vmatpush1.bf16.xpose.msra.mxu0 0
        %2141 = vmatprep.subr.bf16.mxu0 0
        %2142 = vmatpush1.bf16.xpose.msra.mxu0 0
        %2143 = vmatprep.subr.bf16.mxu0 0
        %2144 = vmatpush1.bf16.xpose.msra.mxu0 0
        %2145 = vmatprep.subr.bf16.mxu0 0
        %2146 = vmatpush1.bf16.xpose.msra.mxu0 0
        %2147 = vmatprep.subr.bf16.mxu0 0
        %2148 = vmatpush1.bf16.xpose.msra.mxu0 0
        %2149 = vmatprep.subr.bf16.mxu0 0
        %2150 = vmatpush1.bf16.xpose.msra.mxu0 0
        %2151 = vmatprep.subr.bf16.mxu0 0
        %2152 = vmatpush1.bf16.xpose.msra.mxu0 0
        %2153 = vmatprep.subr.bf16.mxu0 0
        %2154 = vmatpush1.bf16.xpose.msra.mxu0 0
        %2155 = vmatprep.subr.bf16.mxu0 0
        %2156 = vmatpush1.bf16.xpose.msra.mxu0 0
        %2157 = vmatprep.subr.bf16.mxu0 0
        %2158 = vmatpush1.bf16.xpose.msra.mxu0 0
        %2159 = vmatprep.subr.bf16.mxu0 0
        %2160 = vmatpush1.bf16.xpose.msra.mxu0 0
        %2161 = vmatprep.subr.bf16.mxu0 0
        %2162 = vmatpush1.bf16.xpose.msra.mxu0 0
        %2163 = vmatprep.mubr.bf16.mxu0 0
        %2164 = vmatmul.mubr.bf16.gmra.mrb[0].mxu0 %v2126
        %v2165 = vpop.f32.mrb[0].mxu0
        %v2166 = vadd.f32 0.0, %v2165
        %v2167 = vpop.f32.mrb[0].mxu0
        %v2168 = vpop.f32.mrb[0].mxu0
        %v2169 = vadd.f32 0.0, %v2168
        %v2170 = vpop.f32.mrb[0].mxu0
        %2171 = vdwg.mxu0
        %v2173 = vsel %vm1090, %v937, 0
        %v2176 = vsel %vm1090, %v993, 0
        %2178 = vmatprep.subr.bf16.mxu0 0
        %2179 = vmatpush1.bf16.xpose.msra.mxu0 %v2176
        %2180 = vmatprep.subr.bf16.mxu0 0
        %2181 = vmatpush1.bf16.xpose.msra.mxu0 0
        %2182 = vmatprep.subr.bf16.mxu0 0
        %2183 = vmatpush1.bf16.xpose.msra.mxu0 0
        %2184 = vmatprep.subr.bf16.mxu0 0
        %2185 = vmatpush1.bf16.xpose.msra.mxu0 0
        %2186 = vmatprep.subr.bf16.mxu0 0
        %2187 = vmatpush1.bf16.xpose.msra.mxu0 0
        %2188 = vmatprep.subr.bf16.mxu0 0
        %2189 = vmatpush1.bf16.xpose.msra.mxu0 0
        %2190 = vmatprep.subr.bf16.mxu0 0
        %2191 = vmatpush1.bf16.xpose.msra.mxu0 0
        %2192 = vmatprep.subr.bf16.mxu0 0
        %2193 = vmatpush1.bf16.xpose.msra.mxu0 0
        %2194 = vmatprep.subr.bf16.mxu0 0
        %2195 = vmatpush1.bf16.xpose.msra.mxu0 0
        %2196 = vmatprep.subr.bf16.mxu0 0
        %2197 = vmatpush1.bf16.xpose.msra.mxu0 0
        %2198 = vmatprep.subr.bf16.mxu0 0
        %2199 = vmatpush1.bf16.xpose.msra.mxu0 0
        %2200 = vmatprep.subr.bf16.mxu0 0
        %2201 = vmatpush1.bf16.xpose.msra.mxu0 0
        %2202 = vmatprep.subr.bf16.mxu0 0
        %2203 = vmatpush1.bf16.xpose.msra.mxu0 0
        %2204 = vmatprep.subr.bf16.mxu0 0
        %2205 = vmatpush1.bf16.xpose.msra.mxu0 0
        %2206 = vmatprep.subr.bf16.mxu0 0
        %2207 = vmatpush1.bf16.xpose.msra.mxu0 0
        %2208 = vmatprep.subr.bf16.mxu0 0
        %2209 = vmatpush1.bf16.xpose.msra.mxu0 0
        %2210 = vmatprep.mubr.bf16.mxu0 0
        %2211 = vmatmul.mubr.bf16.gmra.mrb[0].mxu0 %v2173
        %v2212 = vpop.f32.mrb[0].mxu0
        %v2213 = vadd.f32 0.0, %v2212
        %v2214 = vpop.f32.mrb[0].mxu0
        %v2215 = vpop.f32.mrb[0].mxu0
        %v2216 = vadd.f32 0.0, %v2215
        %v2217 = vpop.f32.mrb[0].mxu0
        %2218 = vdwg.mxu0
        %v2220 = vsel %vm1090, %v939, 0
        %v2223 = vsel %vm1090, %v995, 0
        %2225 = vmatprep.subr.bf16.mxu0 0
        %2226 = vmatpush1.bf16.xpose.msra.mxu0 %v2223
        %2227 = vmatprep.subr.bf16.mxu0 0
        %2228 = vmatpush1.bf16.xpose.msra.mxu0 0
        %2229 = vmatprep.subr.bf16.mxu0 0
        %2230 = vmatpush1.bf16.xpose.msra.mxu0 0
        %2231 = vmatprep.subr.bf16.mxu0 0
        %2232 = vmatpush1.bf16.xpose.msra.mxu0 0
        %2233 = vmatprep.subr.bf16.mxu0 0
        %2234 = vmatpush1.bf16.xpose.msra.mxu0 0
        %2235 = vmatprep.subr.bf16.mxu0 0
        %2236 = vmatpush1.bf16.xpose.msra.mxu0 0
        %2237 = vmatprep.subr.bf16.mxu0 0
        %2238 = vmatpush1.bf16.xpose.msra.mxu0 0
        %2239 = vmatprep.subr.bf16.mxu0 0
        %2240 = vmatpush1.bf16.xpose.msra.mxu0 0
        %2241 = vmatprep.subr.bf16.mxu0 0
        %2242 = vmatpush1.bf16.xpose.msra.mxu0 0
        %2243 = vmatprep.subr.bf16.mxu0 0
        %2244 = vmatpush1.bf16.xpose.msra.mxu0 0
        %2245 = vmatprep.subr.bf16.mxu0 0
        %2246 = vmatpush1.bf16.xpose.msra.mxu0 0
        %2247 = vmatprep.subr.bf16.mxu0 0
        %2248 = vmatpush1.bf16.xpose.msra.mxu0 0
        %2249 = vmatprep.subr.bf16.mxu0 0
        %2250 = vmatpush1.bf16.xpose.msra.mxu0 0
        %2251 = vmatprep.subr.bf16.mxu0 0
        %2252 = vmatpush1.bf16.xpose.msra.mxu0 0
        %2253 = vmatprep.subr.bf16.mxu0 0
        %2254 = vmatpush1.bf16.xpose.msra.mxu0 0
        %2255 = vmatprep.subr.bf16.mxu0 0
        %2256 = vmatpush1.bf16.xpose.msra.mxu0 0
        %2257 = vmatprep.mubr.bf16.mxu0 0
        %2258 = vmatmul.mubr.bf16.gmra.mrb[0].mxu0 %v2220
        %v2259 = vpop.f32.mrb[0].mxu0
        %v2260 = vadd.f32 0.0, %v2259
        %v2261 = vpop.f32.mrb[0].mxu0
        %v2262 = vpop.f32.mrb[0].mxu0
        %v2263 = vadd.f32 0.0, %v2262
        %v2264 = vpop.f32.mrb[0].mxu0
        %2265 = vdwg.mxu0
        %v2267 = vsel %vm1090, %v941, 0
        %v2270 = vsel %vm1090, %v997, 0
        %2272 = vmatprep.subr.bf16.mxu0 0
        %2273 = vmatpush1.bf16.xpose.msra.mxu0 %v2270
        %2274 = vmatprep.subr.bf16.mxu0 0
        %2275 = vmatpush1.bf16.xpose.msra.mxu0 0
        %2276 = vmatprep.subr.bf16.mxu0 0
        %2277 = vmatpush1.bf16.xpose.msra.mxu0 0
        %2278 = vmatprep.subr.bf16.mxu0 0
        %2279 = vmatpush1.bf16.xpose.msra.mxu0 0
        %2280 = vmatprep.subr.bf16.mxu0 0
        %2281 = vmatpush1.bf16.xpose.msra.mxu0 0
        %2282 = vmatprep.subr.bf16.mxu0 0
        %2283 = vmatpush1.bf16.xpose.msra.mxu0 0
        %2284 = vmatprep.subr.bf16.mxu0 0
        %2285 = vmatpush1.bf16.xpose.msra.mxu0 0
        %2286 = vmatprep.subr.bf16.mxu0 0
        %2287 = vmatpush1.bf16.xpose.msra.mxu0 0
        %2288 = vmatprep.subr.bf16.mxu0 0
        %2289 = vmatpush1.bf16.xpose.msra.mxu0 0
        %2290 = vmatprep.subr.bf16.mxu0 0
        %2291 = vmatpush1.bf16.xpose.msra.mxu0 0
        %2292 = vmatprep.subr.bf16.mxu0 0
        %2293 = vmatpush1.bf16.xpose.msra.mxu0 0
        %2294 = vmatprep.subr.bf16.mxu0 0
        %2295 = vmatpush1.bf16.xpose.msra.mxu0 0
        %2296 = vmatprep.subr.bf16.mxu0 0
        %2297 = vmatpush1.bf16.xpose.msra.mxu0 0
        %2298 = vmatprep.subr.bf16.mxu0 0
        %2299 = vmatpush1.bf16.xpose.msra.mxu0 0
        %2300 = vmatprep.subr.bf16.mxu0 0
        %2301 = vmatpush1.bf16.xpose.msra.mxu0 0
        %2302 = vmatprep.subr.bf16.mxu0 0
        %2303 = vmatpush1.bf16.xpose.msra.mxu0 0
        %2304 = vmatprep.mubr.bf16.mxu0 0
        %2305 = vmatmul.mubr.bf16.gmra.mrb[0].mxu0 %v2267
        %v2306 = vpop.f32.mrb[0].mxu0
        %v2307 = vadd.f32 0.0, %v2306
        %v2308 = vpop.f32.mrb[0].mxu0
        %v2309 = vpop.f32.mrb[0].mxu0
        %v2310 = vadd.f32 0.0, %v2309
        %v2311 = vpop.f32.mrb[0].mxu0
        %2312 = vdwg.mxu0
        %v2314 = vsel %vm1090, %v943, 0
        %v2317 = vsel %vm1090, %v999, 0
        %2319 = vmatprep.subr.bf16.mxu0 0
        %2320 = vmatpush1.bf16.xpose.msra.mxu0 %v2317
        %2321 = vmatprep.subr.bf16.mxu0 0
        %2322 = vmatpush1.bf16.xpose.msra.mxu0 0
        %2323 = vmatprep.subr.bf16.mxu0 0
        %2324 = vmatpush1.bf16.xpose.msra.mxu0 0
        %2325 = vmatprep.subr.bf16.mxu0 0
        %2326 = vmatpush1.bf16.xpose.msra.mxu0 0
        %2327 = vmatprep.subr.bf16.mxu0 0
        %2328 = vmatpush1.bf16.xpose.msra.mxu0 0
        %2329 = vmatprep.subr.bf16.mxu0 0
        %2330 = vmatpush1.bf16.xpose.msra.mxu0 0
        %2331 = vmatprep.subr.bf16.mxu0 0
        %2332 = vmatpush1.bf16.xpose.msra.mxu0 0
        %2333 = vmatprep.subr.bf16.mxu0 0
        %2334 = vmatpush1.bf16.xpose.msra.mxu0 0
        %2335 = vmatprep.subr.bf16.mxu0 0
        %2336 = vmatpush1.bf16.xpose.msra.mxu0 0
        %2337 = vmatprep.subr.bf16.mxu0 0
        %2338 = vmatpush1.bf16.xpose.msra.mxu0 0
        %2339 = vmatprep.subr.bf16.mxu0 0
        %2340 = vmatpush1.bf16.xpose.msra.mxu0 0
        %2341 = vmatprep.subr.bf16.mxu0 0
        %2342 = vmatpush1.bf16.xpose.msra.mxu0 0
        %2343 = vmatprep.subr.bf16.mxu0 0
        %2344 = vmatpush1.bf16.xpose.msra.mxu0 0
        %2345 = vmatprep.subr.bf16.mxu0 0
        %2346 = vmatpush1.bf16.xpose.msra.mxu0 0
        %2347 = vmatprep.subr.bf16.mxu0 0
        %2348 = vmatpush1.bf16.xpose.msra.mxu0 0
        %2349 = vmatprep.subr.bf16.mxu0 0
        %2350 = vmatpush1.bf16.xpose.msra.mxu0 0
        %2351 = vmatprep.mubr.bf16.mxu0 0
        %2352 = vmatmul.mubr.bf16.gmra.mrb[0].mxu0 %v2314
        %v2353 = vpop.f32.mrb[0].mxu0
        %v2354 = vadd.f32 0.0, %v2353
        %v2355 = vpop.f32.mrb[0].mxu0
        %v2356 = vpop.f32.mrb[0].mxu0
        %v2357 = vadd.f32 0.0, %v2356
        %v2358 = vpop.f32.mrb[0].mxu0
        %2359 = vdwg.mxu0
        %v2361 = vsel %vm1090, %v945, 0
        %v2364 = vsel %vm1090, %v1001, 0
        %2366 = vmatprep.subr.bf16.mxu0 0
        %2367 = vmatpush1.bf16.xpose.msra.mxu0 %v2364
        %2368 = vmatprep.subr.bf16.mxu0 0
        %2369 = vmatpush1.bf16.xpose.msra.mxu0 0
        %2370 = vmatprep.subr.bf16.mxu0 0
        %2371 = vmatpush1.bf16.xpose.msra.mxu0 0
        %2372 = vmatprep.subr.bf16.mxu0 0
        %2373 = vmatpush1.bf16.xpose.msra.mxu0 0
        %2374 = vmatprep.subr.bf16.mxu0 0
        %2375 = vmatpush1.bf16.xpose.msra.mxu0 0
        %2376 = vmatprep.subr.bf16.mxu0 0
        %2377 = vmatpush1.bf16.xpose.msra.mxu0 0
        %2378 = vmatprep.subr.bf16.mxu0 0
        %2379 = vmatpush1.bf16.xpose.msra.mxu0 0
        %2380 = vmatprep.subr.bf16.mxu0 0
        %2381 = vmatpush1.bf16.xpose.msra.mxu0 0
        %2382 = vmatprep.subr.bf16.mxu0 0
        %2383 = vmatpush1.bf16.xpose.msra.mxu0 0
        %2384 = vmatprep.subr.bf16.mxu0 0
        %2385 = vmatpush1.bf16.xpose.msra.mxu0 0
        %2386 = vmatprep.subr.bf16.mxu0 0
        %2387 = vmatpush1.bf16.xpose.msra.mxu0 0
        %2388 = vmatprep.subr.bf16.mxu0 0
        %2389 = vmatpush1.bf16.xpose.msra.mxu0 0
        %2390 = vmatprep.subr.bf16.mxu0 0
        %2391 = vmatpush1.bf16.xpose.msra.mxu0 0
        %2392 = vmatprep.subr.bf16.mxu0 0
        %2393 = vmatpush1.bf16.xpose.msra.mxu0 0
        %2394 = vmatprep.subr.bf16.mxu0 0
        %2395 = vmatpush1.bf16.xpose.msra.mxu0 0
        %2396 = vmatprep.subr.bf16.mxu0 0
        %2397 = vmatpush1.bf16.xpose.msra.mxu0 0
        %2398 = vmatprep.mubr.bf16.mxu0 0
        %2399 = vmatmul.mubr.bf16.gmra.mrb[0].mxu0 %v2361
        %v2400 = vpop.f32.mrb[0].mxu0
        %v2401 = vadd.f32 0.0, %v2400
        %v2402 = vpop.f32.mrb[0].mxu0
        %v2403 = vpop.f32.mrb[0].mxu0
        %v2404 = vadd.f32 0.0, %v2403
        %v2405 = vpop.f32.mrb[0].mxu0
        %2406 = vdwg.mxu0
        %v2408 = vsel %vm1090, %v947, 0
        %v2411 = vsel %vm1090, %v1003, 0
        %2413 = vmatprep.subr.bf16.mxu0 0
        %2414 = vmatpush1.bf16.xpose.msra.mxu0 %v2411
        %2415 = vmatprep.subr.bf16.mxu0 0
        %2416 = vmatpush1.bf16.xpose.msra.mxu0 0
        %2417 = vmatprep.subr.bf16.mxu0 0
        %2418 = vmatpush1.bf16.xpose.msra.mxu0 0
        %2419 = vmatprep.subr.bf16.mxu0 0
        %2420 = vmatpush1.bf16.xpose.msra.mxu0 0
        %2421 = vmatprep.subr.bf16.mxu0 0
        %2422 = vmatpush1.bf16.xpose.msra.mxu0 0
        %2423 = vmatprep.subr.bf16.mxu0 0
        %2424 = vmatpush1.bf16.xpose.msra.mxu0 0
        %2425 = vmatprep.subr.bf16.mxu0 0
        %2426 = vmatpush1.bf16.xpose.msra.mxu0 0
        %2427 = vmatprep.subr.bf16.mxu0 0
        %2428 = vmatpush1.bf16.xpose.msra.mxu0 0
        %2429 = vmatprep.subr.bf16.mxu0 0
        %2430 = vmatpush1.bf16.xpose.msra.mxu0 0
        %2431 = vmatprep.subr.bf16.mxu0 0
        %2432 = vmatpush1.bf16.xpose.msra.mxu0 0
        %2433 = vmatprep.subr.bf16.mxu0 0
        %2434 = vmatpush1.bf16.xpose.msra.mxu0 0
        %2435 = vmatprep.subr.bf16.mxu0 0
        %2436 = vmatpush1.bf16.xpose.msra.mxu0 0
        %2437 = vmatprep.subr.bf16.mxu0 0
        %2438 = vmatpush1.bf16.xpose.msra.mxu0 0
        %2439 = vmatprep.subr.bf16.mxu0 0
        %2440 = vmatpush1.bf16.xpose.msra.mxu0 0
        %2441 = vmatprep.subr.bf16.mxu0 0
        %2442 = vmatpush1.bf16.xpose.msra.mxu0 0
        %2443 = vmatprep.subr.bf16.mxu0 0
        %2444 = vmatpush1.bf16.xpose.msra.mxu0 0
        %2445 = vmatprep.mubr.bf16.mxu0 0
        %2446 = vmatmul.mubr.bf16.gmra.mrb[0].mxu0 %v2408
        %v2447 = vpop.f32.mrb[0].mxu0
        %v2448 = vadd.f32 0.0, %v2447
        %v2449 = vpop.f32.mrb[0].mxu0
        %v2450 = vpop.f32.mrb[0].mxu0
        %v2451 = vadd.f32 0.0, %v2450
        %v2452 = vpop.f32.mrb[0].mxu0
        %2453 = vdwg.mxu0
        %v2455 = vsel %vm1090, %v949, 0
        %v2458 = vsel %vm1090, %v1005, 0
        %2460 = vmatprep.subr.bf16.mxu0 0
        %2461 = vmatpush1.bf16.xpose.msra.mxu0 %v2458
        %2462 = vmatprep.subr.bf16.mxu0 0
        %2463 = vmatpush1.bf16.xpose.msra.mxu0 0
        %2464 = vmatprep.subr.bf16.mxu0 0
        %2465 = vmatpush1.bf16.xpose.msra.mxu0 0
        %2466 = vmatprep.subr.bf16.mxu0 0
        %2467 = vmatpush1.bf16.xpose.msra.mxu0 0
        %2468 = vmatprep.subr.bf16.mxu0 0
        %2469 = vmatpush1.bf16.xpose.msra.mxu0 0
        %2470 = vmatprep.subr.bf16.mxu0 0
        %2471 = vmatpush1.bf16.xpose.msra.mxu0 0
        %2472 = vmatprep.subr.bf16.mxu0 0
        %2473 = vmatpush1.bf16.xpose.msra.mxu0 0
        %2474 = vmatprep.subr.bf16.mxu0 0
        %2475 = vmatpush1.bf16.xpose.msra.mxu0 0
        %2476 = vmatprep.subr.bf16.mxu0 0
        %2477 = vmatpush1.bf16.xpose.msra.mxu0 0
        %2478 = vmatprep.subr.bf16.mxu0 0
        %2479 = vmatpush1.bf16.xpose.msra.mxu0 0
        %2480 = vmatprep.subr.bf16.mxu0 0
        %2481 = vmatpush1.bf16.xpose.msra.mxu0 0
        %2482 = vmatprep.subr.bf16.mxu0 0
        %2483 = vmatpush1.bf16.xpose.msra.mxu0 0
        %2484 = vmatprep.subr.bf16.mxu0 0
        %2485 = vmatpush1.bf16.xpose.msra.mxu0 0
        %2486 = vmatprep.subr.bf16.mxu0 0
        %2487 = vmatpush1.bf16.xpose.msra.mxu0 0
        %2488 = vmatprep.subr.bf16.mxu0 0
        %2489 = vmatpush1.bf16.xpose.msra.mxu0 0
        %2490 = vmatprep.subr.bf16.mxu0 0
        %2491 = vmatpush1.bf16.xpose.msra.mxu0 0
        %2492 = vmatprep.mubr.bf16.mxu0 0
        %2493 = vmatmul.mubr.bf16.gmra.mrb[0].mxu0 %v2455
        %v2494 = vpop.f32.mrb[0].mxu0
        %v2495 = vadd.f32 0.0, %v2494
        %v2496 = vpop.f32.mrb[0].mxu0
        %v2497 = vpop.f32.mrb[0].mxu0
        %v2498 = vadd.f32 0.0, %v2497
        %v2499 = vpop.f32.mrb[0].mxu0
        %2500 = vdwg.mxu0
        %v2502 = vsel %vm1090, %v951, 0
        %v2505 = vsel %vm1090, %v1007, 0
        %2507 = vmatprep.subr.bf16.mxu0 0
        %2508 = vmatpush1.bf16.xpose.msra.mxu0 %v2505
        %2509 = vmatprep.subr.bf16.mxu0 0
        %2510 = vmatpush1.bf16.xpose.msra.mxu0 0
        %2511 = vmatprep.subr.bf16.mxu0 0
        %2512 = vmatpush1.bf16.xpose.msra.mxu0 0
        %2513 = vmatprep.subr.bf16.mxu0 0
        %2514 = vmatpush1.bf16.xpose.msra.mxu0 0
        %2515 = vmatprep.subr.bf16.mxu0 0
        %2516 = vmatpush1.bf16.xpose.msra.mxu0 0
        %2517 = vmatprep.subr.bf16.mxu0 0
        %2518 = vmatpush1.bf16.xpose.msra.mxu0 0
        %2519 = vmatprep.subr.bf16.mxu0 0
        %2520 = vmatpush1.bf16.xpose.msra.mxu0 0
        %2521 = vmatprep.subr.bf16.mxu0 0
        %2522 = vmatpush1.bf16.xpose.msra.mxu0 0
        %2523 = vmatprep.subr.bf16.mxu0 0
        %2524 = vmatpush1.bf16.xpose.msra.mxu0 0
        %2525 = vmatprep.subr.bf16.mxu0 0
        %2526 = vmatpush1.bf16.xpose.msra.mxu0 0
        %2527 = vmatprep.subr.bf16.mxu0 0
        %2528 = vmatpush1.bf16.xpose.msra.mxu0 0
        %2529 = vmatprep.subr.bf16.mxu0 0
        %2530 = vmatpush1.bf16.xpose.msra.mxu0 0
        %2531 = vmatprep.subr.bf16.mxu0 0
        %2532 = vmatpush1.bf16.xpose.msra.mxu0 0
        %2533 = vmatprep.subr.bf16.mxu0 0
        %2534 = vmatpush1.bf16.xpose.msra.mxu0 0
        %2535 = vmatprep.subr.bf16.mxu0 0
        %2536 = vmatpush1.bf16.xpose.msra.mxu0 0
        %2537 = vmatprep.subr.bf16.mxu0 0
        %2538 = vmatpush1.bf16.xpose.msra.mxu0 0
        %2539 = vmatprep.mubr.bf16.mxu0 0
        %2540 = vmatmul.mubr.bf16.gmra.mrb[0].mxu0 %v2502
        %v2541 = vpop.f32.mrb[0].mxu0
        %v2542 = vadd.f32 0.0, %v2541
        %v2543 = vpop.f32.mrb[0].mxu0
        %v2544 = vpop.f32.mrb[0].mxu0
        %v2545 = vadd.f32 0.0, %v2544
        %v2546 = vpop.f32.mrb[0].mxu0
        %2547 = vdwg.mxu0
        %v2549 = vsel %vm1090, %v953, 0
        %v2552 = vsel %vm1090, %v1009, 0
        %2554 = vmatprep.subr.bf16.mxu0 0
        %2555 = vmatpush1.bf16.xpose.msra.mxu0 %v2552
        %2556 = vmatprep.subr.bf16.mxu0 0
        %2557 = vmatpush1.bf16.xpose.msra.mxu0 0
        %2558 = vmatprep.subr.bf16.mxu0 0
        %2559 = vmatpush1.bf16.xpose.msra.mxu0 0
        %2560 = vmatprep.subr.bf16.mxu0 0
        %2561 = vmatpush1.bf16.xpose.msra.mxu0 0
        %2562 = vmatprep.subr.bf16.mxu0 0
        %2563 = vmatpush1.bf16.xpose.msra.mxu0 0
        %2564 = vmatprep.subr.bf16.mxu0 0
        %2565 = vmatpush1.bf16.xpose.msra.mxu0 0
        %2566 = vmatprep.subr.bf16.mxu0 0
        %2567 = vmatpush1.bf16.xpose.msra.mxu0 0
        %2568 = vmatprep.subr.bf16.mxu0 0
        %2569 = vmatpush1.bf16.xpose.msra.mxu0 0
        %2570 = vmatprep.subr.bf16.mxu0 0
        %2571 = vmatpush1.bf16.xpose.msra.mxu0 0
        %2572 = vmatprep.subr.bf16.mxu0 0
        %2573 = vmatpush1.bf16.xpose.msra.mxu0 0
        %2574 = vmatprep.subr.bf16.mxu0 0
        %2575 = vmatpush1.bf16.xpose.msra.mxu0 0
        %2576 = vmatprep.subr.bf16.mxu0 0
        %2577 = vmatpush1.bf16.xpose.msra.mxu0 0
        %2578 = vmatprep.subr.bf16.mxu0 0
        %2579 = vmatpush1.bf16.xpose.msra.mxu0 0
        %2580 = vmatprep.subr.bf16.mxu0 0
        %2581 = vmatpush1.bf16.xpose.msra.mxu0 0
        %2582 = vmatprep.subr.bf16.mxu0 0
        %2583 = vmatpush1.bf16.xpose.msra.mxu0 0
        %2584 = vmatprep.subr.bf16.mxu0 0
        %2585 = vmatpush1.bf16.xpose.msra.mxu0 0
        %2586 = vmatprep.mubr.bf16.mxu0 0
        %2587 = vmatmul.mubr.bf16.gmra.mrb[0].mxu0 %v2549
        %v2588 = vpop.f32.mrb[0].mxu0
        %v2589 = vadd.f32 0.0, %v2588
        %v2590 = vpop.f32.mrb[0].mxu0
        %v2591 = vpop.f32.mrb[0].mxu0
        %v2592 = vadd.f32 0.0, %v2591
        %v2593 = vpop.f32.mrb[0].mxu0
        %2594 = vdwg.mxu0
        %vm2595 = vcmask 130048
        %v2596 = vsel %vm2595, %v1132, -inf
        %2597 = vmax.xlane.f32.xlu0 %v2596
        %v2598 = vpop.xlane.xlu0 %2597
        %v2599 = vsel %vm2595, %v1135, -inf
        %2600 = vmax.xlane.f32.xlu0 %v2599
        %v2601 = vpop.xlane.xlu0 %2600
        %v2602 = vsel %vm2595, %v1179, -inf
        %2603 = vmax.xlane.f32.xlu0 %v2602
        %v2604 = vpop.xlane.xlu0 %2603
        %v2605 = vsel %vm2595, %v1182, -inf
        %2606 = vmax.xlane.f32.xlu0 %v2605
        %v2607 = vpop.xlane.xlu0 %2606
        %v2608 = vsel %vm2595, %v1226, -inf
        %2609 = vmax.xlane.f32.xlu0 %v2608
        %v2610 = vpop.xlane.xlu0 %2609
        %v2611 = vsel %vm2595, %v1229, -inf
        %2612 = vmax.xlane.f32.xlu0 %v2611
        %v2613 = vpop.xlane.xlu0 %2612
        %v2614 = vsel %vm2595, %v1273, -inf
        %2615 = vmax.xlane.f32.xlu0 %v2614
        %v2616 = vpop.xlane.xlu0 %2615
        %v2617 = vsel %vm2595, %v1276, -inf
        %2618 = vmax.xlane.f32.xlu0 %v2617
        %v2619 = vpop.xlane.xlu0 %2618
        %v2620 = vsel %vm2595, %v1320, -inf
        %2621 = vmax.xlane.f32.xlu0 %v2620
        %v2622 = vpop.xlane.xlu0 %2621
        %v2623 = vsel %vm2595, %v1323, -inf
        %2624 = vmax.xlane.f32.xlu0 %v2623
        %v2625 = vpop.xlane.xlu0 %2624
        %v2626 = vsel %vm2595, %v1367, -inf
        %2627 = vmax.xlane.f32.xlu0 %v2626
        %v2628 = vpop.xlane.xlu0 %2627
        %v2629 = vsel %vm2595, %v1370, -inf
        %2630 = vmax.xlane.f32.xlu0 %v2629
        %v2631 = vpop.xlane.xlu0 %2630
        %v2632 = vsel %vm2595, %v1414, -inf
        %2633 = vmax.xlane.f32.xlu0 %v2632
        %v2634 = vpop.xlane.xlu0 %2633
        %v2635 = vsel %vm2595, %v1417, -inf
        %2636 = vmax.xlane.f32.xlu0 %v2635
        %v2637 = vpop.xlane.xlu0 %2636
        %v2638 = vsel %vm2595, %v1461, -inf
        %2639 = vmax.xlane.f32.xlu0 %v2638
        %v2640 = vpop.xlane.xlu0 %2639
        %v2641 = vsel %vm2595, %v1464, -inf
        %2642 = vmax.xlane.f32.xlu0 %v2641
        %v2643 = vpop.xlane.xlu0 %2642
        %v2644 = vsel %vm2595, %v1508, -inf
        %2645 = vmax.xlane.f32.xlu0 %v2644
        %v2646 = vpop.xlane.xlu0 %2645
        %v2647 = vsel %vm2595, %v1511, -inf
        %2648 = vmax.xlane.f32.xlu0 %v2647
        %v2649 = vpop.xlane.xlu0 %2648
        %v2650 = vsel %vm2595, %v1555, -inf
        %2651 = vmax.xlane.f32.xlu0 %v2650
        %v2652 = vpop.xlane.xlu0 %2651
        %v2653 = vsel %vm2595, %v1558, -inf
        %2654 = vmax.xlane.f32.xlu0 %v2653
        %v2655 = vpop.xlane.xlu0 %2654
        %v2656 = vsel %vm2595, %v1602, -inf
        %2657 = vmax.xlane.f32.xlu0 %v2656
        %v2658 = vpop.xlane.xlu0 %2657
        %v2659 = vsel %vm2595, %v1605, -inf
        %2660 = vmax.xlane.f32.xlu0 %v2659
        %v2661 = vpop.xlane.xlu0 %2660
        %v2662 = vsel %vm2595, %v1649, -inf
        %2663 = vmax.xlane.f32.xlu0 %v2662
        %v2664 = vpop.xlane.xlu0 %2663
        %v2665 = vsel %vm2595, %v1652, -inf
        %2666 = vmax.xlane.f32.xlu0 %v2665
        %v2667 = vpop.xlane.xlu0 %2666
        %v2668 = vsel %vm2595, %v1696, -inf
        %2669 = vmax.xlane.f32.xlu0 %v2668
        %v2670 = vpop.xlane.xlu0 %2669
        %v2671 = vsel %vm2595, %v1699, -inf
        %2672 = vmax.xlane.f32.xlu0 %v2671
        %v2673 = vpop.xlane.xlu0 %2672
        %v2674 = vsel %vm2595, %v1743, -inf
        %2675 = vmax.xlane.f32.xlu0 %v2674
        %v2676 = vpop.xlane.xlu0 %2675
        %v2677 = vsel %vm2595, %v1746, -inf
        %2678 = vmax.xlane.f32.xlu0 %v2677
        %v2679 = vpop.xlane.xlu0 %2678
        %v2680 = vsel %vm2595, %v1790, -inf
        %2681 = vmax.xlane.f32.xlu0 %v2680
        %v2682 = vpop.xlane.xlu0 %2681
        %v2683 = vsel %vm2595, %v1793, -inf
        %2684 = vmax.xlane.f32.xlu0 %v2683
        %v2685 = vpop.xlane.xlu0 %2684
        %v2686 = vsel %vm2595, %v1837, -inf
        %2687 = vmax.xlane.f32.xlu0 %v2686
        %v2688 = vpop.xlane.xlu0 %2687
        %v2689 = vsel %vm2595, %v1840, -inf
        %2690 = vmax.xlane.f32.xlu0 %v2689
        %v2691 = vpop.xlane.xlu0 %2690
        %v2692 = vsel %vm2595, %v1884, -inf
        %2693 = vmax.xlane.f32.xlu0 %v2692
        %v2694 = vpop.xlane.xlu0 %2693
        %v2695 = vsel %vm2595, %v1887, -inf
        %2696 = vmax.xlane.f32.xlu0 %v2695
        %v2697 = vpop.xlane.xlu0 %2696
        %v2698 = vsel %vm2595, %v1931, -inf
        %2699 = vmax.xlane.f32.xlu0 %v2698
        %v2700 = vpop.xlane.xlu0 %2699
        %v2701 = vsel %vm2595, %v1934, -inf
        %2702 = vmax.xlane.f32.xlu0 %v2701
        %v2703 = vpop.xlane.xlu0 %2702
        %v2704 = vsel %vm2595, %v1978, -inf
        %2705 = vmax.xlane.f32.xlu0 %v2704
        %v2706 = vpop.xlane.xlu0 %2705
        %v2707 = vsel %vm2595, %v1981, -inf
        %2708 = vmax.xlane.f32.xlu0 %v2707
        %v2709 = vpop.xlane.xlu0 %2708
        %v2710 = vsel %vm2595, %v2025, -inf
        %2711 = vmax.xlane.f32.xlu0 %v2710
        %v2712 = vpop.xlane.xlu0 %2711
        %v2713 = vsel %vm2595, %v2028, -inf
        %2714 = vmax.xlane.f32.xlu0 %v2713
        %v2715 = vpop.xlane.xlu0 %2714
        %v2716 = vsel %vm2595, %v2072, -inf
        %2717 = vmax.xlane.f32.xlu0 %v2716
        %v2718 = vpop.xlane.xlu0 %2717
        %v2719 = vsel %vm2595, %v2075, -inf
        %2720 = vmax.xlane.f32.xlu0 %v2719
        %v2721 = vpop.xlane.xlu0 %2720
        %v2722 = vsel %vm2595, %v2119, -inf
        %2723 = vmax.xlane.f32.xlu0 %v2722
        %v2724 = vpop.xlane.xlu0 %2723
        %v2725 = vsel %vm2595, %v2122, -inf
        %2726 = vmax.xlane.f32.xlu0 %v2725
        %v2727 = vpop.xlane.xlu0 %2726
        %v2728 = vsel %vm2595, %v2166, -inf
        %2729 = vmax.xlane.f32.xlu0 %v2728
        %v2730 = vpop.xlane.xlu0 %2729
        %v2731 = vsel %vm2595, %v2169, -inf
        %2732 = vmax.xlane.f32.xlu0 %v2731
        %v2733 = vpop.xlane.xlu0 %2732
        %v2734 = vsel %vm2595, %v2213, -inf
        %2735 = vmax.xlane.f32.xlu0 %v2734
        %v2736 = vpop.xlane.xlu0 %2735
        %v2737 = vsel %vm2595, %v2216, -inf
        %2738 = vmax.xlane.f32.xlu0 %v2737
        %v2739 = vpop.xlane.xlu0 %2738
        %v2740 = vsel %vm2595, %v2260, -inf
        %2741 = vmax.xlane.f32.xlu0 %v2740
        %v2742 = vpop.xlane.xlu0 %2741
        %v2743 = vsel %vm2595, %v2263, -inf
        %2744 = vmax.xlane.f32.xlu0 %v2743
        %v2745 = vpop.xlane.xlu0 %2744
        %v2746 = vsel %vm2595, %v2307, -inf
        %2747 = vmax.xlane.f32.xlu0 %v2746
        %v2748 = vpop.xlane.xlu0 %2747
        %v2749 = vsel %vm2595, %v2310, -inf
        %2750 = vmax.xlane.f32.xlu0 %v2749
        %v2751 = vpop.xlane.xlu0 %2750
        %v2752 = vsel %vm2595, %v2354, -inf
        %2753 = vmax.xlane.f32.xlu0 %v2752
        %v2754 = vpop.xlane.xlu0 %2753
        %v2755 = vsel %vm2595, %v2357, -inf
        %2756 = vmax.xlane.f32.xlu0 %v2755
        %v2757 = vpop.xlane.xlu0 %2756
        %v2758 = vsel %vm2595, %v2401, -inf
        %2759 = vmax.xlane.f32.xlu0 %v2758
        %v2760 = vpop.xlane.xlu0 %2759
        %v2761 = vsel %vm2595, %v2404, -inf
        %2762 = vmax.xlane.f32.xlu0 %v2761
        %v2763 = vpop.xlane.xlu0 %2762
        %v2764 = vsel %vm2595, %v2448, -inf
        %2765 = vmax.xlane.f32.xlu0 %v2764
        %v2766 = vpop.xlane.xlu0 %2765
        %v2767 = vsel %vm2595, %v2451, -inf
        %2768 = vmax.xlane.f32.xlu0 %v2767
        %v2769 = vpop.xlane.xlu0 %2768
        %v2770 = vsel %vm2595, %v2495, -inf
        %2771 = vmax.xlane.f32.xlu0 %v2770
        %v2772 = vpop.xlane.xlu0 %2771
        %v2773 = vsel %vm2595, %v2498, -inf
        %2774 = vmax.xlane.f32.xlu0 %v2773
        %v2775 = vpop.xlane.xlu0 %2774
        %v2776 = vsel %vm2595, %v2542, -inf
        %2777 = vmax.xlane.f32.xlu0 %v2776
        %v2778 = vpop.xlane.xlu0 %2777
        %v2779 = vsel %vm2595, %v2545, -inf
        %2780 = vmax.xlane.f32.xlu0 %v2779
        %v2781 = vpop.xlane.xlu0 %2780
        %v2782 = vsel %vm2595, %v2589, -inf
        %2783 = vmax.xlane.f32.xlu0 %v2782
        %v2784 = vpop.xlane.xlu0 %2783
        %v2785 = vsel %vm2595, %v2592, -inf
        %2786 = vmax.xlane.f32.xlu0 %v2785
        %v2787 = vpop.xlane.xlu0 %2786
        %v2788 = vsub.f32 %v1132, %v2598
        %v2789 = vsub.f32 %v1135, %v2601
        %v2790 = vsub.f32 %v1179, %v2604
        %v2791 = vsub.f32 %v1182, %v2607
        %v2792 = vsub.f32 %v1226, %v2610
        %v2793 = vsub.f32 %v1229, %v2613
        %v2794 = vsub.f32 %v1273, %v2616
        %v2795 = vsub.f32 %v1276, %v2619
        %v2796 = vsub.f32 %v1320, %v2622
        %v2797 = vsub.f32 %v1323, %v2625
        %v2798 = vsub.f32 %v1367, %v2628
        %v2799 = vsub.f32 %v1370, %v2631
        %v2800 = vsub.f32 %v1414, %v2634
        %v2801 = vsub.f32 %v1417, %v2637
        %v2802 = vsub.f32 %v1461, %v2640
        %v2803 = vsub.f32 %v1464, %v2643
        %v2804 = vsub.f32 %v1508, %v2646
        %v2805 = vsub.f32 %v1511, %v2649
        %v2806 = vsub.f32 %v1555, %v2652
        %v2807 = vsub.f32 %v1558, %v2655
        %v2808 = vsub.f32 %v1602, %v2658
        %v2809 = vsub.f32 %v1605, %v2661
        %v2810 = vsub.f32 %v1649, %v2664
        %v2811 = vsub.f32 %v1652, %v2667
        %v2812 = vsub.f32 %v1696, %v2670
        %v2813 = vsub.f32 %v1699, %v2673
        %v2814 = vsub.f32 %v1743, %v2676
        %v2815 = vsub.f32 %v1746, %v2679
        %v2816 = vsub.f32 %v1790, %v2682
        %v2817 = vsub.f32 %v1793, %v2685
        %v2818 = vsub.f32 %v1837, %v2688
        %v2819 = vsub.f32 %v1840, %v2691
        %v2820 = vsub.f32 %v1884, %v2694
        %v2821 = vsub.f32 %v1887, %v2697
        %v2822 = vsub.f32 %v1931, %v2700
        %v2823 = vsub.f32 %v1934, %v2703
        %v2824 = vsub.f32 %v1978, %v2706
        %v2825 = vsub.f32 %v1981, %v2709
        %v2826 = vsub.f32 %v2025, %v2712
        %v2827 = vsub.f32 %v2028, %v2715
        %v2828 = vsub.f32 %v2072, %v2718
        %v2829 = vsub.f32 %v2075, %v2721
        %v2830 = vsub.f32 %v2119, %v2724
        %v2831 = vsub.f32 %v2122, %v2727
        %v2832 = vsub.f32 %v2166, %v2730
        %v2833 = vsub.f32 %v2169, %v2733
        %v2834 = vsub.f32 %v2213, %v2736
        %v2835 = vsub.f32 %v2216, %v2739
        %v2836 = vsub.f32 %v2260, %v2742
        %v2837 = vsub.f32 %v2263, %v2745
        %v2838 = vsub.f32 %v2307, %v2748
        %v2839 = vsub.f32 %v2310, %v2751
        %v2840 = vsub.f32 %v2354, %v2754
        %v2841 = vsub.f32 %v2357, %v2757
        %v2842 = vsub.f32 %v2401, %v2760
        %v2843 = vsub.f32 %v2404, %v2763
        %v2844 = vsub.f32 %v2448, %v2766
        %v2845 = vsub.f32 %v2451, %v2769
        %v2846 = vsub.f32 %v2495, %v2772
        %v2847 = vsub.f32 %v2498, %v2775
        %v2848 = vsub.f32 %v2542, %v2778
        %v2849 = vsub.f32 %v2545, %v2781
        %v2850 = vsub.f32 %v2589, %v2784
        %v2851 = vsub.f32 %v2592, %v2787
        %v2852 = vmul.f32 %v2788, 1.442695
        %v2853 = vpow.pop %v2852
        %v2854 = vmul.f32 %v2789, 1.442695
        %v2855 = vpow.pop %v2854
        %v2856 = vmul.f32 %v2790, 1.442695
        %v2857 = vpow.pop %v2856
        %v2858 = vmul.f32 %v2791, 1.442695
        %v2859 = vpow.pop %v2858
        %v2860 = vmul.f32 %v2792, 1.442695
        %v2861 = vpow.pop %v2860
        %v2862 = vmul.f32 %v2793, 1.442695
        %v2863 = vpow.pop %v2862
        %v2864 = vmul.f32 %v2794, 1.442695
        %v2865 = vpow.pop %v2864
        %v2866 = vmul.f32 %v2795, 1.442695
        %v2867 = vpow.pop %v2866
        %v2868 = vmul.f32 %v2796, 1.442695
        %v2869 = vpow.pop %v2868
        %v2870 = vmul.f32 %v2797, 1.442695
        %v2871 = vpow.pop %v2870
        %v2872 = vmul.f32 %v2798, 1.442695
        %v2873 = vpow.pop %v2872
        %v2874 = vmul.f32 %v2799, 1.442695
        %v2875 = vpow.pop %v2874
        %v2876 = vmul.f32 %v2800, 1.442695
        %v2877 = vpow.pop %v2876
        %v2878 = vmul.f32 %v2801, 1.442695
        %v2879 = vpow.pop %v2878
        %v2880 = vmul.f32 %v2802, 1.442695
        %v2881 = vpow.pop %v2880
        %v2882 = vmul.f32 %v2803, 1.442695
        %v2883 = vpow.pop %v2882
        %v2884 = vmul.f32 %v2804, 1.442695
        %v2885 = vpow.pop %v2884
        %v2886 = vmul.f32 %v2805, 1.442695
        %v2887 = vpow.pop %v2886
        %v2888 = vmul.f32 %v2806, 1.442695
        %v2889 = vpow.pop %v2888
        %v2890 = vmul.f32 %v2807, 1.442695
        %v2891 = vpow.pop %v2890
        %v2892 = vmul.f32 %v2808, 1.442695
        %v2893 = vpow.pop %v2892
        %v2894 = vmul.f32 %v2809, 1.442695
        %v2895 = vpow.pop %v2894
        %v2896 = vmul.f32 %v2810, 1.442695
        %v2897 = vpow.pop %v2896
        %v2898 = vmul.f32 %v2811, 1.442695
        %v2899 = vpow.pop %v2898
        %v2900 = vmul.f32 %v2812, 1.442695
        %v2901 = vpow.pop %v2900
        %v2902 = vmul.f32 %v2813, 1.442695
        %v2903 = vpow.pop %v2902
        %v2904 = vmul.f32 %v2814, 1.442695
        %v2905 = vpow.pop %v2904
        %v2906 = vmul.f32 %v2815, 1.442695
        %v2907 = vpow.pop %v2906
        %v2908 = vmul.f32 %v2816, 1.442695
        %v2909 = vpow.pop %v2908
        %v2910 = vmul.f32 %v2817, 1.442695
        %v2911 = vpow.pop %v2910
        %v2912 = vmul.f32 %v2818, 1.442695
        %v2913 = vpow.pop %v2912
        %v2914 = vmul.f32 %v2819, 1.442695
        %v2915 = vpow.pop %v2914
        %v2916 = vmul.f32 %v2820, 1.442695
        %v2917 = vpow.pop %v2916
        %v2918 = vmul.f32 %v2821, 1.442695
        %v2919 = vpow.pop %v2918
        %v2920 = vmul.f32 %v2822, 1.442695
        %v2921 = vpow.pop %v2920
        %v2922 = vmul.f32 %v2823, 1.442695
        %v2923 = vpow.pop %v2922
        %v2924 = vmul.f32 %v2824, 1.442695
        %v2925 = vpow.pop %v2924
        %v2926 = vmul.f32 %v2825, 1.442695
        %v2927 = vpow.pop %v2926
        %v2928 = vmul.f32 %v2826, 1.442695
        %v2929 = vpow.pop %v2928
        %v2930 = vmul.f32 %v2827, 1.442695
        %v2931 = vpow.pop %v2930
        %v2932 = vmul.f32 %v2828, 1.442695
        %v2933 = vpow.pop %v2932
        %v2934 = vmul.f32 %v2829, 1.442695
        %v2935 = vpow.pop %v2934
        %v2936 = vmul.f32 %v2830, 1.442695
        %v2937 = vpow.pop %v2936
        %v2938 = vmul.f32 %v2831, 1.442695
        %v2939 = vpow.pop %v2938
        %v2940 = vmul.f32 %v2832, 1.442695
        %v2941 = vpow.pop %v2940
        %v2942 = vmul.f32 %v2833, 1.442695
        %v2943 = vpow.pop %v2942
        %v2944 = vmul.f32 %v2834, 1.442695
        %v2945 = vpow.pop %v2944
        %v2946 = vmul.f32 %v2835, 1.442695
        %v2947 = vpow.pop %v2946
        %v2948 = vmul.f32 %v2836, 1.442695
        %v2949 = vpow.pop %v2948
        %v2950 = vmul.f32 %v2837, 1.442695
        %v2951 = vpow.pop %v2950
        %v2952 = vmul.f32 %v2838, 1.442695
        %v2953 = vpow.pop %v2952
        %v2954 = vmul.f32 %v2839, 1.442695
        %v2955 = vpow.pop %v2954
        %v2956 = vmul.f32 %v2840, 1.442695
        %v2957 = vpow.pop %v2956
        %v2958 = vmul.f32 %v2841, 1.442695
        %v2959 = vpow.pop %v2958
        %v2960 = vmul.f32 %v2842, 1.442695
        %v2961 = vpow.pop %v2960
        %v2962 = vmul.f32 %v2843, 1.442695
        %v2963 = vpow.pop %v2962
        %v2964 = vmul.f32 %v2844, 1.442695
        %v2965 = vpow.pop %v2964
        %v2966 = vmul.f32 %v2845, 1.442695
        %v2967 = vpow.pop %v2966
        %v2968 = vmul.f32 %v2846, 1.442695
        %v2969 = vpow.pop %v2968
        %v2970 = vmul.f32 %v2847, 1.442695
        %v2971 = vpow.pop %v2970
        %v2972 = vmul.f32 %v2848, 1.442695
        %v2973 = vpow.pop %v2972
        %v2974 = vmul.f32 %v2849, 1.442695
        %v2975 = vpow.pop %v2974
        %v2976 = vmul.f32 %v2850, 1.442695
        %v2977 = vpow.pop %v2976
        %v2978 = vmul.f32 %v2851, 1.442695
        %v2979 = vpow.pop %v2978
        %v2980 = vsel %vm2595, %v2853, 0.0
        %2981 = vadd.xlane.f32.xlu0 %v2980
        %v2982 = vpop.xlane.xlu0 %2981
        %v2983 = vsel %vm2595, %v2855, 0.0
        %2984 = vadd.xlane.f32.xlu0 %v2983
        %v2985 = vpop.xlane.xlu0 %2984
        %v2986 = vsel %vm2595, %v2857, 0.0
        %2987 = vadd.xlane.f32.xlu0 %v2986
        %v2988 = vpop.xlane.xlu0 %2987
        %v2989 = vsel %vm2595, %v2859, 0.0
        %2990 = vadd.xlane.f32.xlu0 %v2989
        %v2991 = vpop.xlane.xlu0 %2990
        %v2992 = vsel %vm2595, %v2861, 0.0
        %2993 = vadd.xlane.f32.xlu0 %v2992
        %v2994 = vpop.xlane.xlu0 %2993
        %v2995 = vsel %vm2595, %v2863, 0.0
        %2996 = vadd.xlane.f32.xlu0 %v2995
        %v2997 = vpop.xlane.xlu0 %2996
        %v2998 = vsel %vm2595, %v2865, 0.0
        %2999 = vadd.xlane.f32.xlu0 %v2998
        %v3000 = vpop.xlane.xlu0 %2999
        %v3001 = vsel %vm2595, %v2867, 0.0
        %3002 = vadd.xlane.f32.xlu0 %v3001
        %v3003 = vpop.xlane.xlu0 %3002
        %v3004 = vsel %vm2595, %v2869, 0.0
        %3005 = vadd.xlane.f32.xlu0 %v3004
        %v3006 = vpop.xlane.xlu0 %3005
        %v3007 = vsel %vm2595, %v2871, 0.0
        %3008 = vadd.xlane.f32.xlu0 %v3007
        %v3009 = vpop.xlane.xlu0 %3008
        %v3010 = vsel %vm2595, %v2873, 0.0
        %3011 = vadd.xlane.f32.xlu0 %v3010
        %v3012 = vpop.xlane.xlu0 %3011
        %v3013 = vsel %vm2595, %v2875, 0.0
        %3014 = vadd.xlane.f32.xlu0 %v3013
        %v3015 = vpop.xlane.xlu0 %3014
        %v3016 = vsel %vm2595, %v2877, 0.0
        %3017 = vadd.xlane.f32.xlu0 %v3016
        %v3018 = vpop.xlane.xlu0 %3017
        %v3019 = vsel %vm2595, %v2879, 0.0
        %3020 = vadd.xlane.f32.xlu0 %v3019
        %v3021 = vpop.xlane.xlu0 %3020
        %v3022 = vsel %vm2595, %v2881, 0.0
        %3023 = vadd.xlane.f32.xlu0 %v3022
        %v3024 = vpop.xlane.xlu0 %3023
        %v3025 = vsel %vm2595, %v2883, 0.0
        %3026 = vadd.xlane.f32.xlu0 %v3025
        %v3027 = vpop.xlane.xlu0 %3026
        %v3028 = vsel %vm2595, %v2885, 0.0
        %3029 = vadd.xlane.f32.xlu0 %v3028
        %v3030 = vpop.xlane.xlu0 %3029
        %v3031 = vsel %vm2595, %v2887, 0.0
        %3032 = vadd.xlane.f32.xlu0 %v3031
        %v3033 = vpop.xlane.xlu0 %3032
        %v3034 = vsel %vm2595, %v2889, 0.0
        %3035 = vadd.xlane.f32.xlu0 %v3034
        %v3036 = vpop.xlane.xlu0 %3035
        %v3037 = vsel %vm2595, %v2891, 0.0
        %3038 = vadd.xlane.f32.xlu0 %v3037
        %v3039 = vpop.xlane.xlu0 %3038
        %v3040 = vsel %vm2595, %v2893, 0.0
        %3041 = vadd.xlane.f32.xlu0 %v3040
        %v3042 = vpop.xlane.xlu0 %3041
        %v3043 = vsel %vm2595, %v2895, 0.0
        %3044 = vadd.xlane.f32.xlu0 %v3043
        %v3045 = vpop.xlane.xlu0 %3044
        %v3046 = vsel %vm2595, %v2897, 0.0
        %3047 = vadd.xlane.f32.xlu0 %v3046
        %v3048 = vpop.xlane.xlu0 %3047
        %v3049 = vsel %vm2595, %v2899, 0.0
        %3050 = vadd.xlane.f32.xlu0 %v3049
        %v3051 = vpop.xlane.xlu0 %3050
        %v3052 = vsel %vm2595, %v2901, 0.0
        %3053 = vadd.xlane.f32.xlu0 %v3052
        %v3054 = vpop.xlane.xlu0 %3053
        %v3055 = vsel %vm2595, %v2903, 0.0
        %3056 = vadd.xlane.f32.xlu0 %v3055
        %v3057 = vpop.xlane.xlu0 %3056
        %v3058 = vsel %vm2595, %v2905, 0.0
        %3059 = vadd.xlane.f32.xlu0 %v3058
        %v3060 = vpop.xlane.xlu0 %3059
        %v3061 = vsel %vm2595, %v2907, 0.0
        %3062 = vadd.xlane.f32.xlu0 %v3061
        %v3063 = vpop.xlane.xlu0 %3062
        %v3064 = vsel %vm2595, %v2909, 0.0
        %3065 = vadd.xlane.f32.xlu0 %v3064
        %v3066 = vpop.xlane.xlu0 %3065
        %v3067 = vsel %vm2595, %v2911, 0.0
        %3068 = vadd.xlane.f32.xlu0 %v3067
        %v3069 = vpop.xlane.xlu0 %3068
        %v3070 = vsel %vm2595, %v2913, 0.0
        %3071 = vadd.xlane.f32.xlu0 %v3070
        %v3072 = vpop.xlane.xlu0 %3071
        %v3073 = vsel %vm2595, %v2915, 0.0
        %3074 = vadd.xlane.f32.xlu0 %v3073
        %v3075 = vpop.xlane.xlu0 %3074
        %v3076 = vsel %vm2595, %v2917, 0.0
        %3077 = vadd.xlane.f32.xlu0 %v3076
        %v3078 = vpop.xlane.xlu0 %3077
        %v3079 = vsel %vm2595, %v2919, 0.0
        %3080 = vadd.xlane.f32.xlu0 %v3079
        %v3081 = vpop.xlane.xlu0 %3080
        %v3082 = vsel %vm2595, %v2921, 0.0
        %3083 = vadd.xlane.f32.xlu0 %v3082
        %v3084 = vpop.xlane.xlu0 %3083
        %v3085 = vsel %vm2595, %v2923, 0.0
        %3086 = vadd.xlane.f32.xlu0 %v3085
        %v3087 = vpop.xlane.xlu0 %3086
        %v3088 = vsel %vm2595, %v2925, 0.0
        %3089 = vadd.xlane.f32.xlu0 %v3088
        %v3090 = vpop.xlane.xlu0 %3089
        %v3091 = vsel %vm2595, %v2927, 0.0
        %3092 = vadd.xlane.f32.xlu0 %v3091
        %v3093 = vpop.xlane.xlu0 %3092
        %v3094 = vsel %vm2595, %v2929, 0.0
        %3095 = vadd.xlane.f32.xlu0 %v3094
        %v3096 = vpop.xlane.xlu0 %3095
        %v3097 = vsel %vm2595, %v2931, 0.0
        %3098 = vadd.xlane.f32.xlu0 %v3097
        %v3099 = vpop.xlane.xlu0 %3098
        %v3100 = vsel %vm2595, %v2933, 0.0
        %3101 = vadd.xlane.f32.xlu0 %v3100
        %v3102 = vpop.xlane.xlu0 %3101
        %v3103 = vsel %vm2595, %v2935, 0.0
        %3104 = vadd.xlane.f32.xlu0 %v3103
        %v3105 = vpop.xlane.xlu0 %3104
        %v3106 = vsel %vm2595, %v2937, 0.0
        %3107 = vadd.xlane.f32.xlu0 %v3106
        %v3108 = vpop.xlane.xlu0 %3107
        %v3109 = vsel %vm2595, %v2939, 0.0
        %3110 = vadd.xlane.f32.xlu0 %v3109
        %v3111 = vpop.xlane.xlu0 %3110
        %v3112 = vsel %vm2595, %v2941, 0.0
        %3113 = vadd.xlane.f32.xlu0 %v3112
        %v3114 = vpop.xlane.xlu0 %3113
        %v3115 = vsel %vm2595, %v2943, 0.0
        %3116 = vadd.xlane.f32.xlu0 %v3115
        %v3117 = vpop.xlane.xlu0 %3116
        %v3118 = vsel %vm2595, %v2945, 0.0
        %3119 = vadd.xlane.f32.xlu0 %v3118
        %v3120 = vpop.xlane.xlu0 %3119
        %v3121 = vsel %vm2595, %v2947, 0.0
        %3122 = vadd.xlane.f32.xlu0 %v3121
        %v3123 = vpop.xlane.xlu0 %3122
        %v3124 = vsel %vm2595, %v2949, 0.0
        %3125 = vadd.xlane.f32.xlu0 %v3124
        %v3126 = vpop.xlane.xlu0 %3125
        %v3127 = vsel %vm2595, %v2951, 0.0
        %3128 = vadd.xlane.f32.xlu0 %v3127
        %v3129 = vpop.xlane.xlu0 %3128
        %v3130 = vsel %vm2595, %v2953, 0.0
        %3131 = vadd.xlane.f32.xlu0 %v3130
        %v3132 = vpop.xlane.xlu0 %3131
        %v3133 = vsel %vm2595, %v2955, 0.0
        %3134 = vadd.xlane.f32.xlu0 %v3133
        %v3135 = vpop.xlane.xlu0 %3134
        %v3136 = vsel %vm2595, %v2957, 0.0
        %3137 = vadd.xlane.f32.xlu0 %v3136
        %v3138 = vpop.xlane.xlu0 %3137
        %v3139 = vsel %vm2595, %v2959, 0.0
        %3140 = vadd.xlane.f32.xlu0 %v3139
        %v3141 = vpop.xlane.xlu0 %3140
        %v3142 = vsel %vm2595, %v2961, 0.0
        %3143 = vadd.xlane.f32.xlu0 %v3142
        %v3144 = vpop.xlane.xlu0 %3143
        %v3145 = vsel %vm2595, %v2963, 0.0
        %3146 = vadd.xlane.f32.xlu0 %v3145
        %v3147 = vpop.xlane.xlu0 %3146
        %v3148 = vsel %vm2595, %v2965, 0.0
        %3149 = vadd.xlane.f32.xlu0 %v3148
        %v3150 = vpop.xlane.xlu0 %3149
        %v3151 = vsel %vm2595, %v2967, 0.0
        %3152 = vadd.xlane.f32.xlu0 %v3151
        %v3153 = vpop.xlane.xlu0 %3152
        %v3154 = vsel %vm2595, %v2969, 0.0
        %3155 = vadd.xlane.f32.xlu0 %v3154
        %v3156 = vpop.xlane.xlu0 %3155
        %v3157 = vsel %vm2595, %v2971, 0.0
        %3158 = vadd.xlane.f32.xlu0 %v3157
        %v3159 = vpop.xlane.xlu0 %3158
        %v3160 = vsel %vm2595, %v2973, 0.0
        %3161 = vadd.xlane.f32.xlu0 %v3160
        %v3162 = vpop.xlane.xlu0 %3161
        %v3163 = vsel %vm2595, %v2975, 0.0
        %3164 = vadd.xlane.f32.xlu0 %v3163
        %v3165 = vpop.xlane.xlu0 %3164
        %v3166 = vsel %vm2595, %v2977, 0.0
        %3167 = vadd.xlane.f32.xlu0 %v3166
        %v3168 = vpop.xlane.xlu0 %3167
        %v3169 = vsel %vm2595, %v2979, 0.0
        %3170 = vadd.xlane.f32.xlu0 %v3169
        %v3171 = vpop.xlane.xlu0 %3170
        %v3172 = vrcp.pop %v2982
        %v3173 = vrcp.pop %v2985
        %v3174 = vrcp.pop %v2988
        %v3175 = vrcp.pop %v2991
        %v3176 = vrcp.pop %v2994
        %v3177 = vrcp.pop %v2997
        %v3178 = vrcp.pop %v3000
        %v3179 = vrcp.pop %v3003
        %v3180 = vrcp.pop %v3006
        %v3181 = vrcp.pop %v3009
        %v3182 = vrcp.pop %v3012
        %v3183 = vrcp.pop %v3015
        %v3184 = vrcp.pop %v3018
        %v3185 = vrcp.pop %v3021
        %v3186 = vrcp.pop %v3024
        %v3187 = vrcp.pop %v3027
        %v3188 = vrcp.pop %v3030
        %v3189 = vrcp.pop %v3033
        %v3190 = vrcp.pop %v3036
        %v3191 = vrcp.pop %v3039
        %v3192 = vrcp.pop %v3042
        %v3193 = vrcp.pop %v3045
        %v3194 = vrcp.pop %v3048
        %v3195 = vrcp.pop %v3051
        %v3196 = vrcp.pop %v3054
        %v3197 = vrcp.pop %v3057
        %v3198 = vrcp.pop %v3060
        %v3199 = vrcp.pop %v3063
        %v3200 = vrcp.pop %v3066
        %v3201 = vrcp.pop %v3069
        %v3202 = vrcp.pop %v3072
        %v3203 = vrcp.pop %v3075
        %v3204 = vrcp.pop %v3078
        %v3205 = vrcp.pop %v3081
        %v3206 = vrcp.pop %v3084
        %v3207 = vrcp.pop %v3087
        %v3208 = vrcp.pop %v3090
        %v3209 = vrcp.pop %v3093
        %v3210 = vrcp.pop %v3096
        %v3211 = vrcp.pop %v3099
        %v3212 = vrcp.pop %v3102
        %v3213 = vrcp.pop %v3105
        %v3214 = vrcp.pop %v3108
        %v3215 = vrcp.pop %v3111
        %v3216 = vrcp.pop %v3114
        %v3217 = vrcp.pop %v3117
        %v3218 = vrcp.pop %v3120
        %v3219 = vrcp.pop %v3123
        %v3220 = vrcp.pop %v3126
        %v3221 = vrcp.pop %v3129
        %v3222 = vrcp.pop %v3132
        %v3223 = vrcp.pop %v3135
        %v3224 = vrcp.pop %v3138
        %v3225 = vrcp.pop %v3141
        %v3226 = vrcp.pop %v3144
        %v3227 = vrcp.pop %v3147
        %v3228 = vrcp.pop %v3150
        %v3229 = vrcp.pop %v3153
        %v3230 = vrcp.pop %v3156
        %v3231 = vrcp.pop %v3159
        %v3232 = vrcp.pop %v3162
        %v3233 = vrcp.pop %v3165
        %v3234 = vrcp.pop %v3168
        %v3235 = vrcp.pop %v3171
        %v3236 = vmul.f32 %v2853, %v3172
        %v3237 = vmul.f32 %v2855, %v3173
        %v3238 = vmul.f32 %v2857, %v3174
        %v3239 = vmul.f32 %v2859, %v3175
        %v3240 = vmul.f32 %v2861, %v3176
        %v3241 = vmul.f32 %v2863, %v3177
        %v3242 = vmul.f32 %v2865, %v3178
        %v3243 = vmul.f32 %v2867, %v3179
        %v3244 = vmul.f32 %v2869, %v3180
        %v3245 = vmul.f32 %v2871, %v3181
        %v3246 = vmul.f32 %v2873, %v3182
        %v3247 = vmul.f32 %v2875, %v3183
        %v3248 = vmul.f32 %v2877, %v3184
        %v3249 = vmul.f32 %v2879, %v3185
        %v3250 = vmul.f32 %v2881, %v3186
        %v3251 = vmul.f32 %v2883, %v3187
        %v3252 = vmul.f32 %v2885, %v3188
        %v3253 = vmul.f32 %v2887, %v3189
        %v3254 = vmul.f32 %v2889, %v3190
        %v3255 = vmul.f32 %v2891, %v3191
        %v3256 = vmul.f32 %v2893, %v3192
        %v3257 = vmul.f32 %v2895, %v3193
        %v3258 = vmul.f32 %v2897, %v3194
        %v3259 = vmul.f32 %v2899, %v3195
        %v3260 = vmul.f32 %v2901, %v3196
        %v3261 = vmul.f32 %v2903, %v3197
        %v3262 = vmul.f32 %v2905, %v3198
        %v3263 = vmul.f32 %v2907, %v3199
        %v3264 = vmul.f32 %v2909, %v3200
        %v3265 = vmul.f32 %v2911, %v3201
        %v3266 = vmul.f32 %v2913, %v3202
        %v3267 = vmul.f32 %v2915, %v3203
        %v3268 = vmul.f32 %v2917, %v3204
        %v3269 = vmul.f32 %v2919, %v3205
        %v3270 = vmul.f32 %v2921, %v3206
        %v3271 = vmul.f32 %v2923, %v3207
        %v3272 = vmul.f32 %v2925, %v3208
        %v3273 = vmul.f32 %v2927, %v3209
        %v3274 = vmul.f32 %v2929, %v3210
        %v3275 = vmul.f32 %v2931, %v3211
        %v3276 = vmul.f32 %v2933, %v3212
        %v3277 = vmul.f32 %v2935, %v3213
        %v3278 = vmul.f32 %v2937, %v3214
        %v3279 = vmul.f32 %v2939, %v3215
        %v3280 = vmul.f32 %v2941, %v3216
        %v3281 = vmul.f32 %v2943, %v3217
        %v3282 = vmul.f32 %v2945, %v3218
        %v3283 = vmul.f32 %v2947, %v3219
        %v3284 = vmul.f32 %v2949, %v3220
        %v3285 = vmul.f32 %v2951, %v3221
        %v3286 = vmul.f32 %v2953, %v3222
        %v3287 = vmul.f32 %v2955, %v3223
        %v3288 = vmul.f32 %v2957, %v3224
        %v3289 = vmul.f32 %v2959, %v3225
        %v3290 = vmul.f32 %v2961, %v3226
        %v3291 = vmul.f32 %v2963, %v3227
        %v3292 = vmul.f32 %v2965, %v3228
        %v3293 = vmul.f32 %v2967, %v3229
        %v3294 = vmul.f32 %v2969, %v3230
        %v3295 = vmul.f32 %v2971, %v3231
        %v3296 = vmul.f32 %v2973, %v3232
        %v3297 = vmul.f32 %v2975, %v3233
        %v3298 = vmul.f32 %v2977, %v3234
        %v3299 = vmul.f32 %v2979, %v3235
        %v3300 = vpack.c.bf16 %v3237, %v3236
        %v3301 = vpack.c.bf16 %v3239, %v3238
        %v3302 = vpack.c.bf16 %v3241, %v3240
        %v3303 = vpack.c.bf16 %v3243, %v3242
        %v3304 = vpack.c.bf16 %v3245, %v3244
        %v3305 = vpack.c.bf16 %v3247, %v3246
        %v3306 = vpack.c.bf16 %v3249, %v3248
        %v3307 = vpack.c.bf16 %v3251, %v3250
        %v3308 = vpack.c.bf16 %v3253, %v3252
        %v3309 = vpack.c.bf16 %v3255, %v3254
        %v3310 = vpack.c.bf16 %v3257, %v3256
        %v3311 = vpack.c.bf16 %v3259, %v3258
        %v3312 = vpack.c.bf16 %v3261, %v3260
        %v3313 = vpack.c.bf16 %v3263, %v3262
        %v3314 = vpack.c.bf16 %v3265, %v3264
        %v3315 = vpack.c.bf16 %v3267, %v3266
        %v3316 = vpack.c.bf16 %v3269, %v3268
        %v3317 = vpack.c.bf16 %v3271, %v3270
        %v3318 = vpack.c.bf16 %v3273, %v3272
        %v3319 = vpack.c.bf16 %v3275, %v3274
        %v3320 = vpack.c.bf16 %v3277, %v3276
        %v3321 = vpack.c.bf16 %v3279, %v3278
        %v3322 = vpack.c.bf16 %v3281, %v3280
        %v3323 = vpack.c.bf16 %v3283, %v3282
        %v3324 = vpack.c.bf16 %v3285, %v3284
        %v3325 = vpack.c.bf16 %v3287, %v3286
        %v3326 = vpack.c.bf16 %v3289, %v3288
        %v3327 = vpack.c.bf16 %v3291, %v3290
        %v3328 = vpack.c.bf16 %v3293, %v3292
        %v3329 = vpack.c.bf16 %v3295, %v3294
        %v3330 = vpack.c.bf16 %v3297, %v3296
        %v3331 = vpack.c.bf16 %v3299, %v3298
        %v3333 = vsel %vm2595, %v3300, 0
        %3335 = vmatprep.subr.bf16.mxu0 0
        %3336 = vmatpush1.bf16.msra.mxu0 %v876
        %3337 = vmatprep.subr.bf16.mxu0 0
        %3338 = vmatpush1.bf16.msra.mxu0 0
        %3339 = vmatprep.subr.bf16.mxu0 0
        %3340 = vmatpush1.bf16.msra.mxu0 0
        %3341 = vmatprep.subr.bf16.mxu0 0
        %3342 = vmatpush1.bf16.msra.mxu0 0
        %3343 = vmatprep.subr.bf16.mxu0 0
        %3344 = vmatpush1.bf16.msra.mxu0 0
        %3345 = vmatprep.subr.bf16.mxu0 0
        %3346 = vmatpush1.bf16.msra.mxu0 0
        %3347 = vmatprep.subr.bf16.mxu0 0
        %3348 = vmatpush1.bf16.msra.mxu0 0
        %3349 = vmatprep.subr.bf16.mxu0 0
        %3350 = vmatpush1.bf16.msra.mxu0 0
        %3351 = vmatprep.subr.bf16.mxu0 0
        %3352 = vmatpush1.bf16.msra.mxu0 0
        %3353 = vmatprep.subr.bf16.mxu0 0
        %3354 = vmatpush1.bf16.msra.mxu0 0
        %3355 = vmatprep.subr.bf16.mxu0 0
        %3356 = vmatpush1.bf16.msra.mxu0 0
        %3357 = vmatprep.subr.bf16.mxu0 0
        %3358 = vmatpush1.bf16.msra.mxu0 0
        %3359 = vmatprep.subr.bf16.mxu0 0
        %3360 = vmatpush1.bf16.msra.mxu0 0
        %3361 = vmatprep.subr.bf16.mxu0 0
        %3362 = vmatpush1.bf16.msra.mxu0 0
        %3363 = vmatprep.subr.bf16.mxu0 0
        %3364 = vmatpush1.bf16.msra.mxu0 0
        %3365 = vmatprep.subr.bf16.mxu0 0
        %3366 = vmatpush1.bf16.msra.mxu0 0
        %3367 = vmatprep.mubr.bf16.mxu0 0
        %3368 = vmatmul.mubr.bf16.gmra.mrb[0].mxu0 %v3333
        %v3369 = vpop.f32.mrb[0].mxu0
        %v3370 = vadd.f32 0.0, %v3369
        %v3371 = vpop.f32.mrb[0].mxu0
        %v3372 = vpop.f32.mrb[0].mxu0
        %v3373 = vadd.f32 0.0, %v3372
        %v3374 = vpop.f32.mrb[0].mxu0
        %3375 = vdwg.mxu0
        %v3377 = vsel %vm2595, %v3301, 0
        %3379 = vmatprep.subr.bf16.mxu0 0
        %3380 = vmatpush1.bf16.msra.mxu0 %v879
        %3381 = vmatprep.subr.bf16.mxu0 0
        %3382 = vmatpush1.bf16.msra.mxu0 0
        %3383 = vmatprep.subr.bf16.mxu0 0
        %3384 = vmatpush1.bf16.msra.mxu0 0
        %3385 = vmatprep.subr.bf16.mxu0 0
        %3386 = vmatpush1.bf16.msra.mxu0 0
        %3387 = vmatprep.subr.bf16.mxu0 0
        %3388 = vmatpush1.bf16.msra.mxu0 0
        %3389 = vmatprep.subr.bf16.mxu0 0
        %3390 = vmatpush1.bf16.msra.mxu0 0
        %3391 = vmatprep.subr.bf16.mxu0 0
        %3392 = vmatpush1.bf16.msra.mxu0 0
        %3393 = vmatprep.subr.bf16.mxu0 0
        %3394 = vmatpush1.bf16.msra.mxu0 0
        %3395 = vmatprep.subr.bf16.mxu0 0
        %3396 = vmatpush1.bf16.msra.mxu0 0
        %3397 = vmatprep.subr.bf16.mxu0 0
        %3398 = vmatpush1.bf16.msra.mxu0 0
        %3399 = vmatprep.subr.bf16.mxu0 0
        %3400 = vmatpush1.bf16.msra.mxu0 0
        %3401 = vmatprep.subr.bf16.mxu0 0
        %3402 = vmatpush1.bf16.msra.mxu0 0
        %3403 = vmatprep.subr.bf16.mxu0 0
        %3404 = vmatpush1.bf16.msra.mxu0 0
        %3405 = vmatprep.subr.bf16.mxu0 0
        %3406 = vmatpush1.bf16.msra.mxu0 0
        %3407 = vmatprep.subr.bf16.mxu0 0
        %3408 = vmatpush1.bf16.msra.mxu0 0
        %3409 = vmatprep.subr.bf16.mxu0 0
        %3410 = vmatpush1.bf16.msra.mxu0 0
        %3411 = vmatprep.mubr.bf16.mxu0 0
        %3412 = vmatmul.mubr.bf16.gmra.mrb[0].mxu0 %v3377
        %v3413 = vpop.f32.mrb[0].mxu0
        %v3414 = vadd.f32 0.0, %v3413
        %v3415 = vpop.f32.mrb[0].mxu0
        %v3416 = vpop.f32.mrb[0].mxu0
        %v3417 = vadd.f32 0.0, %v3416
        %v3418 = vpop.f32.mrb[0].mxu0
        %3419 = vdwg.mxu0
        %v3421 = vsel %vm2595, %v3302, 0
        %3423 = vmatprep.subr.bf16.mxu0 0
        %3424 = vmatpush1.bf16.msra.mxu0 %v882
        %3425 = vmatprep.subr.bf16.mxu0 0
        %3426 = vmatpush1.bf16.msra.mxu0 0
        %3427 = vmatprep.subr.bf16.mxu0 0
        %3428 = vmatpush1.bf16.msra.mxu0 0
        %3429 = vmatprep.subr.bf16.mxu0 0
        %3430 = vmatpush1.bf16.msra.mxu0 0
        %3431 = vmatprep.subr.bf16.mxu0 0
        %3432 = vmatpush1.bf16.msra.mxu0 0
        %3433 = vmatprep.subr.bf16.mxu0 0
        %3434 = vmatpush1.bf16.msra.mxu0 0
        %3435 = vmatprep.subr.bf16.mxu0 0
        %3436 = vmatpush1.bf16.msra.mxu0 0
        %3437 = vmatprep.subr.bf16.mxu0 0
        %3438 = vmatpush1.bf16.msra.mxu0 0
        %3439 = vmatprep.subr.bf16.mxu0 0
        %3440 = vmatpush1.bf16.msra.mxu0 0
        %3441 = vmatprep.subr.bf16.mxu0 0
        %3442 = vmatpush1.bf16.msra.mxu0 0
        %3443 = vmatprep.subr.bf16.mxu0 0
        %3444 = vmatpush1.bf16.msra.mxu0 0
        %3445 = vmatprep.subr.bf16.mxu0 0
        %3446 = vmatpush1.bf16.msra.mxu0 0
        %3447 = vmatprep.subr.bf16.mxu0 0
        %3448 = vmatpush1.bf16.msra.mxu0 0
        %3449 = vmatprep.subr.bf16.mxu0 0
        %3450 = vmatpush1.bf16.msra.mxu0 0
        %3451 = vmatprep.subr.bf16.mxu0 0
        %3452 = vmatpush1.bf16.msra.mxu0 0
        %3453 = vmatprep.subr.bf16.mxu0 0
        %3454 = vmatpush1.bf16.msra.mxu0 0
        %3455 = vmatprep.mubr.bf16.mxu0 0
        %3456 = vmatmul.mubr.bf16.gmra.mrb[0].mxu0 %v3421
        %v3457 = vpop.f32.mrb[0].mxu0
        %v3458 = vadd.f32 0.0, %v3457
        %v3459 = vpop.f32.mrb[0].mxu0
        %v3460 = vpop.f32.mrb[0].mxu0
        %v3461 = vadd.f32 0.0, %v3460
        %v3462 = vpop.f32.mrb[0].mxu0
        %3463 = vdwg.mxu0
        %v3465 = vsel %vm2595, %v3303, 0
        %3467 = vmatprep.subr.bf16.mxu0 0
        %3468 = vmatpush1.bf16.msra.mxu0 %v885
        %3469 = vmatprep.subr.bf16.mxu0 0
        %3470 = vmatpush1.bf16.msra.mxu0 0
        %3471 = vmatprep.subr.bf16.mxu0 0
        %3472 = vmatpush1.bf16.msra.mxu0 0
        %3473 = vmatprep.subr.bf16.mxu0 0
        %3474 = vmatpush1.bf16.msra.mxu0 0
        %3475 = vmatprep.subr.bf16.mxu0 0
        %3476 = vmatpush1.bf16.msra.mxu0 0
        %3477 = vmatprep.subr.bf16.mxu0 0
        %3478 = vmatpush1.bf16.msra.mxu0 0
        %3479 = vmatprep.subr.bf16.mxu0 0
        %3480 = vmatpush1.bf16.msra.mxu0 0
        %3481 = vmatprep.subr.bf16.mxu0 0
        %3482 = vmatpush1.bf16.msra.mxu0 0
        %3483 = vmatprep.subr.bf16.mxu0 0
        %3484 = vmatpush1.bf16.msra.mxu0 0
        %3485 = vmatprep.subr.bf16.mxu0 0
        %3486 = vmatpush1.bf16.msra.mxu0 0
        %3487 = vmatprep.subr.bf16.mxu0 0
        %3488 = vmatpush1.bf16.msra.mxu0 0
        %3489 = vmatprep.subr.bf16.mxu0 0
        %3490 = vmatpush1.bf16.msra.mxu0 0
        %3491 = vmatprep.subr.bf16.mxu0 0
        %3492 = vmatpush1.bf16.msra.mxu0 0
        %3493 = vmatprep.subr.bf16.mxu0 0
        %3494 = vmatpush1.bf16.msra.mxu0 0
        %3495 = vmatprep.subr.bf16.mxu0 0
        %3496 = vmatpush1.bf16.msra.mxu0 0
        %3497 = vmatprep.subr.bf16.mxu0 0
        %3498 = vmatpush1.bf16.msra.mxu0 0
        %3499 = vmatprep.mubr.bf16.mxu0 0
        %3500 = vmatmul.mubr.bf16.gmra.mrb[0].mxu0 %v3465
        %v3501 = vpop.f32.mrb[0].mxu0
        %v3502 = vadd.f32 0.0, %v3501
        %v3503 = vpop.f32.mrb[0].mxu0
        %v3504 = vpop.f32.mrb[0].mxu0
        %v3505 = vadd.f32 0.0, %v3504
        %v3506 = vpop.f32.mrb[0].mxu0
        %3507 = vdwg.mxu0
        %v3509 = vsel %vm2595, %v3304, 0
        %3511 = vmatprep.subr.bf16.mxu0 0
        %3512 = vmatpush1.bf16.msra.mxu0 %v888
        %3513 = vmatprep.subr.bf16.mxu0 0
        %3514 = vmatpush1.bf16.msra.mxu0 0
        %3515 = vmatprep.subr.bf16.mxu0 0
        %3516 = vmatpush1.bf16.msra.mxu0 0
        %3517 = vmatprep.subr.bf16.mxu0 0
        %3518 = vmatpush1.bf16.msra.mxu0 0
        %3519 = vmatprep.subr.bf16.mxu0 0
        %3520 = vmatpush1.bf16.msra.mxu0 0
        %3521 = vmatprep.subr.bf16.mxu0 0
        %3522 = vmatpush1.bf16.msra.mxu0 0
        %3523 = vmatprep.subr.bf16.mxu0 0
        %3524 = vmatpush1.bf16.msra.mxu0 0
        %3525 = vmatprep.subr.bf16.mxu0 0
        %3526 = vmatpush1.bf16.msra.mxu0 0
        %3527 = vmatprep.subr.bf16.mxu0 0
        %3528 = vmatpush1.bf16.msra.mxu0 0
        %3529 = vmatprep.subr.bf16.mxu0 0
        %3530 = vmatpush1.bf16.msra.mxu0 0
        %3531 = vmatprep.subr.bf16.mxu0 0
        %3532 = vmatpush1.bf16.msra.mxu0 0
        %3533 = vmatprep.subr.bf16.mxu0 0
        %3534 = vmatpush1.bf16.msra.mxu0 0
        %3535 = vmatprep.subr.bf16.mxu0 0
        %3536 = vmatpush1.bf16.msra.mxu0 0
        %3537 = vmatprep.subr.bf16.mxu0 0
        %3538 = vmatpush1.bf16.msra.mxu0 0
        %3539 = vmatprep.subr.bf16.mxu0 0
        %3540 = vmatpush1.bf16.msra.mxu0 0
        %3541 = vmatprep.subr.bf16.mxu0 0
        %3542 = vmatpush1.bf16.msra.mxu0 0
        %3543 = vmatprep.mubr.bf16.mxu0 0
        %3544 = vmatmul.mubr.bf16.gmra.mrb[0].mxu0 %v3509
        %v3545 = vpop.f32.mrb[0].mxu0
        %v3546 = vadd.f32 0.0, %v3545
        %v3547 = vpop.f32.mrb[0].mxu0
        %v3548 = vpop.f32.mrb[0].mxu0
        %v3549 = vadd.f32 0.0, %v3548
        %v3550 = vpop.f32.mrb[0].mxu0
        %3551 = vdwg.mxu0
        %v3553 = vsel %vm2595, %v3305, 0
        %3555 = vmatprep.subr.bf16.mxu0 0
        %3556 = vmatpush1.bf16.msra.mxu0 %v891
        %3557 = vmatprep.subr.bf16.mxu0 0
        %3558 = vmatpush1.bf16.msra.mxu0 0
        %3559 = vmatprep.subr.bf16.mxu0 0
        %3560 = vmatpush1.bf16.msra.mxu0 0
        %3561 = vmatprep.subr.bf16.mxu0 0
        %3562 = vmatpush1.bf16.msra.mxu0 0
        %3563 = vmatprep.subr.bf16.mxu0 0
        %3564 = vmatpush1.bf16.msra.mxu0 0
        %3565 = vmatprep.subr.bf16.mxu0 0
        %3566 = vmatpush1.bf16.msra.mxu0 0
        %3567 = vmatprep.subr.bf16.mxu0 0
        %3568 = vmatpush1.bf16.msra.mxu0 0
        %3569 = vmatprep.subr.bf16.mxu0 0
        %3570 = vmatpush1.bf16.msra.mxu0 0
        %3571 = vmatprep.subr.bf16.mxu0 0
        %3572 = vmatpush1.bf16.msra.mxu0 0
        %3573 = vmatprep.subr.bf16.mxu0 0
        %3574 = vmatpush1.bf16.msra.mxu0 0
        %3575 = vmatprep.subr.bf16.mxu0 0
        %3576 = vmatpush1.bf16.msra.mxu0 0
        %3577 = vmatprep.subr.bf16.mxu0 0
        %3578 = vmatpush1.bf16.msra.mxu0 0
        %3579 = vmatprep.subr.bf16.mxu0 0
        %3580 = vmatpush1.bf16.msra.mxu0 0
        %3581 = vmatprep.subr.bf16.mxu0 0
        %3582 = vmatpush1.bf16.msra.mxu0 0
        %3583 = vmatprep.subr.bf16.mxu0 0
        %3584 = vmatpush1.bf16.msra.mxu0 0
        %3585 = vmatprep.subr.bf16.mxu0 0
        %3586 = vmatpush1.bf16.msra.mxu0 0
        %3587 = vmatprep.mubr.bf16.mxu0 0
        %3588 = vmatmul.mubr.bf16.gmra.mrb[0].mxu0 %v3553
        %v3589 = vpop.f32.mrb[0].mxu0
        %v3590 = vadd.f32 0.0, %v3589
        %v3591 = vpop.f32.mrb[0].mxu0
        %v3592 = vpop.f32.mrb[0].mxu0
        %v3593 = vadd.f32 0.0, %v3592
        %v3594 = vpop.f32.mrb[0].mxu0
        %3595 = vdwg.mxu0
        %v3597 = vsel %vm2595, %v3306, 0
        %3599 = vmatprep.subr.bf16.mxu0 0
        %3600 = vmatpush1.bf16.msra.mxu0 %v894
        %3601 = vmatprep.subr.bf16.mxu0 0
        %3602 = vmatpush1.bf16.msra.mxu0 0
        %3603 = vmatprep.subr.bf16.mxu0 0
        %3604 = vmatpush1.bf16.msra.mxu0 0
        %3605 = vmatprep.subr.bf16.mxu0 0
        %3606 = vmatpush1.bf16.msra.mxu0 0
        %3607 = vmatprep.subr.bf16.mxu0 0
        %3608 = vmatpush1.bf16.msra.mxu0 0
        %3609 = vmatprep.subr.bf16.mxu0 0
        %3610 = vmatpush1.bf16.msra.mxu0 0
        %3611 = vmatprep.subr.bf16.mxu0 0
        %3612 = vmatpush1.bf16.msra.mxu0 0
        %3613 = vmatprep.subr.bf16.mxu0 0
        %3614 = vmatpush1.bf16.msra.mxu0 0
        %3615 = vmatprep.subr.bf16.mxu0 0
        %3616 = vmatpush1.bf16.msra.mxu0 0
        %3617 = vmatprep.subr.bf16.mxu0 0
        %3618 = vmatpush1.bf16.msra.mxu0 0
        %3619 = vmatprep.subr.bf16.mxu0 0
        %3620 = vmatpush1.bf16.msra.mxu0 0
        %3621 = vmatprep.subr.bf16.mxu0 0
        %3622 = vmatpush1.bf16.msra.mxu0 0
        %3623 = vmatprep.subr.bf16.mxu0 0
        %3624 = vmatpush1.bf16.msra.mxu0 0
        %3625 = vmatprep.subr.bf16.mxu0 0
        %3626 = vmatpush1.bf16.msra.mxu0 0
        %3627 = vmatprep.subr.bf16.mxu0 0
        %3628 = vmatpush1.bf16.msra.mxu0 0
        %3629 = vmatprep.subr.bf16.mxu0 0
        %3630 = vmatpush1.bf16.msra.mxu0 0
        %3631 = vmatprep.mubr.bf16.mxu0 0
        %3632 = vmatmul.mubr.bf16.gmra.mrb[0].mxu0 %v3597
        %v3633 = vpop.f32.mrb[0].mxu0
        %v3634 = vadd.f32 0.0, %v3633
        %v3635 = vpop.f32.mrb[0].mxu0
        %v3636 = vpop.f32.mrb[0].mxu0
        %v3637 = vadd.f32 0.0, %v3636
        %v3638 = vpop.f32.mrb[0].mxu0
        %3639 = vdwg.mxu0
        %v3641 = vsel %vm2595, %v3307, 0
        %3643 = vmatprep.subr.bf16.mxu0 0
        %3644 = vmatpush1.bf16.msra.mxu0 %v897
        %3645 = vmatprep.subr.bf16.mxu0 0
        %3646 = vmatpush1.bf16.msra.mxu0 0
        %3647 = vmatprep.subr.bf16.mxu0 0
        %3648 = vmatpush1.bf16.msra.mxu0 0
        %3649 = vmatprep.subr.bf16.mxu0 0
        %3650 = vmatpush1.bf16.msra.mxu0 0
        %3651 = vmatprep.subr.bf16.mxu0 0
        %3652 = vmatpush1.bf16.msra.mxu0 0
        %3653 = vmatprep.subr.bf16.mxu0 0
        %3654 = vmatpush1.bf16.msra.mxu0 0
        %3655 = vmatprep.subr.bf16.mxu0 0
        %3656 = vmatpush1.bf16.msra.mxu0 0
        %3657 = vmatprep.subr.bf16.mxu0 0
        %3658 = vmatpush1.bf16.msra.mxu0 0
        %3659 = vmatprep.subr.bf16.mxu0 0
        %3660 = vmatpush1.bf16.msra.mxu0 0
        %3661 = vmatprep.subr.bf16.mxu0 0
        %3662 = vmatpush1.bf16.msra.mxu0 0
        %3663 = vmatprep.subr.bf16.mxu0 0
        %3664 = vmatpush1.bf16.msra.mxu0 0
        %3665 = vmatprep.subr.bf16.mxu0 0
        %3666 = vmatpush1.bf16.msra.mxu0 0
        %3667 = vmatprep.subr.bf16.mxu0 0
        %3668 = vmatpush1.bf16.msra.mxu0 0
        %3669 = vmatprep.subr.bf16.mxu0 0
        %3670 = vmatpush1.bf16.msra.mxu0 0
        %3671 = vmatprep.subr.bf16.mxu0 0
        %3672 = vmatpush1.bf16.msra.mxu0 0
        %3673 = vmatprep.subr.bf16.mxu0 0
        %3674 = vmatpush1.bf16.msra.mxu0 0
        %3675 = vmatprep.mubr.bf16.mxu0 0
        %3676 = vmatmul.mubr.bf16.gmra.mrb[0].mxu0 %v3641
        %v3677 = vpop.f32.mrb[0].mxu0
        %v3678 = vadd.f32 0.0, %v3677
        %v3679 = vpop.f32.mrb[0].mxu0
        %v3680 = vpop.f32.mrb[0].mxu0
        %v3681 = vadd.f32 0.0, %v3680
        %v3682 = vpop.f32.mrb[0].mxu0
        %3683 = vdwg.mxu0
        %v3685 = vsel %vm2595, %v3308, 0
        %3687 = vmatprep.subr.bf16.mxu0 0
        %3688 = vmatpush1.bf16.msra.mxu0 %v1019
        %3689 = vmatprep.subr.bf16.mxu0 0
        %3690 = vmatpush1.bf16.msra.mxu0 0
        %3691 = vmatprep.subr.bf16.mxu0 0
        %3692 = vmatpush1.bf16.msra.mxu0 0
        %3693 = vmatprep.subr.bf16.mxu0 0
        %3694 = vmatpush1.bf16.msra.mxu0 0
        %3695 = vmatprep.subr.bf16.mxu0 0
        %3696 = vmatpush1.bf16.msra.mxu0 0
        %3697 = vmatprep.subr.bf16.mxu0 0
        %3698 = vmatpush1.bf16.msra.mxu0 0
        %3699 = vmatprep.subr.bf16.mxu0 0
        %3700 = vmatpush1.bf16.msra.mxu0 0
        %3701 = vmatprep.subr.bf16.mxu0 0
        %3702 = vmatpush1.bf16.msra.mxu0 0
        %3703 = vmatprep.subr.bf16.mxu0 0
        %3704 = vmatpush1.bf16.msra.mxu0 0
        %3705 = vmatprep.subr.bf16.mxu0 0
        %3706 = vmatpush1.bf16.msra.mxu0 0
        %3707 = vmatprep.subr.bf16.mxu0 0
        %3708 = vmatpush1.bf16.msra.mxu0 0
        %3709 = vmatprep.subr.bf16.mxu0 0
        %3710 = vmatpush1.bf16.msra.mxu0 0
        %3711 = vmatprep.subr.bf16.mxu0 0
        %3712 = vmatpush1.bf16.msra.mxu0 0
        %3713 = vmatprep.subr.bf16.mxu0 0
        %3714 = vmatpush1.bf16.msra.mxu0 0
        %3715 = vmatprep.subr.bf16.mxu0 0
        %3716 = vmatpush1.bf16.msra.mxu0 0
        %3717 = vmatprep.subr.bf16.mxu0 0
        %3718 = vmatpush1.bf16.msra.mxu0 0
        %3719 = vmatprep.mubr.bf16.mxu0 0
        %3720 = vmatmul.mubr.bf16.gmra.mrb[0].mxu0 %v3685
        %v3721 = vpop.f32.mrb[0].mxu0
        %v3722 = vadd.f32 0.0, %v3721
        %v3723 = vpop.f32.mrb[0].mxu0
        %v3724 = vpop.f32.mrb[0].mxu0
        %v3725 = vadd.f32 0.0, %v3724
        %v3726 = vpop.f32.mrb[0].mxu0
        %3727 = vdwg.mxu0
        %v3729 = vsel %vm2595, %v3309, 0
        %3731 = vmatprep.subr.bf16.mxu0 0
        %3732 = vmatpush1.bf16.msra.mxu0 %v1021
        %3733 = vmatprep.subr.bf16.mxu0 0
        %3734 = vmatpush1.bf16.msra.mxu0 0
        %3735 = vmatprep.subr.bf16.mxu0 0
        %3736 = vmatpush1.bf16.msra.mxu0 0
        %3737 = vmatprep.subr.bf16.mxu0 0
        %3738 = vmatpush1.bf16.msra.mxu0 0
        %3739 = vmatprep.subr.bf16.mxu0 0
        %3740 = vmatpush1.bf16.msra.mxu0 0
        %3741 = vmatprep.subr.bf16.mxu0 0
        %3742 = vmatpush1.bf16.msra.mxu0 0
        %3743 = vmatprep.subr.bf16.mxu0 0
        %3744 = vmatpush1.bf16.msra.mxu0 0
        %3745 = vmatprep.subr.bf16.mxu0 0
        %3746 = vmatpush1.bf16.msra.mxu0 0
        %3747 = vmatprep.subr.bf16.mxu0 0
        %3748 = vmatpush1.bf16.msra.mxu0 0
        %3749 = vmatprep.subr.bf16.mxu0 0
        %3750 = vmatpush1.bf16.msra.mxu0 0
        %3751 = vmatprep.subr.bf16.mxu0 0
        %3752 = vmatpush1.bf16.msra.mxu0 0
        %3753 = vmatprep.subr.bf16.mxu0 0
        %3754 = vmatpush1.bf16.msra.mxu0 0
        %3755 = vmatprep.subr.bf16.mxu0 0
        %3756 = vmatpush1.bf16.msra.mxu0 0
        %3757 = vmatprep.subr.bf16.mxu0 0
        %3758 = vmatpush1.bf16.msra.mxu0 0
        %3759 = vmatprep.subr.bf16.mxu0 0
        %3760 = vmatpush1.bf16.msra.mxu0 0
        %3761 = vmatprep.subr.bf16.mxu0 0
        %3762 = vmatpush1.bf16.msra.mxu0 0
        %3763 = vmatprep.mubr.bf16.mxu0 0
        %3764 = vmatmul.mubr.bf16.gmra.mrb[0].mxu0 %v3729
        %v3765 = vpop.f32.mrb[0].mxu0
        %v3766 = vadd.f32 0.0, %v3765
        %v3767 = vpop.f32.mrb[0].mxu0
        %v3768 = vpop.f32.mrb[0].mxu0
        %v3769 = vadd.f32 0.0, %v3768
        %v3770 = vpop.f32.mrb[0].mxu0
        %3771 = vdwg.mxu0
        %v3773 = vsel %vm2595, %v3310, 0
        %3775 = vmatprep.subr.bf16.mxu0 0
        %3776 = vmatpush1.bf16.msra.mxu0 %v1023
        %3777 = vmatprep.subr.bf16.mxu0 0
        %3778 = vmatpush1.bf16.msra.mxu0 0
        %3779 = vmatprep.subr.bf16.mxu0 0
        %3780 = vmatpush1.bf16.msra.mxu0 0
        %3781 = vmatprep.subr.bf16.mxu0 0
        %3782 = vmatpush1.bf16.msra.mxu0 0
        %3783 = vmatprep.subr.bf16.mxu0 0
        %3784 = vmatpush1.bf16.msra.mxu0 0
        %3785 = vmatprep.subr.bf16.mxu0 0
        %3786 = vmatpush1.bf16.msra.mxu0 0
        %3787 = vmatprep.subr.bf16.mxu0 0
        %3788 = vmatpush1.bf16.msra.mxu0 0
        %3789 = vmatprep.subr.bf16.mxu0 0
        %3790 = vmatpush1.bf16.msra.mxu0 0
        %3791 = vmatprep.subr.bf16.mxu0 0
        %3792 = vmatpush1.bf16.msra.mxu0 0
        %3793 = vmatprep.subr.bf16.mxu0 0
        %3794 = vmatpush1.bf16.msra.mxu0 0
        %3795 = vmatprep.subr.bf16.mxu0 0
        %3796 = vmatpush1.bf16.msra.mxu0 0
        %3797 = vmatprep.subr.bf16.mxu0 0
        %3798 = vmatpush1.bf16.msra.mxu0 0
        %3799 = vmatprep.subr.bf16.mxu0 0
        %3800 = vmatpush1.bf16.msra.mxu0 0
        %3801 = vmatprep.subr.bf16.mxu0 0
        %3802 = vmatpush1.bf16.msra.mxu0 0
        %3803 = vmatprep.subr.bf16.mxu0 0
        %3804 = vmatpush1.bf16.msra.mxu0 0
        %3805 = vmatprep.subr.bf16.mxu0 0
        %3806 = vmatpush1.bf16.msra.mxu0 0
        %3807 = vmatprep.mubr.bf16.mxu0 0
        %3808 = vmatmul.mubr.bf16.gmra.mrb[0].mxu0 %v3773
        %v3809 = vpop.f32.mrb[0].mxu0
        %v3810 = vadd.f32 0.0, %v3809
        %v3811 = vpop.f32.mrb[0].mxu0
        %v3812 = vpop.f32.mrb[0].mxu0
        %v3813 = vadd.f32 0.0, %v3812
        %v3814 = vpop.f32.mrb[0].mxu0
        %3815 = vdwg.mxu0
        %v3817 = vsel %vm2595, %v3311, 0
        %3819 = vmatprep.subr.bf16.mxu0 0
        %3820 = vmatpush1.bf16.msra.mxu0 %v1025
        %3821 = vmatprep.subr.bf16.mxu0 0
        %3822 = vmatpush1.bf16.msra.mxu0 0
        %3823 = vmatprep.subr.bf16.mxu0 0
        %3824 = vmatpush1.bf16.msra.mxu0 0
        %3825 = vmatprep.subr.bf16.mxu0 0
        %3826 = vmatpush1.bf16.msra.mxu0 0
        %3827 = vmatprep.subr.bf16.mxu0 0
        %3828 = vmatpush1.bf16.msra.mxu0 0
        %3829 = vmatprep.subr.bf16.mxu0 0
        %3830 = vmatpush1.bf16.msra.mxu0 0
        %3831 = vmatprep.subr.bf16.mxu0 0
        %3832 = vmatpush1.bf16.msra.mxu0 0
        %3833 = vmatprep.subr.bf16.mxu0 0
        %3834 = vmatpush1.bf16.msra.mxu0 0
        %3835 = vmatprep.subr.bf16.mxu0 0
        %3836 = vmatpush1.bf16.msra.mxu0 0
        %3837 = vmatprep.subr.bf16.mxu0 0
        %3838 = vmatpush1.bf16.msra.mxu0 0
        %3839 = vmatprep.subr.bf16.mxu0 0
        %3840 = vmatpush1.bf16.msra.mxu0 0
        %3841 = vmatprep.subr.bf16.mxu0 0
        %3842 = vmatpush1.bf16.msra.mxu0 0
        %3843 = vmatprep.subr.bf16.mxu0 0
        %3844 = vmatpush1.bf16.msra.mxu0 0
        %3845 = vmatprep.subr.bf16.mxu0 0
        %3846 = vmatpush1.bf16.msra.mxu0 0
        %3847 = vmatprep.subr.bf16.mxu0 0
        %3848 = vmatpush1.bf16.msra.mxu0 0
        %3849 = vmatprep.subr.bf16.mxu0 0
        %3850 = vmatpush1.bf16.msra.mxu0 0
        %3851 = vmatprep.mubr.bf16.mxu0 0
        %3852 = vmatmul.mubr.bf16.gmra.mrb[0].mxu0 %v3817
        %v3853 = vpop.f32.mrb[0].mxu0
        %v3854 = vadd.f32 0.0, %v3853
        %v3855 = vpop.f32.mrb[0].mxu0
        %v3856 = vpop.f32.mrb[0].mxu0
        %v3857 = vadd.f32 0.0, %v3856
        %v3858 = vpop.f32.mrb[0].mxu0
        %3859 = vdwg.mxu0
        %v3861 = vsel %vm2595, %v3312, 0
        %3863 = vmatprep.subr.bf16.mxu0 0
        %3864 = vmatpush1.bf16.msra.mxu0 %v1027
        %3865 = vmatprep.subr.bf16.mxu0 0
        %3866 = vmatpush1.bf16.msra.mxu0 0
        %3867 = vmatprep.subr.bf16.mxu0 0
        %3868 = vmatpush1.bf16.msra.mxu0 0
        %3869 = vmatprep.subr.bf16.mxu0 0
        %3870 = vmatpush1.bf16.msra.mxu0 0
        %3871 = vmatprep.subr.bf16.mxu0 0
        %3872 = vmatpush1.bf16.msra.mxu0 0
        %3873 = vmatprep.subr.bf16.mxu0 0
        %3874 = vmatpush1.bf16.msra.mxu0 0
        %3875 = vmatprep.subr.bf16.mxu0 0
        %3876 = vmatpush1.bf16.msra.mxu0 0
        %3877 = vmatprep.subr.bf16.mxu0 0
        %3878 = vmatpush1.bf16.msra.mxu0 0
        %3879 = vmatprep.subr.bf16.mxu0 0
        %3880 = vmatpush1.bf16.msra.mxu0 0
        %3881 = vmatprep.subr.bf16.mxu0 0
        %3882 = vmatpush1.bf16.msra.mxu0 0
        %3883 = vmatprep.subr.bf16.mxu0 0
        %3884 = vmatpush1.bf16.msra.mxu0 0
        %3885 = vmatprep.subr.bf16.mxu0 0
        %3886 = vmatpush1.bf16.msra.mxu0 0
        %3887 = vmatprep.subr.bf16.mxu0 0
        %3888 = vmatpush1.bf16.msra.mxu0 0
        %3889 = vmatprep.subr.bf16.mxu0 0
        %3890 = vmatpush1.bf16.msra.mxu0 0
        %3891 = vmatprep.subr.bf16.mxu0 0
        %3892 = vmatpush1.bf16.msra.mxu0 0
        %3893 = vmatprep.subr.bf16.mxu0 0
        %3894 = vmatpush1.bf16.msra.mxu0 0
        %3895 = vmatprep.mubr.bf16.mxu0 0
        %3896 = vmatmul.mubr.bf16.gmra.mrb[0].mxu0 %v3861
        %v3897 = vpop.f32.mrb[0].mxu0
        %v3898 = vadd.f32 0.0, %v3897
        %v3899 = vpop.f32.mrb[0].mxu0
        %v3900 = vpop.f32.mrb[0].mxu0
        %v3901 = vadd.f32 0.0, %v3900
        %v3902 = vpop.f32.mrb[0].mxu0
        %3903 = vdwg.mxu0
        %v3905 = vsel %vm2595, %v3313, 0
        %3907 = vmatprep.subr.bf16.mxu0 0
        %3908 = vmatpush1.bf16.msra.mxu0 %v1029
        %3909 = vmatprep.subr.bf16.mxu0 0
        %3910 = vmatpush1.bf16.msra.mxu0 0
        %3911 = vmatprep.subr.bf16.mxu0 0
        %3912 = vmatpush1.bf16.msra.mxu0 0
        %3913 = vmatprep.subr.bf16.mxu0 0
        %3914 = vmatpush1.bf16.msra.mxu0 0
        %3915 = vmatprep.subr.bf16.mxu0 0
        %3916 = vmatpush1.bf16.msra.mxu0 0
        %3917 = vmatprep.subr.bf16.mxu0 0
        %3918 = vmatpush1.bf16.msra.mxu0 0
        %3919 = vmatprep.subr.bf16.mxu0 0
        %3920 = vmatpush1.bf16.msra.mxu0 0
        %3921 = vmatprep.subr.bf16.mxu0 0
        %3922 = vmatpush1.bf16.msra.mxu0 0
        %3923 = vmatprep.subr.bf16.mxu0 0
        %3924 = vmatpush1.bf16.msra.mxu0 0
        %3925 = vmatprep.subr.bf16.mxu0 0
        %3926 = vmatpush1.bf16.msra.mxu0 0
        %3927 = vmatprep.subr.bf16.mxu0 0
        %3928 = vmatpush1.bf16.msra.mxu0 0
        %3929 = vmatprep.subr.bf16.mxu0 0
        %3930 = vmatpush1.bf16.msra.mxu0 0
        %3931 = vmatprep.subr.bf16.mxu0 0
        %3932 = vmatpush1.bf16.msra.mxu0 0
        %3933 = vmatprep.subr.bf16.mxu0 0
        %3934 = vmatpush1.bf16.msra.mxu0 0
        %3935 = vmatprep.subr.bf16.mxu0 0
        %3936 = vmatpush1.bf16.msra.mxu0 0
        %3937 = vmatprep.subr.bf16.mxu0 0
        %3938 = vmatpush1.bf16.msra.mxu0 0
        %3939 = vmatprep.mubr.bf16.mxu0 0
        %3940 = vmatmul.mubr.bf16.gmra.mrb[0].mxu0 %v3905
        %v3941 = vpop.f32.mrb[0].mxu0
        %v3942 = vadd.f32 0.0, %v3941
        %v3943 = vpop.f32.mrb[0].mxu0
        %v3944 = vpop.f32.mrb[0].mxu0
        %v3945 = vadd.f32 0.0, %v3944
        %v3946 = vpop.f32.mrb[0].mxu0
        %3947 = vdwg.mxu0
        %v3949 = vsel %vm2595, %v3314, 0
        %3951 = vmatprep.subr.bf16.mxu0 0
        %3952 = vmatpush1.bf16.msra.mxu0 %v1031
        %3953 = vmatprep.subr.bf16.mxu0 0
        %3954 = vmatpush1.bf16.msra.mxu0 0
        %3955 = vmatprep.subr.bf16.mxu0 0
        %3956 = vmatpush1.bf16.msra.mxu0 0
        %3957 = vmatprep.subr.bf16.mxu0 0
        %3958 = vmatpush1.bf16.msra.mxu0 0
        %3959 = vmatprep.subr.bf16.mxu0 0
        %3960 = vmatpush1.bf16.msra.mxu0 0
        %3961 = vmatprep.subr.bf16.mxu0 0
        %3962 = vmatpush1.bf16.msra.mxu0 0
        %3963 = vmatprep.subr.bf16.mxu0 0
        %3964 = vmatpush1.bf16.msra.mxu0 0
        %3965 = vmatprep.subr.bf16.mxu0 0
        %3966 = vmatpush1.bf16.msra.mxu0 0
        %3967 = vmatprep.subr.bf16.mxu0 0
        %3968 = vmatpush1.bf16.msra.mxu0 0
        %3969 = vmatprep.subr.bf16.mxu0 0
        %3970 = vmatpush1.bf16.msra.mxu0 0
        %3971 = vmatprep.subr.bf16.mxu0 0
        %3972 = vmatpush1.bf16.msra.mxu0 0
        %3973 = vmatprep.subr.bf16.mxu0 0
        %3974 = vmatpush1.bf16.msra.mxu0 0
        %3975 = vmatprep.subr.bf16.mxu0 0
        %3976 = vmatpush1.bf16.msra.mxu0 0
        %3977 = vmatprep.subr.bf16.mxu0 0
        %3978 = vmatpush1.bf16.msra.mxu0 0
        %3979 = vmatprep.subr.bf16.mxu0 0
        %3980 = vmatpush1.bf16.msra.mxu0 0
        %3981 = vmatprep.subr.bf16.mxu0 0
        %3982 = vmatpush1.bf16.msra.mxu0 0
        %3983 = vmatprep.mubr.bf16.mxu0 0
        %3984 = vmatmul.mubr.bf16.gmra.mrb[0].mxu0 %v3949
        %v3985 = vpop.f32.mrb[0].mxu0
        %v3986 = vadd.f32 0.0, %v3985
        %v3987 = vpop.f32.mrb[0].mxu0
        %v3988 = vpop.f32.mrb[0].mxu0
        %v3989 = vadd.f32 0.0, %v3988
        %v3990 = vpop.f32.mrb[0].mxu0
        %3991 = vdwg.mxu0
        %v3993 = vsel %vm2595, %v3315, 0
        %3995 = vmatprep.subr.bf16.mxu0 0
        %3996 = vmatpush1.bf16.msra.mxu0 %v1033
        %3997 = vmatprep.subr.bf16.mxu0 0
        %3998 = vmatpush1.bf16.msra.mxu0 0
        %3999 = vmatprep.subr.bf16.mxu0 0
        %4000 = vmatpush1.bf16.msra.mxu0 0
        %4001 = vmatprep.subr.bf16.mxu0 0
        %4002 = vmatpush1.bf16.msra.mxu0 0
        %4003 = vmatprep.subr.bf16.mxu0 0
        %4004 = vmatpush1.bf16.msra.mxu0 0
        %4005 = vmatprep.subr.bf16.mxu0 0
        %4006 = vmatpush1.bf16.msra.mxu0 0
        %4007 = vmatprep.subr.bf16.mxu0 0
        %4008 = vmatpush1.bf16.msra.mxu0 0
        %4009 = vmatprep.subr.bf16.mxu0 0
        %4010 = vmatpush1.bf16.msra.mxu0 0
        %4011 = vmatprep.subr.bf16.mxu0 0
        %4012 = vmatpush1.bf16.msra.mxu0 0
        %4013 = vmatprep.subr.bf16.mxu0 0
        %4014 = vmatpush1.bf16.msra.mxu0 0
        %4015 = vmatprep.subr.bf16.mxu0 0
        %4016 = vmatpush1.bf16.msra.mxu0 0
        %4017 = vmatprep.subr.bf16.mxu0 0
        %4018 = vmatpush1.bf16.msra.mxu0 0
        %4019 = vmatprep.subr.bf16.mxu0 0
        %4020 = vmatpush1.bf16.msra.mxu0 0
        %4021 = vmatprep.subr.bf16.mxu0 0
        %4022 = vmatpush1.bf16.msra.mxu0 0
        %4023 = vmatprep.subr.bf16.mxu0 0
        %4024 = vmatpush1.bf16.msra.mxu0 0
        %4025 = vmatprep.subr.bf16.mxu0 0
        %4026 = vmatpush1.bf16.msra.mxu0 0
        %4027 = vmatprep.mubr.bf16.mxu0 0
        %4028 = vmatmul.mubr.bf16.gmra.mrb[0].mxu0 %v3993
        %v4029 = vpop.f32.mrb[0].mxu0
        %v4030 = vadd.f32 0.0, %v4029
        %v4031 = vpop.f32.mrb[0].mxu0
        %v4032 = vpop.f32.mrb[0].mxu0
        %v4033 = vadd.f32 0.0, %v4032
        %v4034 = vpop.f32.mrb[0].mxu0
        %4035 = vdwg.mxu0
        %v4037 = vsel %vm2595, %v3316, 0
        %4039 = vmatprep.subr.bf16.mxu0 0
        %4040 = vmatpush1.bf16.msra.mxu0 %v1043
        %4041 = vmatprep.subr.bf16.mxu0 0
        %4042 = vmatpush1.bf16.msra.mxu0 0
        %4043 = vmatprep.subr.bf16.mxu0 0
        %4044 = vmatpush1.bf16.msra.mxu0 0
        %4045 = vmatprep.subr.bf16.mxu0 0
        %4046 = vmatpush1.bf16.msra.mxu0 0
        %4047 = vmatprep.subr.bf16.mxu0 0
        %4048 = vmatpush1.bf16.msra.mxu0 0
        %4049 = vmatprep.subr.bf16.mxu0 0
        %4050 = vmatpush1.bf16.msra.mxu0 0
        %4051 = vmatprep.subr.bf16.mxu0 0
        %4052 = vmatpush1.bf16.msra.mxu0 0
        %4053 = vmatprep.subr.bf16.mxu0 0
        %4054 = vmatpush1.bf16.msra.mxu0 0
        %4055 = vmatprep.subr.bf16.mxu0 0
        %4056 = vmatpush1.bf16.msra.mxu0 0
        %4057 = vmatprep.subr.bf16.mxu0 0
        %4058 = vmatpush1.bf16.msra.mxu0 0
        %4059 = vmatprep.subr.bf16.mxu0 0
        %4060 = vmatpush1.bf16.msra.mxu0 0
        %4061 = vmatprep.subr.bf16.mxu0 0
        %4062 = vmatpush1.bf16.msra.mxu0 0
        %4063 = vmatprep.subr.bf16.mxu0 0
        %4064 = vmatpush1.bf16.msra.mxu0 0
        %4065 = vmatprep.subr.bf16.mxu0 0
        %4066 = vmatpush1.bf16.msra.mxu0 0
        %4067 = vmatprep.subr.bf16.mxu0 0
        %4068 = vmatpush1.bf16.msra.mxu0 0
        %4069 = vmatprep.subr.bf16.mxu0 0
        %4070 = vmatpush1.bf16.msra.mxu0 0
        %4071 = vmatprep.mubr.bf16.mxu0 0
        %4072 = vmatmul.mubr.bf16.gmra.mrb[0].mxu0 %v4037
        %v4073 = vpop.f32.mrb[0].mxu0
        %v4074 = vadd.f32 0.0, %v4073
        %v4075 = vpop.f32.mrb[0].mxu0
        %v4076 = vpop.f32.mrb[0].mxu0
        %v4077 = vadd.f32 0.0, %v4076
        %v4078 = vpop.f32.mrb[0].mxu0
        %4079 = vdwg.mxu0
        %v4081 = vsel %vm2595, %v3317, 0
        %4083 = vmatprep.subr.bf16.mxu0 0
        %4084 = vmatpush1.bf16.msra.mxu0 %v1045
        %4085 = vmatprep.subr.bf16.mxu0 0
        %4086 = vmatpush1.bf16.msra.mxu0 0
        %4087 = vmatprep.subr.bf16.mxu0 0
        %4088 = vmatpush1.bf16.msra.mxu0 0
        %4089 = vmatprep.subr.bf16.mxu0 0
        %4090 = vmatpush1.bf16.msra.mxu0 0
        %4091 = vmatprep.subr.bf16.mxu0 0
        %4092 = vmatpush1.bf16.msra.mxu0 0
        %4093 = vmatprep.subr.bf16.mxu0 0
        %4094 = vmatpush1.bf16.msra.mxu0 0
        %4095 = vmatprep.subr.bf16.mxu0 0
        %4096 = vmatpush1.bf16.msra.mxu0 0
        %4097 = vmatprep.subr.bf16.mxu0 0
        %4098 = vmatpush1.bf16.msra.mxu0 0
        %4099 = vmatprep.subr.bf16.mxu0 0
        %4100 = vmatpush1.bf16.msra.mxu0 0
        %4101 = vmatprep.subr.bf16.mxu0 0
        %4102 = vmatpush1.bf16.msra.mxu0 0
        %4103 = vmatprep.subr.bf16.mxu0 0
        %4104 = vmatpush1.bf16.msra.mxu0 0
        %4105 = vmatprep.subr.bf16.mxu0 0
        %4106 = vmatpush1.bf16.msra.mxu0 0
        %4107 = vmatprep.subr.bf16.mxu0 0
        %4108 = vmatpush1.bf16.msra.mxu0 0
        %4109 = vmatprep.subr.bf16.mxu0 0
        %4110 = vmatpush1.bf16.msra.mxu0 0
        %4111 = vmatprep.subr.bf16.mxu0 0
        %4112 = vmatpush1.bf16.msra.mxu0 0
        %4113 = vmatprep.subr.bf16.mxu0 0
        %4114 = vmatpush1.bf16.msra.mxu0 0
        %4115 = vmatprep.mubr.bf16.mxu0 0
        %4116 = vmatmul.mubr.bf16.gmra.mrb[0].mxu0 %v4081
        %v4117 = vpop.f32.mrb[0].mxu0
        %v4118 = vadd.f32 0.0, %v4117
        %v4119 = vpop.f32.mrb[0].mxu0
        %v4120 = vpop.f32.mrb[0].mxu0
        %v4121 = vadd.f32 0.0, %v4120
        %v4122 = vpop.f32.mrb[0].mxu0
        %4123 = vdwg.mxu0
        %v4125 = vsel %vm2595, %v3318, 0
        %4127 = vmatprep.subr.bf16.mxu0 0
        %4128 = vmatpush1.bf16.msra.mxu0 %v1047
        %4129 = vmatprep.subr.bf16.mxu0 0
        %4130 = vmatpush1.bf16.msra.mxu0 0
        %4131 = vmatprep.subr.bf16.mxu0 0
        %4132 = vmatpush1.bf16.msra.mxu0 0
        %4133 = vmatprep.subr.bf16.mxu0 0
        %4134 = vmatpush1.bf16.msra.mxu0 0
        %4135 = vmatprep.subr.bf16.mxu0 0
        %4136 = vmatpush1.bf16.msra.mxu0 0
        %4137 = vmatprep.subr.bf16.mxu0 0
        %4138 = vmatpush1.bf16.msra.mxu0 0
        %4139 = vmatprep.subr.bf16.mxu0 0
        %4140 = vmatpush1.bf16.msra.mxu0 0
        %4141 = vmatprep.subr.bf16.mxu0 0
        %4142 = vmatpush1.bf16.msra.mxu0 0
        %4143 = vmatprep.subr.bf16.mxu0 0
        %4144 = vmatpush1.bf16.msra.mxu0 0
        %4145 = vmatprep.subr.bf16.mxu0 0
        %4146 = vmatpush1.bf16.msra.mxu0 0
        %4147 = vmatprep.subr.bf16.mxu0 0
        %4148 = vmatpush1.bf16.msra.mxu0 0
        %4149 = vmatprep.subr.bf16.mxu0 0
        %4150 = vmatpush1.bf16.msra.mxu0 0
        %4151 = vmatprep.subr.bf16.mxu0 0
        %4152 = vmatpush1.bf16.msra.mxu0 0
        %4153 = vmatprep.subr.bf16.mxu0 0
        %4154 = vmatpush1.bf16.msra.mxu0 0
        %4155 = vmatprep.subr.bf16.mxu0 0
        %4156 = vmatpush1.bf16.msra.mxu0 0
        %4157 = vmatprep.subr.bf16.mxu0 0
        %4158 = vmatpush1.bf16.msra.mxu0 0
        %4159 = vmatprep.mubr.bf16.mxu0 0
        %4160 = vmatmul.mubr.bf16.gmra.mrb[0].mxu0 %v4125
        %v4161 = vpop.f32.mrb[0].mxu0
        %v4162 = vadd.f32 0.0, %v4161
        %v4163 = vpop.f32.mrb[0].mxu0
        %v4164 = vpop.f32.mrb[0].mxu0
        %v4165 = vadd.f32 0.0, %v4164
        %v4166 = vpop.f32.mrb[0].mxu0
        %4167 = vdwg.mxu0
        %v4169 = vsel %vm2595, %v3319, 0
        %4171 = vmatprep.subr.bf16.mxu0 0
        %4172 = vmatpush1.bf16.msra.mxu0 %v1049
        %4173 = vmatprep.subr.bf16.mxu0 0
        %4174 = vmatpush1.bf16.msra.mxu0 0
        %4175 = vmatprep.subr.bf16.mxu0 0
        %4176 = vmatpush1.bf16.msra.mxu0 0
        %4177 = vmatprep.subr.bf16.mxu0 0
        %4178 = vmatpush1.bf16.msra.mxu0 0
        %4179 = vmatprep.subr.bf16.mxu0 0
        %4180 = vmatpush1.bf16.msra.mxu0 0
        %4181 = vmatprep.subr.bf16.mxu0 0
        %4182 = vmatpush1.bf16.msra.mxu0 0
        %4183 = vmatprep.subr.bf16.mxu0 0
        %4184 = vmatpush1.bf16.msra.mxu0 0
        %4185 = vmatprep.subr.bf16.mxu0 0
        %4186 = vmatpush1.bf16.msra.mxu0 0
        %4187 = vmatprep.subr.bf16.mxu0 0
        %4188 = vmatpush1.bf16.msra.mxu0 0
        %4189 = vmatprep.subr.bf16.mxu0 0
        %4190 = vmatpush1.bf16.msra.mxu0 0
        %4191 = vmatprep.subr.bf16.mxu0 0
        %4192 = vmatpush1.bf16.msra.mxu0 0
        %4193 = vmatprep.subr.bf16.mxu0 0
        %4194 = vmatpush1.bf16.msra.mxu0 0
        %4195 = vmatprep.subr.bf16.mxu0 0
        %4196 = vmatpush1.bf16.msra.mxu0 0
        %4197 = vmatprep.subr.bf16.mxu0 0
        %4198 = vmatpush1.bf16.msra.mxu0 0
        %4199 = vmatprep.subr.bf16.mxu0 0
        %4200 = vmatpush1.bf16.msra.mxu0 0
        %4201 = vmatprep.subr.bf16.mxu0 0
        %4202 = vmatpush1.bf16.msra.mxu0 0
        %4203 = vmatprep.mubr.bf16.mxu0 0
        %4204 = vmatmul.mubr.bf16.gmra.mrb[0].mxu0 %v4169
        %v4205 = vpop.f32.mrb[0].mxu0
        %v4206 = vadd.f32 0.0, %v4205
        %v4207 = vpop.f32.mrb[0].mxu0
        %v4208 = vpop.f32.mrb[0].mxu0
        %v4209 = vadd.f32 0.0, %v4208
        %v4210 = vpop.f32.mrb[0].mxu0
        %4211 = vdwg.mxu0
        %v4213 = vsel %vm2595, %v3320, 0
        %4215 = vmatprep.subr.bf16.mxu0 0
        %4216 = vmatpush1.bf16.msra.mxu0 %v1051
        %4217 = vmatprep.subr.bf16.mxu0 0
        %4218 = vmatpush1.bf16.msra.mxu0 0
        %4219 = vmatprep.subr.bf16.mxu0 0
        %4220 = vmatpush1.bf16.msra.mxu0 0
        %4221 = vmatprep.subr.bf16.mxu0 0
        %4222 = vmatpush1.bf16.msra.mxu0 0
        %4223 = vmatprep.subr.bf16.mxu0 0
        %4224 = vmatpush1.bf16.msra.mxu0 0
        %4225 = vmatprep.subr.bf16.mxu0 0
        %4226 = vmatpush1.bf16.msra.mxu0 0
        %4227 = vmatprep.subr.bf16.mxu0 0
        %4228 = vmatpush1.bf16.msra.mxu0 0
        %4229 = vmatprep.subr.bf16.mxu0 0
        %4230 = vmatpush1.bf16.msra.mxu0 0
        %4231 = vmatprep.subr.bf16.mxu0 0
        %4232 = vmatpush1.bf16.msra.mxu0 0
        %4233 = vmatprep.subr.bf16.mxu0 0
        %4234 = vmatpush1.bf16.msra.mxu0 0
        %4235 = vmatprep.subr.bf16.mxu0 0
        %4236 = vmatpush1.bf16.msra.mxu0 0
        %4237 = vmatprep.subr.bf16.mxu0 0
        %4238 = vmatpush1.bf16.msra.mxu0 0
        %4239 = vmatprep.subr.bf16.mxu0 0
        %4240 = vmatpush1.bf16.msra.mxu0 0
        %4241 = vmatprep.subr.bf16.mxu0 0
        %4242 = vmatpush1.bf16.msra.mxu0 0
        %4243 = vmatprep.subr.bf16.mxu0 0
        %4244 = vmatpush1.bf16.msra.mxu0 0
        %4245 = vmatprep.subr.bf16.mxu0 0
        %4246 = vmatpush1.bf16.msra.mxu0 0
        %4247 = vmatprep.mubr.bf16.mxu0 0
        %4248 = vmatmul.mubr.bf16.gmra.mrb[0].mxu0 %v4213
        %v4249 = vpop.f32.mrb[0].mxu0
        %v4250 = vadd.f32 0.0, %v4249
        %v4251 = vpop.f32.mrb[0].mxu0
        %v4252 = vpop.f32.mrb[0].mxu0
        %v4253 = vadd.f32 0.0, %v4252
        %v4254 = vpop.f32.mrb[0].mxu0
        %4255 = vdwg.mxu0
        %v4257 = vsel %vm2595, %v3321, 0
        %4259 = vmatprep.subr.bf16.mxu0 0
        %4260 = vmatpush1.bf16.msra.mxu0 %v1053
        %4261 = vmatprep.subr.bf16.mxu0 0
        %4262 = vmatpush1.bf16.msra.mxu0 0
        %4263 = vmatprep.subr.bf16.mxu0 0
        %4264 = vmatpush1.bf16.msra.mxu0 0
        %4265 = vmatprep.subr.bf16.mxu0 0
        %4266 = vmatpush1.bf16.msra.mxu0 0
        %4267 = vmatprep.subr.bf16.mxu0 0
        %4268 = vmatpush1.bf16.msra.mxu0 0
        %4269 = vmatprep.subr.bf16.mxu0 0
        %4270 = vmatpush1.bf16.msra.mxu0 0
        %4271 = vmatprep.subr.bf16.mxu0 0
        %4272 = vmatpush1.bf16.msra.mxu0 0
        %4273 = vmatprep.subr.bf16.mxu0 0
        %4274 = vmatpush1.bf16.msra.mxu0 0
        %4275 = vmatprep.subr.bf16.mxu0 0
        %4276 = vmatpush1.bf16.msra.mxu0 0
        %4277 = vmatprep.subr.bf16.mxu0 0
        %4278 = vmatpush1.bf16.msra.mxu0 0
        %4279 = vmatprep.subr.bf16.mxu0 0
        %4280 = vmatpush1.bf16.msra.mxu0 0
        %4281 = vmatprep.subr.bf16.mxu0 0
        %4282 = vmatpush1.bf16.msra.mxu0 0
        %4283 = vmatprep.subr.bf16.mxu0 0
        %4284 = vmatpush1.bf16.msra.mxu0 0
        %4285 = vmatprep.subr.bf16.mxu0 0
        %4286 = vmatpush1.bf16.msra.mxu0 0
        %4287 = vmatprep.subr.bf16.mxu0 0
        %4288 = vmatpush1.bf16.msra.mxu0 0
        %4289 = vmatprep.subr.bf16.mxu0 0
        %4290 = vmatpush1.bf16.msra.mxu0 0
        %4291 = vmatprep.mubr.bf16.mxu0 0
        %4292 = vmatmul.mubr.bf16.gmra.mrb[0].mxu0 %v4257
        %v4293 = vpop.f32.mrb[0].mxu0
        %v4294 = vadd.f32 0.0, %v4293
        %v4295 = vpop.f32.mrb[0].mxu0
        %v4296 = vpop.f32.mrb[0].mxu0
        %v4297 = vadd.f32 0.0, %v4296
        %v4298 = vpop.f32.mrb[0].mxu0
        %4299 = vdwg.mxu0
        %v4301 = vsel %vm2595, %v3322, 0
        %4303 = vmatprep.subr.bf16.mxu0 0
        %4304 = vmatpush1.bf16.msra.mxu0 %v1055
        %4305 = vmatprep.subr.bf16.mxu0 0
        %4306 = vmatpush1.bf16.msra.mxu0 0
        %4307 = vmatprep.subr.bf16.mxu0 0
        %4308 = vmatpush1.bf16.msra.mxu0 0
        %4309 = vmatprep.subr.bf16.mxu0 0
        %4310 = vmatpush1.bf16.msra.mxu0 0
        %4311 = vmatprep.subr.bf16.mxu0 0
        %4312 = vmatpush1.bf16.msra.mxu0 0
        %4313 = vmatprep.subr.bf16.mxu0 0
        %4314 = vmatpush1.bf16.msra.mxu0 0
        %4315 = vmatprep.subr.bf16.mxu0 0
        %4316 = vmatpush1.bf16.msra.mxu0 0
        %4317 = vmatprep.subr.bf16.mxu0 0
        %4318 = vmatpush1.bf16.msra.mxu0 0
        %4319 = vmatprep.subr.bf16.mxu0 0
        %4320 = vmatpush1.bf16.msra.mxu0 0
        %4321 = vmatprep.subr.bf16.mxu0 0
        %4322 = vmatpush1.bf16.msra.mxu0 0
        %4323 = vmatprep.subr.bf16.mxu0 0
        %4324 = vmatpush1.bf16.msra.mxu0 0
        %4325 = vmatprep.subr.bf16.mxu0 0
        %4326 = vmatpush1.bf16.msra.mxu0 0
        %4327 = vmatprep.subr.bf16.mxu0 0
        %4328 = vmatpush1.bf16.msra.mxu0 0
        %4329 = vmatprep.subr.bf16.mxu0 0
        %4330 = vmatpush1.bf16.msra.mxu0 0
        %4331 = vmatprep.subr.bf16.mxu0 0
        %4332 = vmatpush1.bf16.msra.mxu0 0
        %4333 = vmatprep.subr.bf16.mxu0 0
        %4334 = vmatpush1.bf16.msra.mxu0 0
        %4335 = vmatprep.mubr.bf16.mxu0 0
        %4336 = vmatmul.mubr.bf16.gmra.mrb[0].mxu0 %v4301
        %v4337 = vpop.f32.mrb[0].mxu0
        %v4338 = vadd.f32 0.0, %v4337
        %v4339 = vpop.f32.mrb[0].mxu0
        %v4340 = vpop.f32.mrb[0].mxu0
        %v4341 = vadd.f32 0.0, %v4340
        %v4342 = vpop.f32.mrb[0].mxu0
        %4343 = vdwg.mxu0
        %v4345 = vsel %vm2595, %v3323, 0
        %4347 = vmatprep.subr.bf16.mxu0 0
        %4348 = vmatpush1.bf16.msra.mxu0 %v1057
        %4349 = vmatprep.subr.bf16.mxu0 0
        %4350 = vmatpush1.bf16.msra.mxu0 0
        %4351 = vmatprep.subr.bf16.mxu0 0
        %4352 = vmatpush1.bf16.msra.mxu0 0
        %4353 = vmatprep.subr.bf16.mxu0 0
        %4354 = vmatpush1.bf16.msra.mxu0 0
        %4355 = vmatprep.subr.bf16.mxu0 0
        %4356 = vmatpush1.bf16.msra.mxu0 0
        %4357 = vmatprep.subr.bf16.mxu0 0
        %4358 = vmatpush1.bf16.msra.mxu0 0
        %4359 = vmatprep.subr.bf16.mxu0 0
        %4360 = vmatpush1.bf16.msra.mxu0 0
        %4361 = vmatprep.subr.bf16.mxu0 0
        %4362 = vmatpush1.bf16.msra.mxu0 0
        %4363 = vmatprep.subr.bf16.mxu0 0
        %4364 = vmatpush1.bf16.msra.mxu0 0
        %4365 = vmatprep.subr.bf16.mxu0 0
        %4366 = vmatpush1.bf16.msra.mxu0 0
        %4367 = vmatprep.subr.bf16.mxu0 0
        %4368 = vmatpush1.bf16.msra.mxu0 0
        %4369 = vmatprep.subr.bf16.mxu0 0
        %4370 = vmatpush1.bf16.msra.mxu0 0
        %4371 = vmatprep.subr.bf16.mxu0 0
        %4372 = vmatpush1.bf16.msra.mxu0 0
        %4373 = vmatprep.subr.bf16.mxu0 0
        %4374 = vmatpush1.bf16.msra.mxu0 0
        %4375 = vmatprep.subr.bf16.mxu0 0
        %4376 = vmatpush1.bf16.msra.mxu0 0
        %4377 = vmatprep.subr.bf16.mxu0 0
        %4378 = vmatpush1.bf16.msra.mxu0 0
        %4379 = vmatprep.mubr.bf16.mxu0 0
        %4380 = vmatmul.mubr.bf16.gmra.mrb[0].mxu0 %v4345
        %v4381 = vpop.f32.mrb[0].mxu0
        %v4382 = vadd.f32 0.0, %v4381
        %v4383 = vpop.f32.mrb[0].mxu0
        %v4384 = vpop.f32.mrb[0].mxu0
        %v4385 = vadd.f32 0.0, %v4384
        %v4386 = vpop.f32.mrb[0].mxu0
        %4387 = vdwg.mxu0
        %v4389 = vsel %vm2595, %v3324, 0
        %4391 = vmatprep.subr.bf16.mxu0 0
        %4392 = vmatpush1.bf16.msra.mxu0 %v1067
        %4393 = vmatprep.subr.bf16.mxu0 0
        %4394 = vmatpush1.bf16.msra.mxu0 0
        %4395 = vmatprep.subr.bf16.mxu0 0
        %4396 = vmatpush1.bf16.msra.mxu0 0
        %4397 = vmatprep.subr.bf16.mxu0 0
        %4398 = vmatpush1.bf16.msra.mxu0 0
        %4399 = vmatprep.subr.bf16.mxu0 0
        %4400 = vmatpush1.bf16.msra.mxu0 0
        %4401 = vmatprep.subr.bf16.mxu0 0
        %4402 = vmatpush1.bf16.msra.mxu0 0
        %4403 = vmatprep.subr.bf16.mxu0 0
        %4404 = vmatpush1.bf16.msra.mxu0 0
        %4405 = vmatprep.subr.bf16.mxu0 0
        %4406 = vmatpush1.bf16.msra.mxu0 0
        %4407 = vmatprep.subr.bf16.mxu0 0
        %4408 = vmatpush1.bf16.msra.mxu0 0
        %4409 = vmatprep.subr.bf16.mxu0 0
        %4410 = vmatpush1.bf16.msra.mxu0 0
        %4411 = vmatprep.subr.bf16.mxu0 0
        %4412 = vmatpush1.bf16.msra.mxu0 0
        %4413 = vmatprep.subr.bf16.mxu0 0
        %4414 = vmatpush1.bf16.msra.mxu0 0
        %4415 = vmatprep.subr.bf16.mxu0 0
        %4416 = vmatpush1.bf16.msra.mxu0 0
        %4417 = vmatprep.subr.bf16.mxu0 0
        %4418 = vmatpush1.bf16.msra.mxu0 0
        %4419 = vmatprep.subr.bf16.mxu0 0
        %4420 = vmatpush1.bf16.msra.mxu0 0
        %4421 = vmatprep.subr.bf16.mxu0 0
        %4422 = vmatpush1.bf16.msra.mxu0 0
        %4423 = vmatprep.mubr.bf16.mxu0 0
        %4424 = vmatmul.mubr.bf16.gmra.mrb[0].mxu0 %v4389
        %v4425 = vpop.f32.mrb[0].mxu0
        %v4426 = vadd.f32 0.0, %v4425
        %v4427 = vpop.f32.mrb[0].mxu0
        %v4428 = vpop.f32.mrb[0].mxu0
        %v4429 = vadd.f32 0.0, %v4428
        %v4430 = vpop.f32.mrb[0].mxu0
        %4431 = vdwg.mxu0
        %v4433 = vsel %vm2595, %v3325, 0
        %4435 = vmatprep.subr.bf16.mxu0 0
        %4436 = vmatpush1.bf16.msra.mxu0 %v1069
        %4437 = vmatprep.subr.bf16.mxu0 0
        %4438 = vmatpush1.bf16.msra.mxu0 0
        %4439 = vmatprep.subr.bf16.mxu0 0
        %4440 = vmatpush1.bf16.msra.mxu0 0
        %4441 = vmatprep.subr.bf16.mxu0 0
        %4442 = vmatpush1.bf16.msra.mxu0 0
        %4443 = vmatprep.subr.bf16.mxu0 0
        %4444 = vmatpush1.bf16.msra.mxu0 0
        %4445 = vmatprep.subr.bf16.mxu0 0
        %4446 = vmatpush1.bf16.msra.mxu0 0
        %4447 = vmatprep.subr.bf16.mxu0 0
        %4448 = vmatpush1.bf16.msra.mxu0 0
        %4449 = vmatprep.subr.bf16.mxu0 0
        %4450 = vmatpush1.bf16.msra.mxu0 0
        %4451 = vmatprep.subr.bf16.mxu0 0
        %4452 = vmatpush1.bf16.msra.mxu0 0
        %4453 = vmatprep.subr.bf16.mxu0 0
        %4454 = vmatpush1.bf16.msra.mxu0 0
        %4455 = vmatprep.subr.bf16.mxu0 0
        %4456 = vmatpush1.bf16.msra.mxu0 0
        %4457 = vmatprep.subr.bf16.mxu0 0
        %4458 = vmatpush1.bf16.msra.mxu0 0
        %4459 = vmatprep.subr.bf16.mxu0 0
        %4460 = vmatpush1.bf16.msra.mxu0 0
        %4461 = vmatprep.subr.bf16.mxu0 0
        %4462 = vmatpush1.bf16.msra.mxu0 0
        %4463 = vmatprep.subr.bf16.mxu0 0
        %4464 = vmatpush1.bf16.msra.mxu0 0
        %4465 = vmatprep.subr.bf16.mxu0 0
        %4466 = vmatpush1.bf16.msra.mxu0 0
        %4467 = vmatprep.mubr.bf16.mxu0 0
        %4468 = vmatmul.mubr.bf16.gmra.mrb[0].mxu0 %v4433
        %v4469 = vpop.f32.mrb[0].mxu0
        %v4470 = vadd.f32 0.0, %v4469
        %v4471 = vpop.f32.mrb[0].mxu0
        %v4472 = vpop.f32.mrb[0].mxu0
        %v4473 = vadd.f32 0.0, %v4472
        %v4474 = vpop.f32.mrb[0].mxu0
        %4475 = vdwg.mxu0
        %v4477 = vsel %vm2595, %v3326, 0
        %4479 = vmatprep.subr.bf16.mxu0 0
        %4480 = vmatpush1.bf16.msra.mxu0 %v1071
        %4481 = vmatprep.subr.bf16.mxu0 0
        %4482 = vmatpush1.bf16.msra.mxu0 0
        %4483 = vmatprep.subr.bf16.mxu0 0
        %4484 = vmatpush1.bf16.msra.mxu0 0
        %4485 = vmatprep.subr.bf16.mxu0 0
        %4486 = vmatpush1.bf16.msra.mxu0 0
        %4487 = vmatprep.subr.bf16.mxu0 0
        %4488 = vmatpush1.bf16.msra.mxu0 0
        %4489 = vmatprep.subr.bf16.mxu0 0
        %4490 = vmatpush1.bf16.msra.mxu0 0
        %4491 = vmatprep.subr.bf16.mxu0 0
        %4492 = vmatpush1.bf16.msra.mxu0 0
        %4493 = vmatprep.subr.bf16.mxu0 0
        %4494 = vmatpush1.bf16.msra.mxu0 0
        %4495 = vmatprep.subr.bf16.mxu0 0
        %4496 = vmatpush1.bf16.msra.mxu0 0
        %4497 = vmatprep.subr.bf16.mxu0 0
        %4498 = vmatpush1.bf16.msra.mxu0 0
        %4499 = vmatprep.subr.bf16.mxu0 0
        %4500 = vmatpush1.bf16.msra.mxu0 0
        %4501 = vmatprep.subr.bf16.mxu0 0
        %4502 = vmatpush1.bf16.msra.mxu0 0
        %4503 = vmatprep.subr.bf16.mxu0 0
        %4504 = vmatpush1.bf16.msra.mxu0 0
        %4505 = vmatprep.subr.bf16.mxu0 0
        %4506 = vmatpush1.bf16.msra.mxu0 0
        %4507 = vmatprep.subr.bf16.mxu0 0
        %4508 = vmatpush1.bf16.msra.mxu0 0
        %4509 = vmatprep.subr.bf16.mxu0 0
        %4510 = vmatpush1.bf16.msra.mxu0 0
        %4511 = vmatprep.mubr.bf16.mxu0 0
        %4512 = vmatmul.mubr.bf16.gmra.mrb[0].mxu0 %v4477
        %v4513 = vpop.f32.mrb[0].mxu0
        %v4514 = vadd.f32 0.0, %v4513
        %v4515 = vpop.f32.mrb[0].mxu0
        %v4516 = vpop.f32.mrb[0].mxu0
        %v4517 = vadd.f32 0.0, %v4516
        %v4518 = vpop.f32.mrb[0].mxu0
        %4519 = vdwg.mxu0
        %v4521 = vsel %vm2595, %v3327, 0
        %4523 = vmatprep.subr.bf16.mxu0 0
        %4524 = vmatpush1.bf16.msra.mxu0 %v1073
        %4525 = vmatprep.subr.bf16.mxu0 0
        %4526 = vmatpush1.bf16.msra.mxu0 0
        %4527 = vmatprep.subr.bf16.mxu0 0
        %4528 = vmatpush1.bf16.msra.mxu0 0
        %4529 = vmatprep.subr.bf16.mxu0 0
        %4530 = vmatpush1.bf16.msra.mxu0 0
        %4531 = vmatprep.subr.bf16.mxu0 0
        %4532 = vmatpush1.bf16.msra.mxu0 0
        %4533 = vmatprep.subr.bf16.mxu0 0
        %4534 = vmatpush1.bf16.msra.mxu0 0
        %4535 = vmatprep.subr.bf16.mxu0 0
        %4536 = vmatpush1.bf16.msra.mxu0 0
        %4537 = vmatprep.subr.bf16.mxu0 0
        %4538 = vmatpush1.bf16.msra.mxu0 0
        %4539 = vmatprep.subr.bf16.mxu0 0
        %4540 = vmatpush1.bf16.msra.mxu0 0
        %4541 = vmatprep.subr.bf16.mxu0 0
        %4542 = vmatpush1.bf16.msra.mxu0 0
        %4543 = vmatprep.subr.bf16.mxu0 0
        %4544 = vmatpush1.bf16.msra.mxu0 0
        %4545 = vmatprep.subr.bf16.mxu0 0
        %4546 = vmatpush1.bf16.msra.mxu0 0
        %4547 = vmatprep.subr.bf16.mxu0 0
        %4548 = vmatpush1.bf16.msra.mxu0 0
        %4549 = vmatprep.subr.bf16.mxu0 0
        %4550 = vmatpush1.bf16.msra.mxu0 0
        %4551 = vmatprep.subr.bf16.mxu0 0
        %4552 = vmatpush1.bf16.msra.mxu0 0
        %4553 = vmatprep.subr.bf16.mxu0 0
        %4554 = vmatpush1.bf16.msra.mxu0 0
        %4555 = vmatprep.mubr.bf16.mxu0 0
        %4556 = vmatmul.mubr.bf16.gmra.mrb[0].mxu0 %v4521
        %v4557 = vpop.f32.mrb[0].mxu0
        %v4558 = vadd.f32 0.0, %v4557
        %v4559 = vpop.f32.mrb[0].mxu0
        %v4560 = vpop.f32.mrb[0].mxu0
        %v4561 = vadd.f32 0.0, %v4560
        %v4562 = vpop.f32.mrb[0].mxu0
        %4563 = vdwg.mxu0
        %v4565 = vsel %vm2595, %v3328, 0
        %4567 = vmatprep.subr.bf16.mxu0 0
        %4568 = vmatpush1.bf16.msra.mxu0 %v1075
        %4569 = vmatprep.subr.bf16.mxu0 0
        %4570 = vmatpush1.bf16.msra.mxu0 0
        %4571 = vmatprep.subr.bf16.mxu0 0
        %4572 = vmatpush1.bf16.msra.mxu0 0
        %4573 = vmatprep.subr.bf16.mxu0 0
        %4574 = vmatpush1.bf16.msra.mxu0 0
        %4575 = vmatprep.subr.bf16.mxu0 0
        %4576 = vmatpush1.bf16.msra.mxu0 0
        %4577 = vmatprep.subr.bf16.mxu0 0
        %4578 = vmatpush1.bf16.msra.mxu0 0
        %4579 = vmatprep.subr.bf16.mxu0 0
        %4580 = vmatpush1.bf16.msra.mxu0 0
        %4581 = vmatprep.subr.bf16.mxu0 0
        %4582 = vmatpush1.bf16.msra.mxu0 0
        %4583 = vmatprep.subr.bf16.mxu0 0
        %4584 = vmatpush1.bf16.msra.mxu0 0
        %4585 = vmatprep.subr.bf16.mxu0 0
        %4586 = vmatpush1.bf16.msra.mxu0 0
        %4587 = vmatprep.subr.bf16.mxu0 0
        %4588 = vmatpush1.bf16.msra.mxu0 0
        %4589 = vmatprep.subr.bf16.mxu0 0
        %4590 = vmatpush1.bf16.msra.mxu0 0
        %4591 = vmatprep.subr.bf16.mxu0 0
        %4592 = vmatpush1.bf16.msra.mxu0 0
        %4593 = vmatprep.subr.bf16.mxu0 0
        %4594 = vmatpush1.bf16.msra.mxu0 0
        %4595 = vmatprep.subr.bf16.mxu0 0
        %4596 = vmatpush1.bf16.msra.mxu0 0
        %4597 = vmatprep.subr.bf16.mxu0 0
        %4598 = vmatpush1.bf16.msra.mxu0 0
        %4599 = vmatprep.mubr.bf16.mxu0 0
        %4600 = vmatmul.mubr.bf16.gmra.mrb[0].mxu0 %v4565
        %v4601 = vpop.f32.mrb[0].mxu0
        %v4602 = vadd.f32 0.0, %v4601
        %v4603 = vpop.f32.mrb[0].mxu0
        %v4604 = vpop.f32.mrb[0].mxu0
        %v4605 = vadd.f32 0.0, %v4604
        %v4606 = vpop.f32.mrb[0].mxu0
        %4607 = vdwg.mxu0
        %v4609 = vsel %vm2595, %v3329, 0
        %4611 = vmatprep.subr.bf16.mxu0 0
        %4612 = vmatpush1.bf16.msra.mxu0 %v1077
        %4613 = vmatprep.subr.bf16.mxu0 0
        %4614 = vmatpush1.bf16.msra.mxu0 0
        %4615 = vmatprep.subr.bf16.mxu0 0
        %4616 = vmatpush1.bf16.msra.mxu0 0
        %4617 = vmatprep.subr.bf16.mxu0 0
        %4618 = vmatpush1.bf16.msra.mxu0 0
        %4619 = vmatprep.subr.bf16.mxu0 0
        %4620 = vmatpush1.bf16.msra.mxu0 0
        %4621 = vmatprep.subr.bf16.mxu0 0
        %4622 = vmatpush1.bf16.msra.mxu0 0
        %4623 = vmatprep.subr.bf16.mxu0 0
        %4624 = vmatpush1.bf16.msra.mxu0 0
        %4625 = vmatprep.subr.bf16.mxu0 0
        %4626 = vmatpush1.bf16.msra.mxu0 0
        %4627 = vmatprep.subr.bf16.mxu0 0
        %4628 = vmatpush1.bf16.msra.mxu0 0
        %4629 = vmatprep.subr.bf16.mxu0 0
        %4630 = vmatpush1.bf16.msra.mxu0 0
        %4631 = vmatprep.subr.bf16.mxu0 0
        %4632 = vmatpush1.bf16.msra.mxu0 0
        %4633 = vmatprep.subr.bf16.mxu0 0
        %4634 = vmatpush1.bf16.msra.mxu0 0
        %4635 = vmatprep.subr.bf16.mxu0 0
        %4636 = vmatpush1.bf16.msra.mxu0 0
        %4637 = vmatprep.subr.bf16.mxu0 0
        %4638 = vmatpush1.bf16.msra.mxu0 0
        %4639 = vmatprep.subr.bf16.mxu0 0
        %4640 = vmatpush1.bf16.msra.mxu0 0
        %4641 = vmatprep.subr.bf16.mxu0 0
        %4642 = vmatpush1.bf16.msra.mxu0 0
        %4643 = vmatprep.mubr.bf16.mxu0 0
        %4644 = vmatmul.mubr.bf16.gmra.mrb[0].mxu0 %v4609
        %v4645 = vpop.f32.mrb[0].mxu0
        %v4646 = vadd.f32 0.0, %v4645
        %v4647 = vpop.f32.mrb[0].mxu0
        %v4648 = vpop.f32.mrb[0].mxu0
        %v4649 = vadd.f32 0.0, %v4648
        %v4650 = vpop.f32.mrb[0].mxu0
        %4651 = vdwg.mxu0
        %v4653 = vsel %vm2595, %v3330, 0
        %4655 = vmatprep.subr.bf16.mxu0 0
        %4656 = vmatpush1.bf16.msra.mxu0 %v1079
        %4657 = vmatprep.subr.bf16.mxu0 0
        %4658 = vmatpush1.bf16.msra.mxu0 0
        %4659 = vmatprep.subr.bf16.mxu0 0
        %4660 = vmatpush1.bf16.msra.mxu0 0
        %4661 = vmatprep.subr.bf16.mxu0 0
        %4662 = vmatpush1.bf16.msra.mxu0 0
        %4663 = vmatprep.subr.bf16.mxu0 0
        %4664 = vmatpush1.bf16.msra.mxu0 0
        %4665 = vmatprep.subr.bf16.mxu0 0
        %4666 = vmatpush1.bf16.msra.mxu0 0
        %4667 = vmatprep.subr.bf16.mxu0 0
        %4668 = vmatpush1.bf16.msra.mxu0 0
        %4669 = vmatprep.subr.bf16.mxu0 0
        %4670 = vmatpush1.bf16.msra.mxu0 0
        %4671 = vmatprep.subr.bf16.mxu0 0
        %4672 = vmatpush1.bf16.msra.mxu0 0
        %4673 = vmatprep.subr.bf16.mxu0 0
        %4674 = vmatpush1.bf16.msra.mxu0 0
        %4675 = vmatprep.subr.bf16.mxu0 0
        %4676 = vmatpush1.bf16.msra.mxu0 0
        %4677 = vmatprep.subr.bf16.mxu0 0
        %4678 = vmatpush1.bf16.msra.mxu0 0
        %4679 = vmatprep.subr.bf16.mxu0 0
        %4680 = vmatpush1.bf16.msra.mxu0 0
        %4681 = vmatprep.subr.bf16.mxu0 0
        %4682 = vmatpush1.bf16.msra.mxu0 0
        %4683 = vmatprep.subr.bf16.mxu0 0
        %4684 = vmatpush1.bf16.msra.mxu0 0
        %4685 = vmatprep.subr.bf16.mxu0 0
        %4686 = vmatpush1.bf16.msra.mxu0 0
        %4687 = vmatprep.mubr.bf16.mxu0 0
        %4688 = vmatmul.mubr.bf16.gmra.mrb[0].mxu0 %v4653
        %v4689 = vpop.f32.mrb[0].mxu0
        %v4690 = vadd.f32 0.0, %v4689
        %v4691 = vpop.f32.mrb[0].mxu0
        %v4692 = vpop.f32.mrb[0].mxu0
        %v4693 = vadd.f32 0.0, %v4692
        %v4694 = vpop.f32.mrb[0].mxu0
        %4695 = vdwg.mxu0
        %v4697 = vsel %vm2595, %v3331, 0
        %4699 = vmatprep.subr.bf16.mxu0 0
        %4700 = vmatpush1.bf16.msra.mxu0 %v1081
        %4701 = vmatprep.subr.bf16.mxu0 0
        %4702 = vmatpush1.bf16.msra.mxu0 0
        %4703 = vmatprep.subr.bf16.mxu0 0
        %4704 = vmatpush1.bf16.msra.mxu0 0
        %4705 = vmatprep.subr.bf16.mxu0 0
        %4706 = vmatpush1.bf16.msra.mxu0 0
        %4707 = vmatprep.subr.bf16.mxu0 0
        %4708 = vmatpush1.bf16.msra.mxu0 0
        %4709 = vmatprep.subr.bf16.mxu0 0
        %4710 = vmatpush1.bf16.msra.mxu0 0
        %4711 = vmatprep.subr.bf16.mxu0 0
        %4712 = vmatpush1.bf16.msra.mxu0 0
        %4713 = vmatprep.subr.bf16.mxu0 0
        %4714 = vmatpush1.bf16.msra.mxu0 0
        %4715 = vmatprep.subr.bf16.mxu0 0
        %4716 = vmatpush1.bf16.msra.mxu0 0
        %4717 = vmatprep.subr.bf16.mxu0 0
        %4718 = vmatpush1.bf16.msra.mxu0 0
        %4719 = vmatprep.subr.bf16.mxu0 0
        %4720 = vmatpush1.bf16.msra.mxu0 0
        %4721 = vmatprep.subr.bf16.mxu0 0
        %4722 = vmatpush1.bf16.msra.mxu0 0
        %4723 = vmatprep.subr.bf16.mxu0 0
        %4724 = vmatpush1.bf16.msra.mxu0 0
        %4725 = vmatprep.subr.bf16.mxu0 0
        %4726 = vmatpush1.bf16.msra.mxu0 0
        %4727 = vmatprep.subr.bf16.mxu0 0
        %4728 = vmatpush1.bf16.msra.mxu0 0
        %4729 = vmatprep.subr.bf16.mxu0 0
        %4730 = vmatpush1.bf16.msra.mxu0 0
        %4731 = vmatprep.mubr.bf16.mxu0 0
        %4732 = vmatmul.mubr.bf16.gmra.mrb[0].mxu0 %v4697
        %v4733 = vpop.f32.mrb[0].mxu0
        %v4734 = vadd.f32 0.0, %v4733
        %v4735 = vpop.f32.mrb[0].mxu0
        %v4736 = vpop.f32.mrb[0].mxu0
        %v4737 = vadd.f32 0.0, %v4736
        %v4738 = vpop.f32.mrb[0].mxu0
        %4739 = vdwg.mxu0
        %4756 = vrot.lane.b32.xlu0 %v3722, 32
        %v4757 = vpop.permute.xlu0 %4756
        %4758 = vrot.lane.b32.xlu0 %v3725, 32
        %v4759 = vpop.permute.xlu0 %4758
        %4760 = vrot.lane.b32.xlu0 %v3766, 32
        %v4761 = vpop.permute.xlu0 %4760
        %4762 = vrot.lane.b32.xlu0 %v3769, 32
        %v4763 = vpop.permute.xlu0 %4762
        %4764 = vrot.lane.b32.xlu0 %v3810, 32
        %v4765 = vpop.permute.xlu0 %4764
        %4766 = vrot.lane.b32.xlu0 %v3813, 32
        %v4767 = vpop.permute.xlu0 %4766
        %4768 = vrot.lane.b32.xlu0 %v3854, 32
        %v4769 = vpop.permute.xlu0 %4768
        %4770 = vrot.lane.b32.xlu0 %v3857, 32
        %v4771 = vpop.permute.xlu0 %4770
        %4772 = vrot.lane.b32.xlu0 %v3898, 32
        %v4773 = vpop.permute.xlu0 %4772
        %4774 = vrot.lane.b32.xlu0 %v3901, 32
        %v4775 = vpop.permute.xlu0 %4774
        %4776 = vrot.lane.b32.xlu0 %v3942, 32
        %v4777 = vpop.permute.xlu0 %4776
        %4778 = vrot.lane.b32.xlu0 %v3945, 32
        %v4779 = vpop.permute.xlu0 %4778
        %4780 = vrot.lane.b32.xlu0 %v3986, 32
        %v4781 = vpop.permute.xlu0 %4780
        %4782 = vrot.lane.b32.xlu0 %v3989, 32
        %v4783 = vpop.permute.xlu0 %4782
        %4784 = vrot.lane.b32.xlu0 %v4030, 32
        %v4785 = vpop.permute.xlu0 %4784
        %4786 = vrot.lane.b32.xlu0 %v4033, 32
        %v4787 = vpop.permute.xlu0 %4786
        %4820 = vrot.lane.b32.xlu0 %v4074, 64
        %v4821 = vpop.permute.xlu0 %4820
        %4822 = vrot.lane.b32.xlu0 %v4077, 64
        %v4823 = vpop.permute.xlu0 %4822
        %4824 = vrot.lane.b32.xlu0 %v4118, 64
        %v4825 = vpop.permute.xlu0 %4824
        %4826 = vrot.lane.b32.xlu0 %v4121, 64
        %v4827 = vpop.permute.xlu0 %4826
        %4828 = vrot.lane.b32.xlu0 %v4162, 64
        %v4829 = vpop.permute.xlu0 %4828
        %4830 = vrot.lane.b32.xlu0 %v4165, 64
        %v4831 = vpop.permute.xlu0 %4830
        %4832 = vrot.lane.b32.xlu0 %v4206, 64
        %v4833 = vpop.permute.xlu0 %4832
        %4834 = vrot.lane.b32.xlu0 %v4209, 64
        %v4835 = vpop.permute.xlu0 %4834
        %4836 = vrot.lane.b32.xlu0 %v4250, 64
        %v4837 = vpop.permute.xlu0 %4836
        %4838 = vrot.lane.b32.xlu0 %v4253, 64
        %v4839 = vpop.permute.xlu0 %4838
        %4840 = vrot.lane.b32.xlu0 %v4294, 64
        %v4841 = vpop.permute.xlu0 %4840
        %4842 = vrot.lane.b32.xlu0 %v4297, 64
        %v4843 = vpop.permute.xlu0 %4842
        %4844 = vrot.lane.b32.xlu0 %v4338, 64
        %v4845 = vpop.permute.xlu0 %4844
        %4846 = vrot.lane.b32.xlu0 %v4341, 64
        %v4847 = vpop.permute.xlu0 %4846
        %4848 = vrot.lane.b32.xlu0 %v4382, 64
        %v4849 = vpop.permute.xlu0 %4848
        %4850 = vrot.lane.b32.xlu0 %v4385, 64
        %v4851 = vpop.permute.xlu0 %4850
        %4884 = vrot.lane.b32.xlu0 %v4426, 96
        %v4885 = vpop.permute.xlu0 %4884
        %4886 = vrot.lane.b32.xlu0 %v4429, 96
        %v4887 = vpop.permute.xlu0 %4886
        %4888 = vrot.lane.b32.xlu0 %v4470, 96
        %v4889 = vpop.permute.xlu0 %4888
        %4890 = vrot.lane.b32.xlu0 %v4473, 96
        %v4891 = vpop.permute.xlu0 %4890
        %4892 = vrot.lane.b32.xlu0 %v4514, 96
        %v4893 = vpop.permute.xlu0 %4892
        %4894 = vrot.lane.b32.xlu0 %v4517, 96
        %v4895 = vpop.permute.xlu0 %4894
        %4896 = vrot.lane.b32.xlu0 %v4558, 96
        %v4897 = vpop.permute.xlu0 %4896
        %4898 = vrot.lane.b32.xlu0 %v4561, 96
        %v4899 = vpop.permute.xlu0 %4898
        %4900 = vrot.lane.b32.xlu0 %v4602, 96
        %v4901 = vpop.permute.xlu0 %4900
        %4902 = vrot.lane.b32.xlu0 %v4605, 96
        %v4903 = vpop.permute.xlu0 %4902
        %4904 = vrot.lane.b32.xlu0 %v4646, 96
        %v4905 = vpop.permute.xlu0 %4904
        %4906 = vrot.lane.b32.xlu0 %v4649, 96
        %v4907 = vpop.permute.xlu0 %4906
        %4908 = vrot.lane.b32.xlu0 %v4690, 96
        %v4909 = vpop.permute.xlu0 %4908
        %4910 = vrot.lane.b32.xlu0 %v4693, 96
        %v4911 = vpop.permute.xlu0 %4910
        %4912 = vrot.lane.b32.xlu0 %v4734, 96
        %v4913 = vpop.permute.xlu0 %4912
        %4914 = vrot.lane.b32.xlu0 %v4737, 96
        %v4915 = vpop.permute.xlu0 %4914
        %v4932 = vsel %vm1090, %v3370, %v4757
        %v4933 = vsel %vm1090, %v3373, %v4759
        %v4934 = vsel %vm1090, %v3414, %v4761
        %v4935 = vsel %vm1090, %v3417, %v4763
        %v4936 = vsel %vm1090, %v3458, %v4765
        %v4937 = vsel %vm1090, %v3461, %v4767
        %v4938 = vsel %vm1090, %v3502, %v4769
        %v4939 = vsel %vm1090, %v3505, %v4771
        %v4940 = vsel %vm1090, %v3546, %v4773
        %v4941 = vsel %vm1090, %v3549, %v4775
        %v4942 = vsel %vm1090, %v3590, %v4777
        %v4943 = vsel %vm1090, %v3593, %v4779
        %v4944 = vsel %vm1090, %v3634, %v4781
        %v4945 = vsel %vm1090, %v3637, %v4783
        %v4946 = vsel %vm1090, %v3678, %v4785
        %v4947 = vsel %vm1090, %v3681, %v4787
        %vm4948 = vcmask 523264
        %v4949 = vsel %vm4948, %v4932, %v4821
        %v4950 = vsel %vm4948, %v4933, %v4823
        %v4951 = vsel %vm4948, %v4934, %v4825
        %v4952 = vsel %vm4948, %v4935, %v4827
        %v4953 = vsel %vm4948, %v4936, %v4829
        %v4954 = vsel %vm4948, %v4937, %v4831
        %v4955 = vsel %vm4948, %v4938, %v4833
        %v4956 = vsel %vm4948, %v4939, %v4835
        %v4957 = vsel %vm4948, %v4940, %v4837
        %v4958 = vsel %vm4948, %v4941, %v4839
        %v4959 = vsel %vm4948, %v4942, %v4841
        %v4960 = vsel %vm4948, %v4943, %v4843
        %v4961 = vsel %vm4948, %v4944, %v4845
        %v4962 = vsel %vm4948, %v4945, %v4847
        %v4963 = vsel %vm4948, %v4946, %v4849
        %v4964 = vsel %vm4948, %v4947, %v4851
        %vm4965 = vcmask 785408
        %v4966 = vsel %vm4965, %v4949, %v4885
        %v4967 = vsel %vm4965, %v4950, %v4887
        %v4968 = vsel %vm4965, %v4951, %v4889
        %v4969 = vsel %vm4965, %v4952, %v4891
        %v4970 = vsel %vm4965, %v4953, %v4893
        %v4971 = vsel %vm4965, %v4954, %v4895
        %v4972 = vsel %vm4965, %v4955, %v4897
        %v4973 = vsel %vm4965, %v4956, %v4899
        %v4974 = vsel %vm4965, %v4957, %v4901
        %v4975 = vsel %vm4965, %v4958, %v4903
        %v4976 = vsel %vm4965, %v4959, %v4905
        %v4977 = vsel %vm4965, %v4960, %v4907
        %v4978 = vsel %vm4965, %v4961, %v4909
        %v4979 = vsel %vm4965, %v4962, %v4911
        %v4980 = vsel %vm4965, %v4963, %v4913
        %v4981 = vsel %vm4965, %v4964, %v4915
        %v4982 = vpack.c.bf16 %v4967, %v4966
        %v4983 = vpack.c.bf16 %v4969, %v4968
        %v4984 = vpack.c.bf16 %v4971, %v4970
        %v4985 = vpack.c.bf16 %v4973, %v4972
        %v4986 = vpack.c.bf16 %v4975, %v4974
        %v4987 = vpack.c.bf16 %v4977, %v4976
        %v4988 = vpack.c.bf16 %v4979, %v4978
        %v4989 = vpack.c.bf16 %v4981, %v4980
        %v4990 = vld [vmem:[#allocation8] sm:$0xf]
        %v4991 = vld [vmem:[#allocation8 + $0x4] sm:$0xf]
        %v4992 = vld [vmem:[#allocation8 + $0x8] sm:$0xf]
        %v4993 = vld [vmem:[#allocation8 + $0xc] sm:$0xf]
        %v4994 = vld [vmem:[#allocation8 + $0x10] sm:$0xf]
        %v4995 = vld [vmem:[#allocation8 + $0x14] sm:$0xf]
        %v4996 = vld [vmem:[#allocation8 + $0x18] sm:$0xf]
        %v4997 = vld [vmem:[#allocation8 + $0x1c] sm:$0xf]
        %v4998 = vld [vmem:[#allocation8 + $0x20] sm:$0xf]
        %v4999 = vld [vmem:[#allocation8 + $0x24] sm:$0xf]
        %v5000 = vld [vmem:[#allocation8 + $0x28] sm:$0xf]
        %v5001 = vld [vmem:[#allocation8 + $0x2c] sm:$0xf]
        %v5002 = vld [vmem:[#allocation8 + $0x30] sm:$0xf]
        %v5003 = vld [vmem:[#allocation8 + $0x34] sm:$0xf]
        %v5004 = vld [vmem:[#allocation8 + $0x38] sm:$0xf]
        %v5005 = vld [vmem:[#allocation8 + $0x3c] sm:$0xf]
        %v5006 = vld [vmem:[#allocation10] sm:$0x1]
        %v5008 = vlaneseq
        %v5009 = vshrl.u32 %v5008, 7
        %v5010 = vsub.s32 0, %v5009
        %v5011 = vrot.slane %v5006, %v5010
        %v5029 = vunpack.c.l.b16 %v4990
        %v5030 = vunpack.c.l.b16 %v4991
        %v5031 = vunpack.c.l.b16 %v4992
        %v5032 = vunpack.c.l.b16 %v4993
        %v5033 = vunpack.c.l.b16 %v4994
        %v5034 = vunpack.c.l.b16 %v4995
        %v5035 = vunpack.c.l.b16 %v4996
        %v5036 = vunpack.c.l.b16 %v4997
        %v5037 = vunpack.c.l.b16 %v4998
        %v5038 = vunpack.c.l.b16 %v4999
        %v5039 = vunpack.c.l.b16 %v5000
        %v5040 = vunpack.c.l.b16 %v5001
        %v5041 = vunpack.c.l.b16 %v5002
        %v5042 = vunpack.c.l.b16 %v5003
        %v5043 = vunpack.c.l.b16 %v5004
        %v5044 = vunpack.c.l.b16 %v5005
        %v5045 = vpack.c.b16 %v5030, %v5029
        %v5046 = vpack.c.b16 %v5032, %v5031
        %v5047 = vpack.c.b16 %v5034, %v5033
        %v5048 = vpack.c.b16 %v5036, %v5035
        %v5049 = vpack.c.b16 %v5038, %v5037
        %v5050 = vpack.c.b16 %v5040, %v5039
        %v5051 = vpack.c.b16 %v5042, %v5041
        %v5052 = vpack.c.b16 %v5044, %v5043
        %5061 = vmatprep.subr.bf16.mxu0 0
        %5062 = vmatpush1.bf16.msra.mxu0 %v5045
        %5063 = vmatprep.subr.bf16.mxu0 0
        %5064 = vmatpush1.bf16.msra.mxu0 %v5046
        %5065 = vmatprep.subr.bf16.mxu0 0
        %5066 = vmatpush1.bf16.msra.mxu0 %v5047
        %5067 = vmatprep.subr.bf16.mxu0 0
        %5068 = vmatpush1.bf16.msra.mxu0 %v5048
        %5069 = vmatprep.subr.bf16.mxu0 0
        %5070 = vmatpush1.bf16.msra.mxu0 %v5049
        %5071 = vmatprep.subr.bf16.mxu0 0
        %5072 = vmatpush1.bf16.msra.mxu0 %v5050
        %5073 = vmatprep.subr.bf16.mxu0 0
        %5074 = vmatpush1.bf16.msra.mxu0 %v5051
        %5075 = vmatprep.subr.bf16.mxu0 0
        %5076 = vmatpush1.bf16.msra.mxu0 %v5052
        %5077 = vmatprep.subr.bf16.mxu0 0
        %5078 = vmatpush1.bf16.msra.mxu0 0
        %5079 = vmatprep.subr.bf16.mxu0 0
        %5080 = vmatpush1.bf16.msra.mxu0 0
        %5081 = vmatprep.subr.bf16.mxu0 0
        %5082 = vmatpush1.bf16.msra.mxu0 0
        %5083 = vmatprep.subr.bf16.mxu0 0
        %5084 = vmatpush1.bf16.msra.mxu0 0
        %5085 = vmatprep.subr.bf16.mxu0 0
        %5086 = vmatpush1.bf16.msra.mxu0 0
        %5087 = vmatprep.subr.bf16.mxu0 0
        %5088 = vmatpush1.bf16.msra.mxu0 0
        %5089 = vmatprep.subr.bf16.mxu0 0
        %5090 = vmatpush1.bf16.msra.mxu0 0
        %5091 = vmatprep.subr.bf16.mxu0 0
        %5092 = vmatpush1.bf16.msra.mxu0 0
        %5093 = vmatprep.mubr.bf16.mxu0 0
        %5094 = vmatmul.mubr.bf16.gmra.mrb[0].mxu0 %v4982
        %v5095 = vpop.f32.mrb[0].mxu0
        %v5096 = vadd.f32 %v5011, %v5095
        %v5097 = vpop.f32.mrb[0].mxu0
        %v5098 = vpop.f32.mrb[0].mxu0
        %v5099 = vadd.f32 %v5011, %v5098
        %v5100 = vpop.f32.mrb[0].mxu0
        %5101 = vmatprep.mubr.bf16.mxu0 0
        %5102 = vmatmul.mubr.bf16.gmra.mrb[0].mxu0 %v4983
        %v5103 = vpop.f32.mrb[0].mxu0
        %v5104 = vadd.f32 %v5011, %v5103
        %v5105 = vpop.f32.mrb[0].mxu0
        %v5106 = vpop.f32.mrb[0].mxu0
        %v5107 = vadd.f32 %v5011, %v5106
        %v5108 = vpop.f32.mrb[0].mxu0
        %5109 = vmatprep.mubr.bf16.mxu0 0
        %5110 = vmatmul.mubr.bf16.gmra.mrb[0].mxu0 %v4984
        %v5111 = vpop.f32.mrb[0].mxu0
        %v5112 = vadd.f32 %v5011, %v5111
        %v5113 = vpop.f32.mrb[0].mxu0
        %v5114 = vpop.f32.mrb[0].mxu0
        %v5115 = vadd.f32 %v5011, %v5114
        %v5116 = vpop.f32.mrb[0].mxu0
        %5117 = vmatprep.mubr.bf16.mxu0 0
        %5118 = vmatmul.mubr.bf16.gmra.mrb[0].mxu0 %v4985
        %v5119 = vpop.f32.mrb[0].mxu0
        %v5120 = vadd.f32 %v5011, %v5119
        %v5121 = vpop.f32.mrb[0].mxu0
        %v5122 = vpop.f32.mrb[0].mxu0
        %v5123 = vadd.f32 %v5011, %v5122
        %v5124 = vpop.f32.mrb[0].mxu0
        %5125 = vmatprep.mubr.bf16.mxu0 0
        %5126 = vmatmul.mubr.bf16.gmra.mrb[0].mxu0 %v4986
        %v5127 = vpop.f32.mrb[0].mxu0
        %v5128 = vadd.f32 %v5011, %v5127
        %v5129 = vpop.f32.mrb[0].mxu0
        %v5130 = vpop.f32.mrb[0].mxu0
        %v5131 = vadd.f32 %v5011, %v5130
        %v5132 = vpop.f32.mrb[0].mxu0
        %5133 = vmatprep.mubr.bf16.mxu0 0
        %5134 = vmatmul.mubr.bf16.gmra.mrb[0].mxu0 %v4987
        %v5135 = vpop.f32.mrb[0].mxu0
        %v5136 = vadd.f32 %v5011, %v5135
        %v5137 = vpop.f32.mrb[0].mxu0
        %v5138 = vpop.f32.mrb[0].mxu0
        %v5139 = vadd.f32 %v5011, %v5138
        %v5140 = vpop.f32.mrb[0].mxu0
        %5141 = vmatprep.mubr.bf16.mxu0 0
        %5142 = vmatmul.mubr.bf16.gmra.mrb[0].mxu0 %v4988
        %v5143 = vpop.f32.mrb[0].mxu0
        %v5144 = vadd.f32 %v5011, %v5143
        %v5145 = vpop.f32.mrb[0].mxu0
        %v5146 = vpop.f32.mrb[0].mxu0
        %v5147 = vadd.f32 %v5011, %v5146
        %v5148 = vpop.f32.mrb[0].mxu0
        %5149 = vmatprep.mubr.bf16.mxu0 0
        %5150 = vmatmul.mubr.bf16.gmra.mrb[0].mxu0 %v4989
        %v5151 = vpop.f32.mrb[0].mxu0
        %v5152 = vadd.f32 %v5011, %v5151
        %v5153 = vpop.f32.mrb[0].mxu0
        %v5154 = vpop.f32.mrb[0].mxu0
        %v5155 = vadd.f32 %v5011, %v5154
        %v5156 = vpop.f32.mrb[0].mxu0
        %5157 = vdwg.mxu0
        %v5158 = vpack.c.bf16 %v5099, %v5096
        %v5159 = vpack.c.bf16 %v5107, %v5104
        %v5160 = vpack.c.bf16 %v5115, %v5112
        %v5161 = vpack.c.bf16 %v5123, %v5120
        %v5162 = vpack.c.bf16 %v5131, %v5128
        %v5163 = vpack.c.bf16 %v5139, %v5136
        %v5164 = vpack.c.bf16 %v5147, %v5144
        %v5165 = vpack.c.bf16 %v5155, %v5152
        %v5166 = vld [vmem:[#allocation11] sm:$0xff]
        %v5167 = vld [vmem:[#allocation11 + $0x8] sm:$0xff]
        %v5168 = vld [vmem:[#allocation11 + $0x10] sm:$0xff]
        %v5169 = vld [vmem:[#allocation11 + $0x18] sm:$0xff]
        %v5170 = vld [vmem:[#allocation11 + $0x20] sm:$0xff]
        %v5171 = vld [vmem:[#allocation11 + $0x28] sm:$0xff]
        %v5172 = vld [vmem:[#allocation11 + $0x30] sm:$0xff]
        %v5173 = vld [vmem:[#allocation11 + $0x38] sm:$0xff]
        %v5174 = vld [vmem:[#allocation11 + $0x40] sm:$0xff]
        %v5175 = vld [vmem:[#allocation11 + $0x48] sm:$0xff]
        %v5176 = vld [vmem:[#allocation11 + $0x50] sm:$0xff]
        %v5177 = vld [vmem:[#allocation11 + $0x58] sm:$0xff]
        %v5178 = vld [vmem:[#allocation11 + $0x60] sm:$0xff]
        %v5179 = vld [vmem:[#allocation11 + $0x68] sm:$0xff]
        %v5180 = vld [vmem:[#allocation11 + $0x70] sm:$0xff]
        %v5181 = vld [vmem:[#allocation11 + $0x78] sm:$0xff]
        %v5182 = vld [vmem:[#allocation11 + $0x80] sm:$0xff]
        %v5183 = vld [vmem:[#allocation11 + $0x88] sm:$0xff]
        %v5184 = vld [vmem:[#allocation11 + $0x90] sm:$0xff]
        %v5185 = vld [vmem:[#allocation11 + $0x98] sm:$0xff]
        %v5186 = vld [vmem:[#allocation11 + $0xa0] sm:$0xff]
        %v5187 = vld [vmem:[#allocation11 + $0xa8] sm:$0xff]
        %v5188 = vld [vmem:[#allocation11 + $0xb0] sm:$0xff]
        %v5189 = vld [vmem:[#allocation11 + $0xb8] sm:$0xff]
        %v5190 = vld [vmem:[#allocation11 + $0xc0] sm:$0xff]
        %v5191 = vld [vmem:[#allocation11 + $0xc8] sm:$0xff]
        %v5192 = vld [vmem:[#allocation11 + $0xd0] sm:$0xff]
        %v5193 = vld [vmem:[#allocation11 + $0xd8] sm:$0xff]
        %v5194 = vld [vmem:[#allocation11 + $0xe0] sm:$0xff]
        %v5195 = vld [vmem:[#allocation11 + $0xe8] sm:$0xff]
        %v5196 = vld [vmem:[#allocation11 + $0xf0] sm:$0xff]
        %v5197 = vld [vmem:[#allocation11 + $0xf8] sm:$0xff]
        %v5198 = vld [vmem:[#allocation13] sm:$0xf]
        %v5200 = vlaneseq
        %v5201 = vshrl.u32 %v5200, 7
        %v5202 = vsub.s32 0, %v5201
        %v5203 = vrot.slane %v5198, %v5202
        %v5204 = vlaneseq
        %v5205 = vshrl.u32 %v5204, 7
        %v5206 = vsub.s32 1, %v5205
        %v5207 = vrot.slane %v5198, %v5206
        %v5208 = vlaneseq
        %v5209 = vshrl.u32 %v5208, 7
        %v5210 = vsub.s32 2, %v5209
        %v5211 = vrot.slane %v5198, %v5210
        %v5212 = vlaneseq
        %v5213 = vshrl.u32 %v5212, 7
        %v5214 = vsub.s32 3, %v5213
        %v5215 = vrot.slane %v5198, %v5214
        %v5252 = vunpack.c.l.b16 %v5166
        %v5253 = vunpack.c.h.b16 %v5166
        %v5254 = vunpack.c.l.b16 %v5167
        %v5255 = vunpack.c.h.b16 %v5167
        %v5256 = vunpack.c.l.b16 %v5168
        %v5257 = vunpack.c.h.b16 %v5168
        %v5258 = vunpack.c.l.b16 %v5169
        %v5259 = vunpack.c.h.b16 %v5169
        %v5260 = vunpack.c.l.b16 %v5170
        %v5261 = vunpack.c.h.b16 %v5170
        %v5262 = vunpack.c.l.b16 %v5171
        %v5263 = vunpack.c.h.b16 %v5171
        %v5264 = vunpack.c.l.b16 %v5172
        %v5265 = vunpack.c.h.b16 %v5172
        %v5266 = vunpack.c.l.b16 %v5173
        %v5267 = vunpack.c.h.b16 %v5173
        %v5268 = vunpack.c.l.b16 %v5174
        %v5269 = vunpack.c.h.b16 %v5174
        %v5270 = vunpack.c.l.b16 %v5175
        %v5271 = vunpack.c.h.b16 %v5175
        %v5272 = vunpack.c.l.b16 %v5176
        %v5273 = vunpack.c.h.b16 %v5176
        %v5274 = vunpack.c.l.b16 %v5177
        %v5275 = vunpack.c.h.b16 %v5177
        %v5276 = vunpack.c.l.b16 %v5178
        %v5277 = vunpack.c.h.b16 %v5178
        %v5278 = vunpack.c.l.b16 %v5179
        %v5279 = vunpack.c.h.b16 %v5179
        %v5280 = vunpack.c.l.b16 %v5180
        %v5281 = vunpack.c.h.b16 %v5180
        %v5282 = vunpack.c.l.b16 %v5181
        %v5283 = vunpack.c.h.b16 %v5181
        %v5284 = vunpack.c.l.b16 %v5182
        %v5285 = vunpack.c.h.b16 %v5182
        %v5286 = vunpack.c.l.b16 %v5183
        %v5287 = vunpack.c.h.b16 %v5183
        %v5288 = vunpack.c.l.b16 %v5184
        %v5289 = vunpack.c.h.b16 %v5184
        %v5290 = vunpack.c.l.b16 %v5185
        %v5291 = vunpack.c.h.b16 %v5185
        %v5292 = vunpack.c.l.b16 %v5186
        %v5293 = vunpack.c.h.b16 %v5186
        %v5294 = vunpack.c.l.b16 %v5187
        %v5295 = vunpack.c.h.b16 %v5187
        %v5296 = vunpack.c.l.b16 %v5188
        %v5297 = vunpack.c.h.b16 %v5188
        %v5298 = vunpack.c.l.b16 %v5189
        %v5299 = vunpack.c.h.b16 %v5189
        %v5300 = vunpack.c.l.b16 %v5190
        %v5301 = vunpack.c.h.b16 %v5190
        %v5302 = vunpack.c.l.b16 %v5191
        %v5303 = vunpack.c.h.b16 %v5191
        %v5304 = vunpack.c.l.b16 %v5192
        %v5305 = vunpack.c.h.b16 %v5192
        %v5306 = vunpack.c.l.b16 %v5193
        %v5307 = vunpack.c.h.b16 %v5193
        %v5308 = vunpack.c.l.b16 %v5194
        %v5309 = vunpack.c.h.b16 %v5194
        %v5310 = vunpack.c.l.b16 %v5195
        %v5311 = vunpack.c.h.b16 %v5195
        %v5312 = vunpack.c.l.b16 %v5196
        %v5313 = vunpack.c.h.b16 %v5196
        %v5314 = vunpack.c.l.b16 %v5197
        %v5315 = vunpack.c.h.b16 %v5197
        %v5316 = vpack.c.b16 %v5256, %v5252
        %v5317 = vpack.c.b16 %v5257, %v5253
        %v5318 = vpack.c.b16 %v5258, %v5254
        %v5319 = vpack.c.b16 %v5259, %v5255
        %v5320 = vpack.c.b16 %v5264, %v5260
        %v5321 = vpack.c.b16 %v5265, %v5261
        %v5322 = vpack.c.b16 %v5266, %v5262
        %v5323 = vpack.c.b16 %v5267, %v5263
        %v5324 = vpack.c.b16 %v5272, %v5268
        %v5325 = vpack.c.b16 %v5273, %v5269
        %v5326 = vpack.c.b16 %v5274, %v5270
        %v5327 = vpack.c.b16 %v5275, %v5271
        %v5328 = vpack.c.b16 %v5280, %v5276
        %v5329 = vpack.c.b16 %v5281, %v5277
        %v5330 = vpack.c.b16 %v5282, %v5278
        %v5331 = vpack.c.b16 %v5283, %v5279
        %v5332 = vpack.c.b16 %v5288, %v5284
        %v5333 = vpack.c.b16 %v5289, %v5285
        %v5334 = vpack.c.b16 %v5290, %v5286
        %v5335 = vpack.c.b16 %v5291, %v5287
        %v5336 = vpack.c.b16 %v5296, %v5292
        %v5337 = vpack.c.b16 %v5297, %v5293
        %v5338 = vpack.c.b16 %v5298, %v5294
        %v5339 = vpack.c.b16 %v5299, %v5295
        %v5340 = vpack.c.b16 %v5304, %v5300
        %v5341 = vpack.c.b16 %v5305, %v5301
        %v5342 = vpack.c.b16 %v5306, %v5302
        %v5343 = vpack.c.b16 %v5307, %v5303
        %v5344 = vpack.c.b16 %v5312, %v5308
        %v5345 = vpack.c.b16 %v5313, %v5309
        %v5346 = vpack.c.b16 %v5314, %v5310
        %v5347 = vpack.c.b16 %v5315, %v5311
        %5380 = vmatprep.subr.bf16.mxu0 %v5317
        %5381 = vmatpush1.bf16.msra.mxu0 %v5316
        %5382 = vmatprep.subr.bf16.mxu0 %v5321
        %5383 = vmatpush1.bf16.msra.mxu0 %v5320
        %5384 = vmatprep.subr.bf16.mxu0 %v5325
        %5385 = vmatpush1.bf16.msra.mxu0 %v5324
        %5386 = vmatprep.subr.bf16.mxu0 %v5329
        %5387 = vmatpush1.bf16.msra.mxu0 %v5328
        %5388 = vmatprep.subr.bf16.mxu0 %v5333
        %5389 = vmatpush1.bf16.msra.mxu0 %v5332
        %5390 = vmatprep.subr.bf16.mxu0 %v5337
        %5391 = vmatpush1.bf16.msra.mxu0 %v5336
        %5392 = vmatprep.subr.bf16.mxu0 %v5341
        %5393 = vmatpush1.bf16.msra.mxu0 %v5340
        %5394 = vmatprep.subr.bf16.mxu0 %v5345
        %5395 = vmatpush1.bf16.msra.mxu0 %v5344
        %5396 = vmatprep.subr.bf16.mxu0 0
        %5397 = vmatpush1.bf16.msra.mxu0 0
        %5398 = vmatprep.subr.bf16.mxu0 0
        %5399 = vmatpush1.bf16.msra.mxu0 0
        %5400 = vmatprep.subr.bf16.mxu0 0
        %5401 = vmatpush1.bf16.msra.mxu0 0
        %5402 = vmatprep.subr.bf16.mxu0 0
        %5403 = vmatpush1.bf16.msra.mxu0 0
        %5404 = vmatprep.subr.bf16.mxu0 0
        %5405 = vmatpush1.bf16.msra.mxu0 0
        %5406 = vmatprep.subr.bf16.mxu0 0
        %5407 = vmatpush1.bf16.msra.mxu0 0
        %5408 = vmatprep.subr.bf16.mxu0 0
        %5409 = vmatpush1.bf16.msra.mxu0 0
        %5410 = vmatprep.subr.bf16.mxu0 0
        %5411 = vmatpush1.bf16.msra.mxu0 0
        %5412 = vmatprep.mubr.bf16.mxu0 0
        %5413 = vmatmul.mubr.bf16.gmra.mrb[0].mxu0 %v5158
        %v5414 = vpop.f32.mrb[0].mxu0
        %v5415 = vadd.f32 %v5203, %v5414
        %v5416 = vpop.f32.mrb[0].mxu0
        %v5417 = vadd.f32 %v5207, %v5416
        %v5418 = vpop.f32.mrb[0].mxu0
        %v5419 = vadd.f32 %v5203, %v5418
        %v5420 = vpop.f32.mrb[0].mxu0
        %v5421 = vadd.f32 %v5207, %v5420
        %5422 = vmatprep.mubr.bf16.mxu0 0
        %5423 = vmatmul.mubr.bf16.gmra.mrb[0].mxu0 %v5159
        %v5424 = vpop.f32.mrb[0].mxu0
        %v5425 = vadd.f32 %v5203, %v5424
        %v5426 = vpop.f32.mrb[0].mxu0
        %v5427 = vadd.f32 %v5207, %v5426
        %v5428 = vpop.f32.mrb[0].mxu0
        %v5429 = vadd.f32 %v5203, %v5428
        %v5430 = vpop.f32.mrb[0].mxu0
        %v5431 = vadd.f32 %v5207, %v5430
        %5432 = vmatprep.mubr.bf16.mxu0 0
        %5433 = vmatmul.mubr.bf16.gmra.mrb[0].mxu0 %v5160
        %v5434 = vpop.f32.mrb[0].mxu0
        %v5435 = vadd.f32 %v5203, %v5434
        %v5436 = vpop.f32.mrb[0].mxu0
        %v5437 = vadd.f32 %v5207, %v5436
        %v5438 = vpop.f32.mrb[0].mxu0
        %v5439 = vadd.f32 %v5203, %v5438
        %v5440 = vpop.f32.mrb[0].mxu0
        %v5441 = vadd.f32 %v5207, %v5440
        %5442 = vmatprep.mubr.bf16.mxu0 0
        %5443 = vmatmul.mubr.bf16.gmra.mrb[0].mxu0 %v5161
        %v5444 = vpop.f32.mrb[0].mxu0
        %v5445 = vadd.f32 %v5203, %v5444
        %v5446 = vpop.f32.mrb[0].mxu0
        %v5447 = vadd.f32 %v5207, %v5446
        %v5448 = vpop.f32.mrb[0].mxu0
        %v5449 = vadd.f32 %v5203, %v5448
        %v5450 = vpop.f32.mrb[0].mxu0
        %v5451 = vadd.f32 %v5207, %v5450
        %5452 = vmatprep.mubr.bf16.mxu0 0
        %5453 = vmatmul.mubr.bf16.gmra.mrb[0].mxu0 %v5162
        %v5454 = vpop.f32.mrb[0].mxu0
        %v5455 = vadd.f32 %v5203, %v5454
        %v5456 = vpop.f32.mrb[0].mxu0
        %v5457 = vadd.f32 %v5207, %v5456
        %v5458 = vpop.f32.mrb[0].mxu0
        %v5459 = vadd.f32 %v5203, %v5458
        %v5460 = vpop.f32.mrb[0].mxu0
        %v5461 = vadd.f32 %v5207, %v5460
        %5462 = vmatprep.mubr.bf16.mxu0 0
        %5463 = vmatmul.mubr.bf16.gmra.mrb[0].mxu0 %v5163
        %v5464 = vpop.f32.mrb[0].mxu0
        %v5465 = vadd.f32 %v5203, %v5464
        %v5466 = vpop.f32.mrb[0].mxu0
        %v5467 = vadd.f32 %v5207, %v5466
        %v5468 = vpop.f32.mrb[0].mxu0
        %v5469 = vadd.f32 %v5203, %v5468
        %v5470 = vpop.f32.mrb[0].mxu0
        %v5471 = vadd.f32 %v5207, %v5470
        %5472 = vmatprep.mubr.bf16.mxu0 0
        %5473 = vmatmul.mubr.bf16.gmra.mrb[0].mxu0 %v5164
        %v5474 = vpop.f32.mrb[0].mxu0
        %v5475 = vadd.f32 %v5203, %v5474
        %v5476 = vpop.f32.mrb[0].mxu0
        %v5477 = vadd.f32 %v5207, %v5476
        %v5478 = vpop.f32.mrb[0].mxu0
        %v5479 = vadd.f32 %v5203, %v5478
        %v5480 = vpop.f32.mrb[0].mxu0
        %v5481 = vadd.f32 %v5207, %v5480
        %5482 = vmatprep.mubr.bf16.mxu0 0
        %5483 = vmatmul.mubr.bf16.gmra.mrb[0].mxu0 %v5165
        %v5484 = vpop.f32.mrb[0].mxu0
        %v5485 = vadd.f32 %v5203, %v5484
        %v5486 = vpop.f32.mrb[0].mxu0
        %v5487 = vadd.f32 %v5207, %v5486
        %v5488 = vpop.f32.mrb[0].mxu0
        %v5489 = vadd.f32 %v5203, %v5488
        %v5490 = vpop.f32.mrb[0].mxu0
        %v5491 = vadd.f32 %v5207, %v5490
        %5492 = vdwg.mxu0
        %5493 = vmatprep.subr.bf16.mxu0 %v5319
        %5494 = vmatpush1.bf16.msra.mxu0 %v5318
        %5495 = vmatprep.subr.bf16.mxu0 %v5323
        %5496 = vmatpush1.bf16.msra.mxu0 %v5322
        %5497 = vmatprep.subr.bf16.mxu0 %v5327
        %5498 = vmatpush1.bf16.msra.mxu0 %v5326
        %5499 = vmatprep.subr.bf16.mxu0 %v5331
        %5500 = vmatpush1.bf16.msra.mxu0 %v5330
        %5501 = vmatprep.subr.bf16.mxu0 %v5335
        %5502 = vmatpush1.bf16.msra.mxu0 %v5334
        %5503 = vmatprep.subr.bf16.mxu0 %v5339
        %5504 = vmatpush1.bf16.msra.mxu0 %v5338
        %5505 = vmatprep.subr.bf16.mxu0 %v5343
        %5506 = vmatpush1.bf16.msra.mxu0 %v5342
        %5507 = vmatprep.subr.bf16.mxu0 %v5347
        %5508 = vmatpush1.bf16.msra.mxu0 %v5346
        %5509 = vmatprep.subr.bf16.mxu0 0
        %5510 = vmatpush1.bf16.msra.mxu0 0
        %5511 = vmatprep.subr.bf16.mxu0 0
        %5512 = vmatpush1.bf16.msra.mxu0 0
        %5513 = vmatprep.subr.bf16.mxu0 0
        %5514 = vmatpush1.bf16.msra.mxu0 0
        %5515 = vmatprep.subr.bf16.mxu0 0
        %5516 = vmatpush1.bf16.msra.mxu0 0
        %5517 = vmatprep.subr.bf16.mxu0 0
        %5518 = vmatpush1.bf16.msra.mxu0 0
        %5519 = vmatprep.subr.bf16.mxu0 0
        %5520 = vmatpush1.bf16.msra.mxu0 0
        %5521 = vmatprep.subr.bf16.mxu0 0
        %5522 = vmatpush1.bf16.msra.mxu0 0
        %5523 = vmatprep.subr.bf16.mxu0 0
        %5524 = vmatpush1.bf16.msra.mxu0 0
        %5525 = vmatprep.mubr.bf16.mxu0 0
        %5526 = vmatmul.mubr.bf16.gmra.mrb[0].mxu0 %v5158
        %v5527 = vpop.f32.mrb[0].mxu0
        %v5528 = vadd.f32 %v5211, %v5527
        %v5529 = vpop.f32.mrb[0].mxu0
        %v5530 = vadd.f32 %v5215, %v5529
        %v5531 = vpop.f32.mrb[0].mxu0
        %v5532 = vadd.f32 %v5211, %v5531
        %v5533 = vpop.f32.mrb[0].mxu0
        %v5534 = vadd.f32 %v5215, %v5533
        %5535 = vmatprep.mubr.bf16.mxu0 0
        %5536 = vmatmul.mubr.bf16.gmra.mrb[0].mxu0 %v5159
        %v5537 = vpop.f32.mrb[0].mxu0
        %v5538 = vadd.f32 %v5211, %v5537
        %v5539 = vpop.f32.mrb[0].mxu0
        %v5540 = vadd.f32 %v5215, %v5539
        %v5541 = vpop.f32.mrb[0].mxu0
        %v5542 = vadd.f32 %v5211, %v5541
        %v5543 = vpop.f32.mrb[0].mxu0
        %v5544 = vadd.f32 %v5215, %v5543
        %5545 = vmatprep.mubr.bf16.mxu0 0
        %5546 = vmatmul.mubr.bf16.gmra.mrb[0].mxu0 %v5160
        %v5547 = vpop.f32.mrb[0].mxu0
        %v5548 = vadd.f32 %v5211, %v5547
        %v5549 = vpop.f32.mrb[0].mxu0
        %v5550 = vadd.f32 %v5215, %v5549
        %v5551 = vpop.f32.mrb[0].mxu0
        %v5552 = vadd.f32 %v5211, %v5551
        %v5553 = vpop.f32.mrb[0].mxu0
        %v5554 = vadd.f32 %v5215, %v5553
        %5555 = vmatprep.mubr.bf16.mxu0 0
        %5556 = vmatmul.mubr.bf16.gmra.mrb[0].mxu0 %v5161
        %v5557 = vpop.f32.mrb[0].mxu0
        %v5558 = vadd.f32 %v5211, %v5557
        %v5559 = vpop.f32.mrb[0].mxu0
        %v5560 = vadd.f32 %v5215, %v5559
        %v5561 = vpop.f32.mrb[0].mxu0
        %v5562 = vadd.f32 %v5211, %v5561
        %v5563 = vpop.f32.mrb[0].mxu0
        %v5564 = vadd.f32 %v5215, %v5563
        %5565 = vmatprep.mubr.bf16.mxu0 0
        %5566 = vmatmul.mubr.bf16.gmra.mrb[0].mxu0 %v5162
        %v5567 = vpop.f32.mrb[0].mxu0
        %v5568 = vadd.f32 %v5211, %v5567
        %v5569 = vpop.f32.mrb[0].mxu0
        %v5570 = vadd.f32 %v5215, %v5569
        %v5571 = vpop.f32.mrb[0].mxu0
        %v5572 = vadd.f32 %v5211, %v5571
        %v5573 = vpop.f32.mrb[0].mxu0
        %v5574 = vadd.f32 %v5215, %v5573
        %5575 = vmatprep.mubr.bf16.mxu0 0
        %5576 = vmatmul.mubr.bf16.gmra.mrb[0].mxu0 %v5163
        %v5577 = vpop.f32.mrb[0].mxu0
        %v5578 = vadd.f32 %v5211, %v5577
        %v5579 = vpop.f32.mrb[0].mxu0
        %v5580 = vadd.f32 %v5215, %v5579
        %v5581 = vpop.f32.mrb[0].mxu0
        %v5582 = vadd.f32 %v5211, %v5581
        %v5583 = vpop.f32.mrb[0].mxu0
        %v5584 = vadd.f32 %v5215, %v5583
        %5585 = vmatprep.mubr.bf16.mxu0 0
        %5586 = vmatmul.mubr.bf16.gmra.mrb[0].mxu0 %v5164
        %v5587 = vpop.f32.mrb[0].mxu0
        %v5588 = vadd.f32 %v5211, %v5587
        %v5589 = vpop.f32.mrb[0].mxu0
        %v5590 = vadd.f32 %v5215, %v5589
        %v5591 = vpop.f32.mrb[0].mxu0
        %v5592 = vadd.f32 %v5211, %v5591
        %v5593 = vpop.f32.mrb[0].mxu0
        %v5594 = vadd.f32 %v5215, %v5593
        %5595 = vmatprep.mubr.bf16.mxu0 0
        %5596 = vmatmul.mubr.bf16.gmra.mrb[0].mxu0 %v5165
        %v5597 = vpop.f32.mrb[0].mxu0
        %v5598 = vadd.f32 %v5211, %v5597
        %v5599 = vpop.f32.mrb[0].mxu0
        %v5600 = vadd.f32 %v5215, %v5599
        %v5601 = vpop.f32.mrb[0].mxu0
        %v5602 = vadd.f32 %v5211, %v5601
        %v5603 = vpop.f32.mrb[0].mxu0
        %v5604 = vadd.f32 %v5215, %v5603
        %5605 = vdwg.mxu0
        %v5606 = vmax.f32 %v5415, 0.0
        %v5607 = vmax.f32 %v5417, 0.0
        %v5608 = vmax.f32 %v5528, 0.0
        %v5609 = vmax.f32 %v5530, 0.0
        %v5610 = vmax.f32 %v5419, 0.0
        %v5611 = vmax.f32 %v5421, 0.0
        %v5612 = vmax.f32 %v5532, 0.0
        %v5613 = vmax.f32 %v5534, 0.0
        %v5614 = vmax.f32 %v5425, 0.0
        %v5615 = vmax.f32 %v5427, 0.0
        %v5616 = vmax.f32 %v5538, 0.0
        %v5617 = vmax.f32 %v5540, 0.0
        %v5618 = vmax.f32 %v5429, 0.0
        %v5619 = vmax.f32 %v5431, 0.0
        %v5620 = vmax.f32 %v5542, 0.0
        %v5621 = vmax.f32 %v5544, 0.0
        %v5622 = vmax.f32 %v5435, 0.0
        %v5623 = vmax.f32 %v5437, 0.0
        %v5624 = vmax.f32 %v5548, 0.0
        %v5625 = vmax.f32 %v5550, 0.0
        %v5626 = vmax.f32 %v5439, 0.0
        %v5627 = vmax.f32 %v5441, 0.0
        %v5628 = vmax.f32 %v5552, 0.0
        %v5629 = vmax.f32 %v5554, 0.0
        %v5630 = vmax.f32 %v5445, 0.0
        %v5631 = vmax.f32 %v5447, 0.0
        %v5632 = vmax.f32 %v5558, 0.0
        %v5633 = vmax.f32 %v5560, 0.0
        %v5634 = vmax.f32 %v5449, 0.0
        %v5635 = vmax.f32 %v5451, 0.0
        %v5636 = vmax.f32 %v5562, 0.0
        %v5637 = vmax.f32 %v5564, 0.0
        %v5638 = vmax.f32 %v5455, 0.0
        %v5639 = vmax.f32 %v5457, 0.0
        %v5640 = vmax.f32 %v5568, 0.0
        %v5641 = vmax.f32 %v5570, 0.0
        %v5642 = vmax.f32 %v5459, 0.0
        %v5643 = vmax.f32 %v5461, 0.0
        %v5644 = vmax.f32 %v5572, 0.0
        %v5645 = vmax.f32 %v5574, 0.0
        %v5646 = vmax.f32 %v5465, 0.0
        %v5647 = vmax.f32 %v5467, 0.0
        %v5648 = vmax.f32 %v5578, 0.0
        %v5649 = vmax.f32 %v5580, 0.0
        %v5650 = vmax.f32 %v5469, 0.0
        %v5651 = vmax.f32 %v5471, 0.0
        %v5652 = vmax.f32 %v5582, 0.0
        %v5653 = vmax.f32 %v5584, 0.0
        %v5654 = vmax.f32 %v5475, 0.0
        %v5655 = vmax.f32 %v5477, 0.0
        %v5656 = vmax.f32 %v5588, 0.0
        %v5657 = vmax.f32 %v5590, 0.0
        %v5658 = vmax.f32 %v5479, 0.0
        %v5659 = vmax.f32 %v5481, 0.0
        %v5660 = vmax.f32 %v5592, 0.0
        %v5661 = vmax.f32 %v5594, 0.0
        %v5662 = vmax.f32 %v5485, 0.0
        %v5663 = vmax.f32 %v5487, 0.0
        %v5664 = vmax.f32 %v5598, 0.0
        %v5665 = vmax.f32 %v5600, 0.0
        %v5666 = vmax.f32 %v5489, 0.0
        %v5667 = vmax.f32 %v5491, 0.0
        %v5668 = vmax.f32 %v5602, 0.0
        %v5669 = vmax.f32 %v5604, 0.0
        %v5670 = vpack.c.bf16 %v5610, %v5606
        %v5671 = vpack.c.bf16 %v5611, %v5607
        %v5672 = vpack.c.bf16 %v5612, %v5608
        %v5673 = vpack.c.bf16 %v5613, %v5609
        %v5674 = vpack.c.bf16 %v5618, %v5614
        %v5675 = vpack.c.bf16 %v5619, %v5615
        %v5676 = vpack.c.bf16 %v5620, %v5616
        %v5677 = vpack.c.bf16 %v5621, %v5617
        %v5678 = vpack.c.bf16 %v5626, %v5622
        %v5679 = vpack.c.bf16 %v5627, %v5623
        %v5680 = vpack.c.bf16 %v5628, %v5624
        %v5681 = vpack.c.bf16 %v5629, %v5625
        %v5682 = vpack.c.bf16 %v5634, %v5630
        %v5683 = vpack.c.bf16 %v5635, %v5631
        %v5684 = vpack.c.bf16 %v5636, %v5632
        %v5685 = vpack.c.bf16 %v5637, %v5633
        %v5686 = vpack.c.bf16 %v5642, %v5638
        %v5687 = vpack.c.bf16 %v5643, %v5639
        %v5688 = vpack.c.bf16 %v5644, %v5640
        %v5689 = vpack.c.bf16 %v5645, %v5641
        %v5690 = vpack.c.bf16 %v5650, %v5646
        %v5691 = vpack.c.bf16 %v5651, %v5647
        %v5692 = vpack.c.bf16 %v5652, %v5648
        %v5693 = vpack.c.bf16 %v5653, %v5649
        %v5694 = vpack.c.bf16 %v5658, %v5654
        %v5695 = vpack.c.bf16 %v5659, %v5655
        %v5696 = vpack.c.bf16 %v5660, %v5656
        %v5697 = vpack.c.bf16 %v5661, %v5657
        %v5698 = vpack.c.bf16 %v5666, %v5662
        %v5699 = vpack.c.bf16 %v5667, %v5663
        %v5700 = vpack.c.bf16 %v5668, %v5664
        %v5701 = vpack.c.bf16 %v5669, %v5665
        %v5702 = vld [vmem:[#allocation14] sm:$0xf]
        %v5703 = vld [vmem:[#allocation14 + $0x4] sm:$0xf]
        %v5704 = vld [vmem:[#allocation14 + $0x8] sm:$0xf]
        %v5705 = vld [vmem:[#allocation14 + $0xc] sm:$0xf]
        %v5706 = vld [vmem:[#allocation14 + $0x10] sm:$0xf]
        %v5707 = vld [vmem:[#allocation14 + $0x14] sm:$0xf]
        %v5708 = vld [vmem:[#allocation14 + $0x18] sm:$0xf]
        %v5709 = vld [vmem:[#allocation14 + $0x1c] sm:$0xf]
        %v5710 = vld [vmem:[#allocation14 + $0x20] sm:$0xf]
        %v5711 = vld [vmem:[#allocation14 + $0x24] sm:$0xf]
        %v5712 = vld [vmem:[#allocation14 + $0x28] sm:$0xf]
        %v5713 = vld [vmem:[#allocation14 + $0x2c] sm:$0xf]
        %v5714 = vld [vmem:[#allocation14 + $0x30] sm:$0xf]
        %v5715 = vld [vmem:[#allocation14 + $0x34] sm:$0xf]
        %v5716 = vld [vmem:[#allocation14 + $0x38] sm:$0xf]
        %v5717 = vld [vmem:[#allocation14 + $0x3c] sm:$0xf]
        %v5718 = vld [vmem:[#allocation14 + $0x40] sm:$0xf]
        %v5719 = vld [vmem:[#allocation14 + $0x44] sm:$0xf]
        %v5720 = vld [vmem:[#allocation14 + $0x48] sm:$0xf]
        %v5721 = vld [vmem:[#allocation14 + $0x4c] sm:$0xf]
        %v5722 = vld [vmem:[#allocation14 + $0x50] sm:$0xf]
        %v5723 = vld [vmem:[#allocation14 + $0x54] sm:$0xf]
        %v5724 = vld [vmem:[#allocation14 + $0x58] sm:$0xf]
        %v5725 = vld [vmem:[#allocation14 + $0x5c] sm:$0xf]
        %v5726 = vld [vmem:[#allocation14 + $0x60] sm:$0xf]
        %v5727 = vld [vmem:[#allocation14 + $0x64] sm:$0xf]
        %v5728 = vld [vmem:[#allocation14 + $0x68] sm:$0xf]
        %v5729 = vld [vmem:[#allocation14 + $0x6c] sm:$0xf]
        %v5730 = vld [vmem:[#allocation14 + $0x70] sm:$0xf]
        %v5731 = vld [vmem:[#allocation14 + $0x74] sm:$0xf]
        %v5732 = vld [vmem:[#allocation14 + $0x78] sm:$0xf]
        %v5733 = vld [vmem:[#allocation14 + $0x7c] sm:$0xf]
        %v5734 = vld [vmem:[#allocation14 + $0x80] sm:$0xf]
        %v5735 = vld [vmem:[#allocation14 + $0x84] sm:$0xf]
        %v5736 = vld [vmem:[#allocation14 + $0x88] sm:$0xf]
        %v5737 = vld [vmem:[#allocation14 + $0x8c] sm:$0xf]
        %v5738 = vld [vmem:[#allocation14 + $0x90] sm:$0xf]
        %v5739 = vld [vmem:[#allocation14 + $0x94] sm:$0xf]
        %v5740 = vld [vmem:[#allocation14 + $0x98] sm:$0xf]
        %v5741 = vld [vmem:[#allocation14 + $0x9c] sm:$0xf]
        %v5742 = vld [vmem:[#allocation14 + $0xa0] sm:$0xf]
        %v5743 = vld [vmem:[#allocation14 + $0xa4] sm:$0xf]
        %v5744 = vld [vmem:[#allocation14 + $0xa8] sm:$0xf]
        %v5745 = vld [vmem:[#allocation14 + $0xac] sm:$0xf]
        %v5746 = vld [vmem:[#allocation14 + $0xb0] sm:$0xf]
        %v5747 = vld [vmem:[#allocation14 + $0xb4] sm:$0xf]
        %v5748 = vld [vmem:[#allocation14 + $0xb8] sm:$0xf]
        %v5749 = vld [vmem:[#allocation14 + $0xbc] sm:$0xf]
        %v5750 = vld [vmem:[#allocation14 + $0xc0] sm:$0xf]
        %v5751 = vld [vmem:[#allocation14 + $0xc4] sm:$0xf]
        %v5752 = vld [vmem:[#allocation14 + $0xc8] sm:$0xf]
        %v5753 = vld [vmem:[#allocation14 + $0xcc] sm:$0xf]
        %v5754 = vld [vmem:[#allocation14 + $0xd0] sm:$0xf]
        %v5755 = vld [vmem:[#allocation14 + $0xd4] sm:$0xf]
        %v5756 = vld [vmem:[#allocation14 + $0xd8] sm:$0xf]
        %v5757 = vld [vmem:[#allocation14 + $0xdc] sm:$0xf]
        %v5758 = vld [vmem:[#allocation14 + $0xe0] sm:$0xf]
        %v5759 = vld [vmem:[#allocation14 + $0xe4] sm:$0xf]
        %v5760 = vld [vmem:[#allocation14 + $0xe8] sm:$0xf]
        %v5761 = vld [vmem:[#allocation14 + $0xec] sm:$0xf]
        %v5762 = vld [vmem:[#allocation14 + $0xf0] sm:$0xf]
        %v5763 = vld [vmem:[#allocation14 + $0xf4] sm:$0xf]
        %v5764 = vld [vmem:[#allocation14 + $0xf8] sm:$0xf]
        %v5765 = vld [vmem:[#allocation14 + $0xfc] sm:$0xf]
        %v5766 = vld [vmem:[#allocation16] sm:$0x1]
        %v5768 = vlaneseq
        %v5769 = vshrl.u32 %v5768, 7
        %v5770 = vsub.s32 0, %v5769
        %v5771 = vrot.slane %v5766, %v5770
        %v5837 = vunpack.c.l.b16 %v5702
        %v5838 = vunpack.c.l.b16 %v5703
        %v5839 = vunpack.c.l.b16 %v5704
        %v5840 = vunpack.c.l.b16 %v5705
        %v5841 = vunpack.c.l.b16 %v5706
        %v5842 = vunpack.c.l.b16 %v5707
        %v5843 = vunpack.c.l.b16 %v5708
        %v5844 = vunpack.c.l.b16 %v5709
        %v5845 = vunpack.c.l.b16 %v5710
        %v5846 = vunpack.c.l.b16 %v5711
        %v5847 = vunpack.c.l.b16 %v5712
        %v5848 = vunpack.c.l.b16 %v5713
        %v5849 = vunpack.c.l.b16 %v5714
        %v5850 = vunpack.c.l.b16 %v5715
        %v5851 = vunpack.c.l.b16 %v5716
        %v5852 = vunpack.c.l.b16 %v5717
        %v5853 = vunpack.c.l.b16 %v5718
        %v5854 = vunpack.c.l.b16 %v5719
        %v5855 = vunpack.c.l.b16 %v5720
        %v5856 = vunpack.c.l.b16 %v5721
        %v5857 = vunpack.c.l.b16 %v5722
        %v5858 = vunpack.c.l.b16 %v5723
        %v5859 = vunpack.c.l.b16 %v5724
        %v5860 = vunpack.c.l.b16 %v5725
        %v5861 = vunpack.c.l.b16 %v5726
        %v5862 = vunpack.c.l.b16 %v5727
        %v5863 = vunpack.c.l.b16 %v5728
        %v5864 = vunpack.c.l.b16 %v5729
        %v5865 = vunpack.c.l.b16 %v5730
        %v5866 = vunpack.c.l.b16 %v5731
        %v5867 = vunpack.c.l.b16 %v5732
        %v5868 = vunpack.c.l.b16 %v5733
        %v5869 = vunpack.c.l.b16 %v5734
        %v5870 = vunpack.c.l.b16 %v5735
        %v5871 = vunpack.c.l.b16 %v5736
        %v5872 = vunpack.c.l.b16 %v5737
        %v5873 = vunpack.c.l.b16 %v5738
        %v5874 = vunpack.c.l.b16 %v5739
        %v5875 = vunpack.c.l.b16 %v5740
        %v5876 = vunpack.c.l.b16 %v5741
        %v5877 = vunpack.c.l.b16 %v5742
        %v5878 = vunpack.c.l.b16 %v5743
        %v5879 = vunpack.c.l.b16 %v5744
        %v5880 = vunpack.c.l.b16 %v5745
        %v5881 = vunpack.c.l.b16 %v5746
        %v5882 = vunpack.c.l.b16 %v5747
        %v5883 = vunpack.c.l.b16 %v5748
        %v5884 = vunpack.c.l.b16 %v5749
        %v5885 = vunpack.c.l.b16 %v5750
        %v5886 = vunpack.c.l.b16 %v5751
        %v5887 = vunpack.c.l.b16 %v5752
        %v5888 = vunpack.c.l.b16 %v5753
        %v5889 = vunpack.c.l.b16 %v5754
        %v5890 = vunpack.c.l.b16 %v5755
        %v5891 = vunpack.c.l.b16 %v5756
        %v5892 = vunpack.c.l.b16 %v5757
        %v5893 = vunpack.c.l.b16 %v5758
        %v5894 = vunpack.c.l.b16 %v5759
        %v5895 = vunpack.c.l.b16 %v5760
        %v5896 = vunpack.c.l.b16 %v5761
        %v5897 = vunpack.c.l.b16 %v5762
        %v5898 = vunpack.c.l.b16 %v5763
        %v5899 = vunpack.c.l.b16 %v5764
        %v5900 = vunpack.c.l.b16 %v5765
        %v5901 = vpack.c.b16 %v5838, %v5837
        %v5902 = vpack.c.b16 %v5840, %v5839
        %v5903 = vpack.c.b16 %v5842, %v5841
        %v5904 = vpack.c.b16 %v5844, %v5843
        %v5905 = vpack.c.b16 %v5846, %v5845
        %v5906 = vpack.c.b16 %v5848, %v5847
        %v5907 = vpack.c.b16 %v5850, %v5849
        %v5908 = vpack.c.b16 %v5852, %v5851
        %v5909 = vpack.c.b16 %v5854, %v5853
        %v5910 = vpack.c.b16 %v5856, %v5855
        %v5911 = vpack.c.b16 %v5858, %v5857
        %v5912 = vpack.c.b16 %v5860, %v5859
        %v5913 = vpack.c.b16 %v5862, %v5861
        %v5914 = vpack.c.b16 %v5864, %v5863
        %v5915 = vpack.c.b16 %v5866, %v5865
        %v5916 = vpack.c.b16 %v5868, %v5867
        %v5917 = vpack.c.b16 %v5870, %v5869
        %v5918 = vpack.c.b16 %v5872, %v5871
        %v5919 = vpack.c.b16 %v5874, %v5873
        %v5920 = vpack.c.b16 %v5876, %v5875
        %v5921 = vpack.c.b16 %v5878, %v5877
        %v5922 = vpack.c.b16 %v5880, %v5879
        %v5923 = vpack.c.b16 %v5882, %v5881
        %v5924 = vpack.c.b16 %v5884, %v5883
        %v5925 = vpack.c.b16 %v5886, %v5885
        %v5926 = vpack.c.b16 %v5888, %v5887
        %v5927 = vpack.c.b16 %v5890, %v5889
        %v5928 = vpack.c.b16 %v5892, %v5891
        %v5929 = vpack.c.b16 %v5894, %v5893
        %v5930 = vpack.c.b16 %v5896, %v5895
        %v5931 = vpack.c.b16 %v5898, %v5897
        %v5932 = vpack.c.b16 %v5900, %v5899
        %5965 = vmatprep.subr.bf16.mxu0 0
        %5966 = vmatpush1.bf16.msra.mxu0 %v5901
        %5967 = vmatprep.subr.bf16.mxu0 0
        %5968 = vmatpush1.bf16.msra.mxu0 %v5902
        %5969 = vmatprep.subr.bf16.mxu0 0
        %5970 = vmatpush1.bf16.msra.mxu0 %v5903
        %5971 = vmatprep.subr.bf16.mxu0 0
        %5972 = vmatpush1.bf16.msra.mxu0 %v5904
        %5973 = vmatprep.subr.bf16.mxu0 0
        %5974 = vmatpush1.bf16.msra.mxu0 %v5905
        %5975 = vmatprep.subr.bf16.mxu0 0
        %5976 = vmatpush1.bf16.msra.mxu0 %v5906
        %5977 = vmatprep.subr.bf16.mxu0 0
        %5978 = vmatpush1.bf16.msra.mxu0 %v5907
        %5979 = vmatprep.subr.bf16.mxu0 0
        %5980 = vmatpush1.bf16.msra.mxu0 %v5908
        %5981 = vmatprep.subr.bf16.mxu0 0
        %5982 = vmatpush1.bf16.msra.mxu0 %v5909
        %5983 = vmatprep.subr.bf16.mxu0 0
        %5984 = vmatpush1.bf16.msra.mxu0 %v5910
        %5985 = vmatprep.subr.bf16.mxu0 0
        %5986 = vmatpush1.bf16.msra.mxu0 %v5911
        %5987 = vmatprep.subr.bf16.mxu0 0
        %5988 = vmatpush1.bf16.msra.mxu0 %v5912
        %5989 = vmatprep.subr.bf16.mxu0 0
        %5990 = vmatpush1.bf16.msra.mxu0 %v5913
        %5991 = vmatprep.subr.bf16.mxu0 0
        %5992 = vmatpush1.bf16.msra.mxu0 %v5914
        %5993 = vmatprep.subr.bf16.mxu0 0
        %5994 = vmatpush1.bf16.msra.mxu0 %v5915
        %5995 = vmatprep.subr.bf16.mxu0 0
        %5996 = vmatpush1.bf16.msra.mxu0 %v5916
        %5997 = vmatprep.mubr.bf16.mxu0 %v5671
        %5998 = vmatmul.mubr.bf16.gmra.mrb[0].mxu0 %v5670
        %v5999 = vpop.f32.mrb[0].mxu0
        %v6000 = vadd.f32 %v5771, %v5999
        %v6001 = vpop.f32.mrb[0].mxu0
        %v6002 = vpop.f32.mrb[0].mxu0
        %v6003 = vadd.f32 %v5771, %v6002
        %v6004 = vpop.f32.mrb[0].mxu0
        %6005 = vmatprep.mubr.bf16.mxu0 %v5675
        %6006 = vmatmul.mubr.bf16.gmra.mrb[0].mxu0 %v5674
        %v6007 = vpop.f32.mrb[0].mxu0
        %v6008 = vadd.f32 %v5771, %v6007
        %v6009 = vpop.f32.mrb[0].mxu0
        %v6010 = vpop.f32.mrb[0].mxu0
        %v6011 = vadd.f32 %v5771, %v6010
        %v6012 = vpop.f32.mrb[0].mxu0
        %6013 = vmatprep.mubr.bf16.mxu0 %v5679
        %6014 = vmatmul.mubr.bf16.gmra.mrb[0].mxu0 %v5678
        %v6015 = vpop.f32.mrb[0].mxu0
        %v6016 = vadd.f32 %v5771, %v6015
        %v6017 = vpop.f32.mrb[0].mxu0
        %v6018 = vpop.f32.mrb[0].mxu0
        %v6019 = vadd.f32 %v5771, %v6018
        %v6020 = vpop.f32.mrb[0].mxu0
        %6021 = vmatprep.mubr.bf16.mxu0 %v5683
        %6022 = vmatmul.mubr.bf16.gmra.mrb[0].mxu0 %v5682
        %v6023 = vpop.f32.mrb[0].mxu0
        %v6024 = vadd.f32 %v5771, %v6023
        %v6025 = vpop.f32.mrb[0].mxu0
        %v6026 = vpop.f32.mrb[0].mxu0
        %v6027 = vadd.f32 %v5771, %v6026
        %v6028 = vpop.f32.mrb[0].mxu0
        %6029 = vmatprep.mubr.bf16.mxu0 %v5687
        %6030 = vmatmul.mubr.bf16.gmra.mrb[0].mxu0 %v5686
        %v6031 = vpop.f32.mrb[0].mxu0
        %v6032 = vadd.f32 %v5771, %v6031
        %v6033 = vpop.f32.mrb[0].mxu0
        %v6034 = vpop.f32.mrb[0].mxu0
        %v6035 = vadd.f32 %v5771, %v6034
        %v6036 = vpop.f32.mrb[0].mxu0
        %6037 = vmatprep.mubr.bf16.mxu0 %v5691
        %6038 = vmatmul.mubr.bf16.gmra.mrb[0].mxu0 %v5690
        %v6039 = vpop.f32.mrb[0].mxu0
        %v6040 = vadd.f32 %v5771, %v6039
        %v6041 = vpop.f32.mrb[0].mxu0
        %v6042 = vpop.f32.mrb[0].mxu0
        %v6043 = vadd.f32 %v5771, %v6042
        %v6044 = vpop.f32.mrb[0].mxu0
        %6045 = vmatprep.mubr.bf16.mxu0 %v5695
        %6046 = vmatmul.mubr.bf16.gmra.mrb[0].mxu0 %v5694
        %v6047 = vpop.f32.mrb[0].mxu0
        %v6048 = vadd.f32 %v5771, %v6047
        %v6049 = vpop.f32.mrb[0].mxu0
        %v6050 = vpop.f32.mrb[0].mxu0
        %v6051 = vadd.f32 %v5771, %v6050
        %v6052 = vpop.f32.mrb[0].mxu0
        %6053 = vmatprep.mubr.bf16.mxu0 %v5699
        %6054 = vmatmul.mubr.bf16.gmra.mrb[0].mxu0 %v5698
        %v6055 = vpop.f32.mrb[0].mxu0
        %v6056 = vadd.f32 %v5771, %v6055
        %v6057 = vpop.f32.mrb[0].mxu0
        %v6058 = vpop.f32.mrb[0].mxu0
        %v6059 = vadd.f32 %v5771, %v6058
        %v6060 = vpop.f32.mrb[0].mxu0
        %6061 = vdwg.mxu0
        %6062 = vmatprep.subr.bf16.mxu0 0
        %6063 = vmatpush1.bf16.msra.mxu0 %v5917
        %6064 = vmatprep.subr.bf16.mxu0 0
        %6065 = vmatpush1.bf16.msra.mxu0 %v5918
        %6066 = vmatprep.subr.bf16.mxu0 0
        %6067 = vmatpush1.bf16.msra.mxu0 %v5919
        %6068 = vmatprep.subr.bf16.mxu0 0
        %6069 = vmatpush1.bf16.msra.mxu0 %v5920
        %6070 = vmatprep.subr.bf16.mxu0 0
        %6071 = vmatpush1.bf16.msra.mxu0 %v5921
        %6072 = vmatprep.subr.bf16.mxu0 0
        %6073 = vmatpush1.bf16.msra.mxu0 %v5922
        %6074 = vmatprep.subr.bf16.mxu0 0
        %6075 = vmatpush1.bf16.msra.mxu0 %v5923
        %6076 = vmatprep.subr.bf16.mxu0 0
        %6077 = vmatpush1.bf16.msra.mxu0 %v5924
        %6078 = vmatprep.subr.bf16.mxu0 0
        %6079 = vmatpush1.bf16.msra.mxu0 %v5925
        %6080 = vmatprep.subr.bf16.mxu0 0
        %6081 = vmatpush1.bf16.msra.mxu0 %v5926
        %6082 = vmatprep.subr.bf16.mxu0 0
        %6083 = vmatpush1.bf16.msra.mxu0 %v5927
        %6084 = vmatprep.subr.bf16.mxu0 0
        %6085 = vmatpush1.bf16.msra.mxu0 %v5928
        %6086 = vmatprep.subr.bf16.mxu0 0
        %6087 = vmatpush1.bf16.msra.mxu0 %v5929
        %6088 = vmatprep.subr.bf16.mxu0 0
        %6089 = vmatpush1.bf16.msra.mxu0 %v5930
        %6090 = vmatprep.subr.bf16.mxu0 0
        %6091 = vmatpush1.bf16.msra.mxu0 %v5931
        %6092 = vmatprep.subr.bf16.mxu0 0
        %6093 = vmatpush1.bf16.msra.mxu0 %v5932
        %6094 = vmatprep.mubr.bf16.mxu0 %v5673
        %6095 = vmatmul.mubr.bf16.gmra.mrb[0].mxu0 %v5672
        %v6096 = vpop.f32.mrb[0].mxu0
        %v6097 = vadd.f32 %v6000, %v6096
        %v6098 = vpop.f32.mrb[0].mxu0
        %v6099 = vpop.f32.mrb[0].mxu0
        %v6100 = vadd.f32 %v6003, %v6099
        %v6101 = vpop.f32.mrb[0].mxu0
        %6102 = vmatprep.mubr.bf16.mxu0 %v5677
        %6103 = vmatmul.mubr.bf16.gmra.mrb[0].mxu0 %v5676
        %v6104 = vpop.f32.mrb[0].mxu0
        %v6105 = vadd.f32 %v6008, %v6104
        %v6106 = vpop.f32.mrb[0].mxu0
        %v6107 = vpop.f32.mrb[0].mxu0
        %v6108 = vadd.f32 %v6011, %v6107
        %v6109 = vpop.f32.mrb[0].mxu0
        %6110 = vmatprep.mubr.bf16.mxu0 %v5681
        %6111 = vmatmul.mubr.bf16.gmra.mrb[0].mxu0 %v5680
        %v6112 = vpop.f32.mrb[0].mxu0
        %v6113 = vadd.f32 %v6016, %v6112
        %v6114 = vpop.f32.mrb[0].mxu0
        %v6115 = vpop.f32.mrb[0].mxu0
        %v6116 = vadd.f32 %v6019, %v6115
        %v6117 = vpop.f32.mrb[0].mxu0
        %6118 = vmatprep.mubr.bf16.mxu0 %v5685
        %6119 = vmatmul.mubr.bf16.gmra.mrb[0].mxu0 %v5684
        %v6120 = vpop.f32.mrb[0].mxu0
        %v6121 = vadd.f32 %v6024, %v6120
        %v6122 = vpop.f32.mrb[0].mxu0
        %v6123 = vpop.f32.mrb[0].mxu0
        %v6124 = vadd.f32 %v6027, %v6123
        %v6125 = vpop.f32.mrb[0].mxu0
        %6126 = vmatprep.mubr.bf16.mxu0 %v5689
        %6127 = vmatmul.mubr.bf16.gmra.mrb[0].mxu0 %v5688
        %v6128 = vpop.f32.mrb[0].mxu0
        %v6129 = vadd.f32 %v6032, %v6128
        %v6130 = vpop.f32.mrb[0].mxu0
        %v6131 = vpop.f32.mrb[0].mxu0
        %v6132 = vadd.f32 %v6035, %v6131
        %v6133 = vpop.f32.mrb[0].mxu0
        %6134 = vmatprep.mubr.bf16.mxu0 %v5693
        %6135 = vmatmul.mubr.bf16.gmra.mrb[0].mxu0 %v5692
        %v6136 = vpop.f32.mrb[0].mxu0
        %v6137 = vadd.f32 %v6040, %v6136
        %v6138 = vpop.f32.mrb[0].mxu0
        %v6139 = vpop.f32.mrb[0].mxu0
        %v6140 = vadd.f32 %v6043, %v6139
        %v6141 = vpop.f32.mrb[0].mxu0
        %6142 = vmatprep.mubr.bf16.mxu0 %v5697
        %6143 = vmatmul.mubr.bf16.gmra.mrb[0].mxu0 %v5696
        %v6144 = vpop.f32.mrb[0].mxu0
        %v6145 = vadd.f32 %v6048, %v6144
        %v6146 = vpop.f32.mrb[0].mxu0
        %v6147 = vpop.f32.mrb[0].mxu0
        %v6148 = vadd.f32 %v6051, %v6147
        %v6149 = vpop.f32.mrb[0].mxu0
        %6150 = vmatprep.mubr.bf16.mxu0 %v5701
        %6151 = vmatmul.mubr.bf16.gmra.mrb[0].mxu0 %v5700
        %v6152 = vpop.f32.mrb[0].mxu0
        %v6153 = vadd.f32 %v6056, %v6152
        %v6154 = vpop.f32.mrb[0].mxu0
        %v6155 = vpop.f32.mrb[0].mxu0
        %v6156 = vadd.f32 %v6059, %v6155
        %v6157 = vpop.f32.mrb[0].mxu0
        %6158 = vdwg.mxu0
        %6159 = vst [vmem:[%s459] sm:$0xff] %v6097
        %6160 = vst [vmem:[%s459 + $0x8] sm:$0xff] %v6100
        %6161 = vst [vmem:[%s459 + $0x10] sm:$0xff] %v6105
        %6162 = vst [vmem:[%s459 + $0x18] sm:$0xff] %v6108
        %6163 = vst [vmem:[%s459 + $0x20] sm:$0xff] %v6113
        %6164 = vst [vmem:[%s459 + $0x28] sm:$0xff] %v6116
        %6165 = vst [vmem:[%s459 + $0x30] sm:$0xff] %v6121
        %6166 = vst [vmem:[%s459 + $0x38] sm:$0xff] %v6124
        %6167 = vst [vmem:[%s459 + $0x40] sm:$0xff] %v6129
        %6168 = vst [vmem:[%s459 + $0x48] sm:$0xff] %v6132
        %6169 = vst [vmem:[%s459 + $0x50] sm:$0xff] %v6137
        %6170 = vst [vmem:[%s459 + $0x58] sm:$0xff] %v6140
        %6171 = vst [vmem:[%s459 + $0x60] sm:$0xff] %v6145
        %6172 = vst [vmem:[%s459 + $0x68] sm:$0xff] %v6148
        %6173 = vst [vmem:[%s459 + $0x70] sm:$0xff] %v6153
        %6174 = vst [vmem:[%s459 + $0x78] sm:$0xff] %v6156
        %s6175 = sand.u32 %s232, 1
        %s6176 = scalar_lea.sflag [#allocation4], %s6175
        %s6177 = sand.u32 %s232, 1
        %s6178 = smul.addr %s6177, 128
        %s6179 = scalar_lea.vmem [#allocation17], %s6178
        // Predicated region
        $region93: #{tpu_custom_call.1} parent=55 // pred_check
          %p6180 = pneg %p242
        $region94: #{tpu_custom_call.1} parent=55 // pred_check_branch
          %6182 = sbr.rel (%p6180) target = $region96
        $region95: #{tpu_custom_call.1} parent=55 // pred_region
          %s6183 = smul.u32 8, %s30
          %s6185 = ssub.s32 2048, 2048
          %6186 = vsyncadd %s6176, %s6185
          %s6187 = smul.addr %s6183, 2
          %s6188 = smul.addr %s6187, 128
          %s6189 = scalar_lea.hbm %s9, %s6188
          %s6190 = sshll.u32 %s6179, 4
          %s6191 = int_to_ptr.vmem [resolvable:$true] %s6190
          %6196 = dma.vmem_to_hbm [thread:$0]  %s6191, 2048, %s6189, %s6176, 128, 128, 8
        $region96: #{tpu_custom_call.1} parent=55 // pred_fallthru
          _
      $region56: #{tpu_custom_call.1} parent=5 // pred_fallthru
        _
      %p6197 = scmp.le.s32.totalorder 2, %s25
      // Predicated region
      $region97: #{tpu_custom_call.1} parent=5 // pred_check
        %p6198 = pneg %p6197
      $region98: #{tpu_custom_call.1} parent=5 // pred_check_branch
        %6200 = sbr.rel (%p6198) target = $region100
      $region99: #{tpu_custom_call.1} parent=5 // pred_region
        %s6201 = ssub.s32 %s25, 2
        // Predicated region
        $region101: #{tpu_custom_call.1} parent=99 // pred_check
          %p6202 = pneg %p248
        $region102: #{tpu_custom_call.1} parent=99 // pred_check_branch
          %6204 = sbr.rel (%p6202) target = $region104
        $region103: #{tpu_custom_call.1} parent=99 // pred_region
          %s6205 = sand.u32 %s233, 1
          %s6206 = scalar_lea.sflag [#allocation4], %s6205
          %s6207 = sand.u32 %s233, 1
          %s6208 = smul.addr %s6207, 128
          %s6209 = scalar_lea.vmem [#allocation17], %s6208
          %6210 = dma.done %s6206, 2048
        $region104: #{tpu_custom_call.1} parent=99 // pred_fallthru
          _
      $region100: #{tpu_custom_call.1} parent=5 // pred_fallthru
        _
    $region6: #{tpu_custom_call.1} parent=1 // loop_footer
      %s29 = sadd.s32 1, %s25
    $region7: #{tpu_custom_call.1} parent=1 // loop_footer_branch
      %24 = sbr.rel target = $region3
    $region8: #{tpu_custom_call.1} parent=1 // loop_exit
      _
    %6211 = vsyncpa [#allocation3], 1
    %s6212 = scalar_lea.sflag [#allocation3], 1
    %6213 = vsyncpa %s6212, 1
    %6214 = vsyncpa [#allocation6], 1
    %6215 = vsyncpa [#allocation9], 1
    %6216 = vsyncpa [#allocation12], 1
    %6217 = vsyncpa [#allocation15], 1
    %6218 = vsyncpa [#allocation4], 1
    %s6219 = scalar_lea.sflag [#allocation4], 1
    %6220 = vsyncpa %s6219, 1

</llo_original>
